<compile_context>
chip_gen: v7x
topology: tpu7x:2x2x1
jax: 0.10.0
libtpu: 0.0.40
codegen_flags: <defaults>
</compile_context>

<pallas_src>
import functools

import jax
import jax.numpy as jnp
from jax.experimental import pallas as pl
from jax.experimental.pallas import tpu as pltpu

LANES = 128  # padded channel width for all trunk activations


def _round_up(x, m):
    return (x + m - 1) // m * m


# ---------------------------------------------------------------------------
# Kernels
# ---------------------------------------------------------------------------
def _matmul_bias_relu_kernel(x_ref, w_ref, b_ref, o_ref):
    """o = relu(x @ w + b); bf16 MXU inputs, f32 accumulation / epilogue."""
    y = jnp.dot(x_ref[...].astype(jnp.bfloat16), w_ref[...],
                preferred_element_type=jnp.float32)
    o_ref[...] = jnp.maximum(y + b_ref[...], 0.0).astype(o_ref.dtype)


def _bottleneck_kernel(x_ref, w1_ref, b1_ref, w2_ref, b2_ref, w3_ref, b3_ref,
                       o_ref, pad_ref):
    """Fused ResNet bottleneck: 1x1 -> 3x3(pad 1) -> 1x1 + residual, ReLU each.

    One grid step = one image; everything stays in VMEM.
    pad_ref: (Hs+2, Ws+2, C) f32 scratch holding the zero-padded mid activation.
    """
    _, Hs, Ws, C = x_ref.shape
    P = Hs * Ws

    x2d = x_ref[0].reshape(P, C)                                 # f32 residual

    # 1x1 conv + bias + ReLU
    h1 = jnp.dot(x2d.astype(jnp.bfloat16), w1_ref[...],
                 preferred_element_type=jnp.float32)
    h1 = jnp.maximum(h1 + b1_ref[...], 0.0)

    # Zero-padded copy of h1 (spatial halo of 1) in VMEM scratch.
    # Zero the whole scratch every step (cheap; safe under megacore sharding).
    pad_ref[...] = jnp.zeros_like(pad_ref)
    pad_ref[pl.ds(1, Hs), pl.ds(1, Ws), :] = h1.reshape(Hs, Ws, C)

    # 3x3 conv as 9 shifted matmuls accumulated in f32 (no im2col, no HBM).
    acc = jnp.zeros((P, C), jnp.float32)
    for t in range(9):
        di, dj = t // 3, t % 3
        win = pad_ref[pl.ds(di, Hs), pl.ds(dj, Ws), :].reshape(P, C)
        acc += jnp.dot(win.astype(jnp.bfloat16), w2_ref[t],
                       preferred_element_type=jnp.float32)
    h2 = jnp.maximum(acc + b2_ref[...], 0.0)

    # 1x1 conv + bias + residual + ReLU
    y = jnp.dot(h2.astype(jnp.bfloat16), w3_ref[...],
                preferred_element_type=jnp.float32)
    y = jnp.maximum(y + b3_ref[...] + x2d, 0.0)
    o_ref[0] = y.reshape(Hs, Ws, C).astype(o_ref.dtype)


def _head_pool_kernel(x_ref, w_ref, b_ref, enc_ref, pool_ref):
    """Fused head 1x1 conv + ReLU + global average pool (per image)."""
    x2d = x_ref[0]                                               # (P, C)
    y = jnp.dot(x2d.astype(jnp.bfloat16), w_ref[...],
                preferred_element_type=jnp.float32)
    y = jnp.maximum(y + b_ref[...], 0.0)
    enc_ref[0] = y.astype(enc_ref.dtype)
    pool_ref[0] = jnp.mean(y, axis=0, keepdims=True).astype(pool_ref.dtype)


# ---------------------------------------------------------------------------
# Pallas wrappers
# ---------------------------------------------------------------------------
def pallas_matmul_bias_relu(x2d, w_bf16, b):
    """relu(x2d @ w + b) with row tiling (cdiv grid, padded last tile)."""
    M, K = x2d.shape
    N = w_bf16.shape[1]
    TM = min(512, _round_up(M, 8))
    Mp = _round_up(M, TM)
    if Mp != M:
        x2d = jnp.pad(x2d, ((0, Mp - M), (0, 0)))
    b2 = b.reshape(1, N).astype(jnp.float32)

    out = pl.pallas_call(
        _matmul_bias_relu_kernel,
        out_shape=jax.ShapeDtypeStruct((Mp, N), jnp.float32),
        grid=(Mp // TM,),
        in_specs=[pl.BlockSpec((TM, K), lambda i: (i, 0)),
                  pl.BlockSpec((K, N), lambda i: (0, 0)),
                  pl.BlockSpec((1, N), lambda i: (0, 0))],
        out_specs=pl.BlockSpec((TM, N), lambda i: (i, 0)),
        compiler_params=pltpu.CompilerParams(
            dimension_semantics=("parallel",)),
        cost_estimate=pl.CostEstimate(
            flops=2 * Mp * K * N, transcendentals=0,
            bytes_accessed=Mp * K * 4 + K * N * 2 + N * 4 + Mp * N * 4),
    )(x2d, w_bf16, b2)
    return out[:M]


def pallas_bottleneck_block(x_bhwc, w1, b1, w2, b2, w3, b3):
    B, Hs, Ws, C = x_bhwc.shape
    flops = 2 * B * Hs * Ws * C * C * 11          # two 1x1 convs + 9 taps
    bytes_acc = 2 * B * Hs * Ws * C * 4 + 11 * C * C * 2 + 3 * C * 4
    return pl.pallas_call(
        _bottleneck_kernel,
        out_shape=jax.ShapeDtypeStruct((B, Hs, Ws, C), jnp.float32),
        grid=(B,),
        in_specs=[
            pl.BlockSpec((1, Hs, Ws, C), lambda b: (b, 0, 0, 0)),
            pl.BlockSpec((C, C), lambda b: (0, 0)),
            pl.BlockSpec((1, C), lambda b: (0, 0)),
            pl.BlockSpec((9, C, C), lambda b: (0, 0, 0)),
            pl.BlockSpec((1, C), lambda b: (0, 0)),
            pl.BlockSpec((C, C), lambda b: (0, 0)),
            pl.BlockSpec((1, C), lambda b: (0, 0)),
        ],
        out_specs=pl.BlockSpec((1, Hs, Ws, C), lambda b: (b, 0, 0, 0)),
        scratch_shapes=[pltpu.VMEM((Hs + 2, Ws + 2, C), jnp.float32)],
        compiler_params=pltpu.CompilerParams(
            dimension_semantics=("parallel",)),
        cost_estimate=pl.CostEstimate(
            flops=flops, transcendentals=0, bytes_accessed=bytes_acc),
    )(x_bhwc, w1, b1, w2, b2, w3, b3)


def pallas_head_with_pool(x_bpc, w, b):
    B, P, C = x_bpc.shape
    enc, pooled = pl.pallas_call(
        _head_pool_kernel,
        out_shape=(jax.ShapeDtypeStruct((B, P, C), jnp.float32),
                   jax.ShapeDtypeStruct((B, 1, C), jnp.float32)),
        grid=(B,),
        in_specs=[pl.BlockSpec((1, P, C), lambda b: (b, 0, 0)),
                  pl.BlockSpec((C, C), lambda b: (0, 0)),
                  pl.BlockSpec((1, C), lambda b: (0, 0))],
        out_specs=(pl.BlockSpec((1, P, C), lambda b: (b, 0, 0)),
                   pl.BlockSpec((1, 1, C), lambda b: (b, 0, 0))),
        compiler_params=pltpu.CompilerParams(
            dimension_semantics=("parallel",)),
        cost_estimate=pl.CostEstimate(
            flops=2 * B * P * C * C, transcendentals=0,
            bytes_accessed=2 * B * P * C * 4 + C * C * 2 + B * C * 4),
    )(x_bpc, w, b)
    return enc, pooled.reshape(B, C)


# ---------------------------------------------------------------------------
# Stem im2col (applied only to the raw 3-channel input -> negligible traffic)
# ---------------------------------------------------------------------------
def _extract_patches(x_nhwc, kh, kw, stride, pad):
    B, H, W, C = x_nhwc.shape
    xp = jnp.pad(x_nhwc, ((0, 0), (pad, pad), (pad, pad), (0, 0)))
    Ho = (H + 2 * pad - kh) // stride + 1
    Wo = (W + 2 * pad - kw) // stride + 1
    cols = []
    for i in range(kh):
        for j in range(kw):
            cols.append(xp[:, i:i + stride * Ho:stride,
                           j:j + stride * Wo:stride, :])
    return jnp.concatenate(cols, axis=-1), Ho, Wo


# ---------------------------------------------------------------------------
# Parameters: deterministic He-init, real-size weights + padded kernel weights
# ---------------------------------------------------------------------------
def init_encoder_params(key, c_in=3, c_stem=16, c_mid=8, feat=32):
    def conv_w(k, kh, kw, ci, co):
        fan_in = kh * kw * ci
        return (jax.random.normal(k, (kh, kw, ci, co), jnp.float32)
                * jnp.sqrt(2.0 / fan_in))

    keys = jax.random.split(key, 8)
    real = {
        "stem_w": conv_w(keys[0], 3, 3, c_in, c_stem),
        "stem_b": jnp.zeros((c_stem,), jnp.float32),
        "head_w": conv_w(keys[1], 1, 1, c_stem, feat),
        "head_b": jnp.zeros((feat,), jnp.float32),
    }
    ki = 2
    for blk in ("b1", "b2"):
        real[f"{blk}_w1"] = conv_w(keys[ki + 0], 1, 1, c_stem, c_mid)
        real[f"{blk}_b1"] = jnp.zeros((c_mid,), jnp.float32)
        real[f"{blk}_w2"] = conv_w(keys[ki + 1], 3, 3, c_mid, c_mid)
        real[f"{blk}_b2"] = jnp.zeros((c_mid,), jnp.float32)
        real[f"{blk}_w3"] = conv_w(keys[ki + 2], 1, 1, c_mid, c_stem)
        real[f"{blk}_b3"] = jnp.zeros((c_stem,), jnp.float32)
        ki += 3
    return real


def prepare_kernel_params(real):
    """Zero-pad every channel axis to LANES, cast MXU weights to bf16."""
    C = LANES

    def pad_1x1(w):                        # (1,1,ci,co) -> (C, C)
        w2 = w.reshape(w.shape[2], w.shape[3])
        return jnp.pad(w2, ((0, C - w2.shape[0]),
                            (0, C - w2.shape[1]))).astype(jnp.bfloat16)

    def pad_3x3(w):                        # (3,3,ci,co) -> (9, C, C)
        w2 = w.reshape(9, w.shape[2], w.shape[3])
        return jnp.pad(w2, ((0, 0), (0, C - w2.shape[1]),
                            (0, C - w2.shape[2]))).astype(jnp.bfloat16)

    def pad_b(b):                          # (co,) -> (1, C) f32
        return jnp.pad(b, (0, C - b.shape[0])).reshape(1, C).astype(jnp.float32)

    kp = {}
    sw = real["stem_w"].reshape(-1, real["stem_w"].shape[-1])   # (27, c_stem)
    Kp = _round_up(sw.shape[0], 8)
    kp["stem_w"] = jnp.pad(sw, ((0, Kp - sw.shape[0]),
                                (0, C - sw.shape[1]))).astype(jnp.bfloat16)
    kp["stem_b"] = pad_b(real["stem_b"])
    for blk in ("b1", "b2"):
        kp[f"{blk}_w1"] = pad_1x1(real[f"{blk}_w1"])
        kp[f"{blk}_b1"] = pad_b(real[f"{blk}_b1"])
        kp[f"{blk}_w2"] = pad_3x3(real[f"{blk}_w2"])
        kp[f"{blk}_b2"] = pad_b(real[f"{blk}_b2"])
        kp[f"{blk}_w3"] = pad_1x1(real[f"{blk}_w3"])
        kp[f"{blk}_b3"] = pad_b(real[f"{blk}_b3"])
    kp["head_w"] = pad_1x1(real["head_w"])
    kp["head_b"] = pad_b(real["head_b"])
    return kp


# ---------------------------------------------------------------------------
# Encoder.forward equivalent (Pallas path)
# ---------------------------------------------------------------------------
def encoder_forward(images_nchw, kp, feat=32):
    """(B, 3, H, W) f32 -> (enc_image (B, P, feat), global_features (B, feat))."""
    x = jnp.transpose(images_nchw, (0, 2, 3, 1)).astype(jnp.float32)  # NHWC
    B = x.shape[0]

    # --- stem: 3x3 stride-2 conv as lane-dense matmul (im2col on 3ch input) ---
    patches, Ho, Wo = _extract_patches(x, 3, 3, 2, 1)
    Kreal = patches.shape[-1]
    x2d = patches.reshape(B * Ho * Wo, Kreal)
    Kpad = kp["stem_w"].shape[0]
    if Kpad != Kreal:
        x2d = jnp.pad(x2d, ((0, 0), (0, Kpad - Kreal)))
    y2d = pallas_matmul_bias_relu(x2d, kp["stem_w"], kp["stem_b"])
    x = y2d.reshape(B, Ho, Wo, LANES)

    # --- fused bottleneck blocks (single pallas_call each) ---
    for blk in ("b1", "b2"):
        x = pallas_bottleneck_block(
            x, kp[f"{blk}_w1"], kp[f"{blk}_b1"],
            kp[f"{blk}_w2"], kp[f"{blk}_b2"],
            kp[f"{blk}_w3"], kp[f"{blk}_b3"])

    # --- fused head 1x1 conv + ReLU + global average pool ---
    P = Ho * Wo
    enc_full, pool_full = pallas_head_with_pool(
        x.reshape(B, P, LANES), kp["head_w"], kp["head_b"])

    enc_image = enc_full[:, :, :feat]          # (B, P, feat)
    global_features = pool_full[:, :feat]      # (B, feat)
    return enc_image, global_features


# ---------------------------------------------------------------------------
# Pure-JAX f32 reference (lax.conv) for validation
# ---------------------------------------------------------------------------
def _conv_ref(x, w, b, stride=1, pad=0, residual=None):
    y = jax.lax.conv_general_dilated(
        x, w, window_strides=(stride, stride),
        padding=[(pad, pad), (pad, pad)],
        dimension_numbers=("NHWC", "HWIO", "NHWC"))
    y = y + b
    if residual is not None:
        y = y + residual
    return jnp.maximum(y, 0.0)


def encoder_forward_ref(images_nchw, real):
    x = jnp.transpose(images_nchw, (0, 2, 3, 1)).astype(jnp.float32)
    x = _conv_ref(x, real["stem_w"], real["stem_b"], stride=2, pad=1)
    for blk in ("b1", "b2"):
        idn = x
        h = _conv_ref(x, real[f"{blk}_w1"], real[f"{blk}_b1"])
        h = _conv_ref(h, real[f"{blk}_w2"], real[f"{blk}_b2"], pad=1)
        x = _conv_ref(h, real[f"{blk}_w3"], real[f"{blk}_b3"], residual=idn)
    enc = _conv_ref(x, real["head_w"], real["head_b"])
    B, Hh, Ww, F = enc.shape
    enc_image = enc.reshape(B, Hh * Ww, F)
    return enc_image, jnp.mean(enc_image, axis=1)


if __name__ == "__main__":
    key = jax.random.PRNGKey(0)
    k_img, k_par = jax.random.split(key)

    B, Cc, H, W = 2, 3, 16, 16             # small stand-in for (B, 3, 224, 224)
    images = jax.random.normal(k_img, (B, Cc, H, W), jnp.float32)
    real_params = init_encoder_params(k_par)
    kernel_params = prepare_kernel_params(real_params)

    fwd = jax.jit(functools.partial(encoder_forward, feat=32))
    enc_image, global_features = fwd(images, kernel_params)
    jax.block_until_ready((enc_image, global_features))

    assert enc_image.shape == (B, 8 * 8, 32), enc_image.shape
    assert global_features.shape == (B, 32), global_features.shape

    # fused in-kernel pool must equal the pixel-mean of enc_image
    assert jnp.allclose(global_features, jnp.mean(enc_image, axis=1), atol=1e-4)

    # cross-check against an independent pure-JAX f32 conv reference
    # (bf16 MXU inputs in the Pallas path -> modest tolerance)
    ref_enc, ref_glob = encoder_forward_ref(images, real_params)
    assert jnp.allclose(enc_image, ref_enc, rtol=5e-2, atol=5e-2)
    assert jnp.allclose(global_features, ref_glob, rtol=5e-2, atol=5e-2)

    print("KERNEL_OK")
</pallas_src>

<mosaic_0001>
module attributes {stable_mosaic.version = 11 : i64} {
  func.func @_bottleneck_kernel(%arg0: i32, %arg1: memref<1x8x8x128xf32, #tpu.memory_space<vmem>>, %arg2: memref<128x128xbf16, #tpu.memory_space<vmem>>, %arg3: memref<1x128xf32, #tpu.memory_space<vmem>>, %arg4: memref<9x128x128xbf16, #tpu.memory_space<vmem>>, %arg5: memref<1x128xf32, #tpu.memory_space<vmem>>, %arg6: memref<128x128xbf16, #tpu.memory_space<vmem>>, %arg7: memref<1x128xf32, #tpu.memory_space<vmem>>, %arg8: memref<1x8x8x128xf32, #tpu.memory_space<vmem>>, %arg9: memref<10x10x128xf32, #tpu.memory_space<vmem>>) attributes {dimension_semantics = [#tpu.dimension_semantics<parallel>], iteration_bounds = array<i64: 2>, scalar_prefetch = 0 : i64, scratch_operands = 1 : i64, tpu.core_type = #tpu.core_type<tc>, window_params = [{transform_indices = @transform_0, window_bounds = array<i64: 1, 8, 8, 128>}, {pipeline_mode = #tpu.pipeline_mode<synchronous>, transform_indices = @transform_1, window_bounds = array<i64: 128, 128>}, {pipeline_mode = #tpu.pipeline_mode<synchronous>, transform_indices = @transform_2, window_bounds = array<i64: 1, 128>}, {pipeline_mode = #tpu.pipeline_mode<synchronous>, transform_indices = @transform_3, window_bounds = array<i64: 9, 128, 128>}, {pipeline_mode = #tpu.pipeline_mode<synchronous>, transform_indices = @transform_4, window_bounds = array<i64: 1, 128>}, {pipeline_mode = #tpu.pipeline_mode<synchronous>, transform_indices = @transform_5, window_bounds = array<i64: 128, 128>}, {pipeline_mode = #tpu.pipeline_mode<synchronous>, transform_indices = @transform_6, window_bounds = array<i64: 1, 128>}, {transform_indices = @transform_7, window_bounds = array<i64: 1, 8, 8, 128>}]} {
    %c0 = arith.constant 0 : index
    %c0_0 = arith.constant 0 : index
    %c0_1 = arith.constant 0 : index
    %c0_2 = arith.constant 0 : index
    %0 = vector.load %arg1[%c0, %c0_0, %c0_1, %c0_2] : memref<1x8x8x128xf32, #tpu.memory_space<vmem>>, vector<1x8x8x128xf32>
    %1 = vector.shape_cast %0 : vector<1x8x8x128xf32> to vector<8x8x128xf32>
    %2 = vector.shape_cast %1 : vector<8x8x128xf32> to vector<64x128xf32>
    %3 = arith.truncf %2 : vector<64x128xf32> to vector<64x128xbf16>
    %c0_3 = arith.constant 0 : index
    %c0_4 = arith.constant 0 : index
    %4 = vector.load %arg2[%c0_3, %c0_4] : memref<128x128xbf16, #tpu.memory_space<vmem>>, vector<128x128xbf16>
    %cst = arith.constant dense<0.000000e+00> : vector<64x128xf32>
    %5 = tpu.matmul %3, %4, %cst {dimension_numbers = #tpu.dot_dimension_numbers<[1], [0], [0], [1], [0, 0, 1, 1], [], []>} : vector<64x128xbf16>, vector<128x128xbf16>, vector<64x128xf32> -> vector<64x128xf32>
    %c0_5 = arith.constant 0 : index
    %c0_6 = arith.constant 0 : index
    %6 = vector.load %arg3[%c0_5, %c0_6] : memref<1x128xf32, #tpu.memory_space<vmem>>, vector<1x128xf32>
    %7 = vector.broadcast %6 : vector<1x128xf32> to vector<64x128xf32>
    %8 = arith.addf %5, %7 : vector<64x128xf32>
    %cst_7 = arith.constant 0.000000e+00 : f32
    %9 = vector.broadcast %cst_7 : f32 to vector<64x128xf32>
    %10 = arith.maximumf %8, %9 : vector<64x128xf32>
    %cst_8 = arith.constant 0.000000e+00 : f32
    %11 = vector.broadcast %cst_8 : f32 to vector<10x10x128xf32>
    %c0_9 = arith.constant 0 : index
    %c0_10 = arith.constant 0 : index
    %c0_11 = arith.constant 0 : index
    %12 = vector.load %arg9[%c0_9, %c0_10, %c0_11] : memref<10x10x128xf32, #tpu.memory_space<vmem>>, vector<10x10x128xf32>
    tpu.vector_store %arg9[%c0_9, %c0_10, %c0_11], %11 {strides = array<i32>} : memref<10x10x128xf32, #tpu.memory_space<vmem>>, vector<10x10x128xf32>,
    %13 = vector.shape_cast %10 : vector<64x128xf32> to vector<8x8x128xf32>
    %c1 = arith.constant 1 : index
    %c1_12 = arith.constant 1 : index
    %c0_13 = arith.constant 0 : index
    %14 = vector.load %arg9[%c1, %c1_12, %c0_13] : memref<10x10x128xf32, #tpu.memory_space<vmem>>, vector<8x8x128xf32>
    tpu.vector_store %arg9[%c1, %c1_12, %c0_13], %13 {strides = array<i32>} : memref<10x10x128xf32, #tpu.memory_space<vmem>>, vector<8x8x128xf32>,
    %cst_14 = arith.constant 0.000000e+00 : f32
    %15 = vector.broadcast %cst_14 : f32 to vector<64x128xf32>
    %c0_15 = arith.constant 0 : index
    %c0_16 = arith.constant 0 : index
    %c0_17 = arith.constant 0 : index
    %16 = vector.load %arg9[%c0_15, %c0_16, %c0_17] : memref<10x10x128xf32, #tpu.memory_space<vmem>>, vector<8x8x128xf32>
    %17 = vector.shape_cast %16 : vector<8x8x128xf32> to vector<64x128xf32>
    %18 = arith.truncf %17 : vector<64x128xf32> to vector<64x128xbf16>
    %c0_18 = arith.constant 0 : index
    %c0_19 = arith.constant 0 : index
    %c0_20 = arith.constant 0 : index
    %19 = vector.load %arg4[%c0_18, %c0_19, %c0_20] : memref<9x128x128xbf16, #tpu.memory_space<vmem>>, vector<1x128x128xbf16>
    %20 = vector.shape_cast %19 : vector<1x128x128xbf16> to vector<128x128xbf16>
    %cst_21 = arith.constant dense<0.000000e+00> : vector<64x128xf32>
    %21 = tpu.matmul %18, %20, %cst_21 {dimension_numbers = #tpu.dot_dimension_numbers<[1], [0], [0], [1], [0, 0, 1, 1], [], []>} : vector<64x128xbf16>, vector<128x128xbf16>, vector<64x128xf32> -> vector<64x128xf32>
    %22 = arith.addf %15, %21 : vector<64x128xf32>
    %c0_22 = arith.constant 0 : index
    %c1_23 = arith.constant 1 : index
    %c0_24 = arith.constant 0 : index
    %23 = vector.load %arg9[%c0_22, %c1_23, %c0_24] : memref<10x10x128xf32, #tpu.memory_space<vmem>>, vector<8x8x128xf32>
    %24 = vector.shape_cast %23 : vector<8x8x128xf32> to vector<64x128xf32>
    %25 = arith.truncf %24 : vector<64x128xf32> to vector<64x128xbf16>
    %c1_25 = arith.constant 1 : index
    %c0_26 = arith.constant 0 : index
    %c0_27 = arith.constant 0 : index
    %26 = vector.load %arg4[%c1_25, %c0_26, %c0_27] : memref<9x128x128xbf16, #tpu.memory_space<vmem>>, vector<1x128x128xbf16>
    %27 = vector.shape_cast %26 : vector<1x128x128xbf16> to vector<128x128xbf16>
    %cst_28 = arith.constant dense<0.000000e+00> : vector<64x128xf32>
    %28 = tpu.matmul %25, %27, %cst_28 {dimension_numbers = #tpu.dot_dimension_numbers<[1], [0], [0], [1], [0, 0, 1, 1], [], []>} : vector<64x128xbf16>, vector<128x128xbf16>, vector<64x128xf32> -> vector<64x128xf32>
    %29 = arith.addf %22, %28 : vector<64x128xf32>
    %c0_29 = arith.constant 0 : index
    %c2 = arith.constant 2 : index
    %c0_30 = arith.constant 0 : index
    %30 = vector.load %arg9[%c0_29, %c2, %c0_30] : memref<10x10x128xf32, #tpu.memory_space<vmem>>, vector<8x8x128xf32>
    %31 = vector.shape_cast %30 : vector<8x8x128xf32> to vector<64x128xf32>
    %32 = arith.truncf %31 : vector<64x128xf32> to vector<64x128xbf16>
    %c2_31 = arith.constant 2 : index
    %c0_32 = arith.constant 0 : index
    %c0_33 = arith.constant 0 : index
    %33 = vector.load %arg4[%c2_31, %c0_32, %c0_33] : memref<9x128x128xbf16, #tpu.memory_space<vmem>>, vector<1x128x128xbf16>
    %34 = vector.shape_cast %33 : vector<1x128x128xbf16> to vector<128x128xbf16>
    %cst_34 = arith.constant dense<0.000000e+00> : vector<64x128xf32>
    %35 = tpu.matmul %32, %34, %cst_34 {dimension_numbers = #tpu.dot_dimension_numbers<[1], [0], [0], [1], [0, 0, 1, 1], [], []>} : vector<64x128xbf16>, vector<128x128xbf16>, vector<64x128xf32> -> vector<64x128xf32>
    %36 = arith.addf %29, %35 : vector<64x128xf32>
    %c1_35 = arith.constant 1 : index
    %c0_36 = arith.constant 0 : index
    %c0_37 = arith.constant 0 : index
    %37 = vector.load %arg9[%c1_35, %c0_36, %c0_37] : memref<10x10x128xf32, #tpu.memory_space<vmem>>, vector<8x8x128xf32>
    %38 = vector.shape_cast %37 : vector<8x8x128xf32> to vector<64x128xf32>
    %39 = arith.truncf %38 : vector<64x128xf32> to vector<64x128xbf16>
    %c3 = arith.constant 3 : index
    %c0_38 = arith.constant 0 : index
    %c0_39 = arith.constant 0 : index
    %40 = vector.load %arg4[%c3, %c0_38, %c0_39] : memref<9x128x128xbf16, #tpu.memory_space<vmem>>, vector<1x128x128xbf16>
    %41 = vector.shape_cast %40 : vector<1x128x128xbf16> to vector<128x128xbf16>
    %cst_40 = arith.constant dense<0.000000e+00> : vector<64x128xf32>
    %42 = tpu.matmul %39, %41, %cst_40 {dimension_numbers = #tpu.dot_dimension_numbers<[1], [0], [0], [1], [0, 0, 1, 1], [], []>} : vector<64x128xbf16>, vector<128x128xbf16>, vector<64x128xf32> -> vector<64x128xf32>
    %43 = arith.addf %36, %42 : vector<64x128xf32>
    %c1_41 = arith.constant 1 : index
    %c1_42 = arith.constant 1 : index
    %c0_43 = arith.constant 0 : index
    %44 = vector.load %arg9[%c1_41, %c1_42, %c0_43] : memref<10x10x128xf32, #tpu.memory_space<vmem>>, vector<8x8x128xf32>
    %45 = vector.shape_cast %44 : vector<8x8x128xf32> to vector<64x128xf32>
    %46 = arith.truncf %45 : vector<64x128xf32> to vector<64x128xbf16>
    %c4 = arith.constant 4 : index
    %c0_44 = arith.constant 0 : index
    %c0_45 = arith.constant 0 : index
    %47 = vector.load %arg4[%c4, %c0_44, %c0_45] : memref<9x128x128xbf16, #tpu.memory_space<vmem>>, vector<1x128x128xbf16>
    %48 = vector.shape_cast %47 : vector<1x128x128xbf16> to vector<128x128xbf16>
    %cst_46 = arith.constant dense<0.000000e+00> : vector<64x128xf32>
    %49 = tpu.matmul %46, %48, %cst_46 {dimension_numbers = #tpu.dot_dimension_numbers<[1], [0], [0], [1], [0, 0, 1, 1], [], []>} : vector<64x128xbf16>, vector<128x128xbf16>, vector<64x128xf32> -> vector<64x128xf32>
    %50 = arith.addf %43, %49 : vector<64x128xf32>
    %c1_47 = arith.constant 1 : index
    %c2_48 = arith.constant 2 : index
    %c0_49 = arith.constant 0 : index
    %51 = vector.load %arg9[%c1_47, %c2_48, %c0_49] : memref<10x10x128xf32, #tpu.memory_space<vmem>>, vector<8x8x128xf32>
    %52 = vector.shape_cast %51 : vector<8x8x128xf32> to vector<64x128xf32>
    %53 = arith.truncf %52 : vector<64x128xf32> to vector<64x128xbf16>
    %c5 = arith.constant 5 : index
    %c0_50 = arith.constant 0 : index
    %c0_51 = arith.constant 0 : index
    %54 = vector.load %arg4[%c5, %c0_50, %c0_51] : memref<9x128x128xbf16, #tpu.memory_space<vmem>>, vector<1x128x128xbf16>
    %55 = vector.shape_cast %54 : vector<1x128x128xbf16> to vector<128x128xbf16>
    %cst_52 = arith.constant dense<0.000000e+00> : vector<64x128xf32>
    %56 = tpu.matmul %53, %55, %cst_52 {dimension_numbers = #tpu.dot_dimension_numbers<[1], [0], [0], [1], [0, 0, 1, 1], [], []>} : vector<64x128xbf16>, vector<128x128xbf16>, vector<64x128xf32> -> vector<64x128xf32>
    %57 = arith.addf %50, %56 : vector<64x128xf32>
    %c2_53 = arith.constant 2 : index
    %c0_54 = arith.constant 0 : index
    %c0_55 = arith.constant 0 : index
    %58 = vector.load %arg9[%c2_53, %c0_54, %c0_55] : memref<10x10x128xf32, #tpu.memory_space<vmem>>, vector<8x8x128xf32>
    %59 = vector.shape_cast %58 : vector<8x8x128xf32> to vector<64x128xf32>
    %60 = arith.truncf %59 : vector<64x128xf32> to vector<64x128xbf16>
    %c6 = arith.constant 6 : index
    %c0_56 = arith.constant 0 : index
    %c0_57 = arith.constant 0 : index
    %61 = vector.load %arg4[%c6, %c0_56, %c0_57] : memref<9x128x128xbf16, #tpu.memory_space<vmem>>, vector<1x128x128xbf16>
    %62 = vector.shape_cast %61 : vector<1x128x128xbf16> to vector<128x128xbf16>
    %cst_58 = arith.constant dense<0.000000e+00> : vector<64x128xf32>
    %63 = tpu.matmul %60, %62, %cst_58 {dimension_numbers = #tpu.dot_dimension_numbers<[1], [0], [0], [1], [0, 0, 1, 1], [], []>} : vector<64x128xbf16>, vector<128x128xbf16>, vector<64x128xf32> -> vector<64x128xf32>
    %64 = arith.addf %57, %63 : vector<64x128xf32>
    %c2_59 = arith.constant 2 : index
    %c1_60 = arith.constant 1 : index
    %c0_61 = arith.constant 0 : index
    %65 = vector.load %arg9[%c2_59, %c1_60, %c0_61] : memref<10x10x128xf32, #tpu.memory_space<vmem>>, vector<8x8x128xf32>
    %66 = vector.shape_cast %65 : vector<8x8x128xf32> to vector<64x128xf32>
    %67 = arith.truncf %66 : vector<64x128xf32> to vector<64x128xbf16>
    %c7 = arith.constant 7 : index
    %c0_62 = arith.constant 0 : index
    %c0_63 = arith.constant 0 : index
    %68 = vector.load %arg4[%c7, %c0_62, %c0_63] : memref<9x128x128xbf16, #tpu.memory_space<vmem>>, vector<1x128x128xbf16>
    %69 = vector.shape_cast %68 : vector<1x128x128xbf16> to vector<128x128xbf16>
    %cst_64 = arith.constant dense<0.000000e+00> : vector<64x128xf32>
    %70 = tpu.matmul %67, %69, %cst_64 {dimension_numbers = #tpu.dot_dimension_numbers<[1], [0], [0], [1], [0, 0, 1, 1], [], []>} : vector<64x128xbf16>, vector<128x128xbf16>, vector<64x128xf32> -> vector<64x128xf32>
    %71 = arith.addf %64, %70 : vector<64x128xf32>
    %c2_65 = arith.constant 2 : index
    %c2_66 = arith.constant 2 : index
    %c0_67 = arith.constant 0 : index
    %72 = vector.load %arg9[%c2_65, %c2_66, %c0_67] : memref<10x10x128xf32, #tpu.memory_space<vmem>>, vector<8x8x128xf32>
    %73 = vector.shape_cast %72 : vector<8x8x128xf32> to vector<64x128xf32>
    %74 = arith.truncf %73 : vector<64x128xf32> to vector<64x128xbf16>
    %c8 = arith.constant 8 : index
    %c0_68 = arith.constant 0 : index
    %c0_69 = arith.constant 0 : index
    %75 = vector.load %arg4[%c8, %c0_68, %c0_69] : memref<9x128x128xbf16, #tpu.memory_space<vmem>>, vector<1x128x128xbf16>
    %76 = vector.shape_cast %75 : vector<1x128x128xbf16> to vector<128x128xbf16>
    %cst_70 = arith.constant dense<0.000000e+00> : vector<64x128xf32>
    %77 = tpu.matmul %74, %76, %cst_70 {dimension_numbers = #tpu.dot_dimension_numbers<[1], [0], [0], [1], [0, 0, 1, 1], [], []>} : vector<64x128xbf16>, vector<128x128xbf16>, vector<64x128xf32> -> vector<64x128xf32>
    %78 = arith.addf %71, %77 : vector<64x128xf32>
    %c0_71 = arith.constant 0 : index
    %c0_72 = arith.constant 0 : index
    %79 = vector.load %arg5[%c0_71, %c0_72] : memref<1x128xf32, #tpu.memory_space<vmem>>, vector<1x128xf32>
    %80 = vector.broadcast %79 : vector<1x128xf32> to vector<64x128xf32>
    %81 = arith.addf %78, %80 : vector<64x128xf32>
    %cst_73 = arith.constant 0.000000e+00 : f32
    %82 = vector.broadcast %cst_73 : f32 to vector<64x128xf32>
    %83 = arith.maximumf %81, %82 : vector<64x128xf32>
    %84 = arith.truncf %83 : vector<64x128xf32> to vector<64x128xbf16>
    %c0_74 = arith.constant 0 : index
    %c0_75 = arith.constant 0 : index
    %85 = vector.load %arg6[%c0_74, %c0_75] : memref<128x128xbf16, #tpu.memory_space<vmem>>, vector<128x128xbf16>
    %cst_76 = arith.constant dense<0.000000e+00> : vector<64x128xf32>
    %86 = tpu.matmul %84, %85, %cst_76 {dimension_numbers = #tpu.dot_dimension_numbers<[1], [0], [0], [1], [0, 0, 1, 1], [], []>} : vector<64x128xbf16>, vector<128x128xbf16>, vector<64x128xf32> -> vector<64x128xf32>
    %c0_77 = arith.constant 0 : index
    %c0_78 = arith.constant 0 : index
    %87 = vector.load %arg7[%c0_77, %c0_78] : memref<1x128xf32, #tpu.memory_space<vmem>>, vector<1x128xf32>
    %88 = vector.broadcast %87 : vector<1x128xf32> to vector<64x128xf32>
    %89 = arith.addf %86, %88 : vector<64x128xf32>
    %90 = arith.addf %89, %2 : vector<64x128xf32>
    %cst_79 = arith.constant 0.000000e+00 : f32
    %91 = vector.broadcast %cst_79 : f32 to vector<64x128xf32>
    %92 = arith.maximumf %90, %91 : vector<64x128xf32>
    %93 = vector.shape_cast %92 : vector<64x128xf32> to vector<8x8x128xf32>
    %c0_80 = arith.constant 0 : index
    %c0_81 = arith.constant 0 : index
    %c0_82 = arith.constant 0 : index
    %c0_83 = arith.constant 0 : index
    %94 = vector.load %arg8[%c0_80, %c0_81, %c0_82, %c0_83] : memref<1x8x8x128xf32, #tpu.memory_space<vmem>>, vector<1x8x8x128xf32>
    %95 = vector.shape_cast %94 : vector<1x8x8x128xf32> to vector<8x8x128xf32>
    %96 = vector.shape_cast %93 : vector<8x8x128xf32> to vector<1x8x8x128xf32>
    tpu.vector_store %arg8[%c0_80, %c0_81, %c0_82, %c0_83], %96 {strides = array<i32>} : memref<1x8x8x128xf32, #tpu.memory_space<vmem>>, vector<1x8x8x128xf32>,
    return
  }
  func.func @transform_0(%arg0: i32) -> (i32, i32, i32, i32) {
    %c0_i32 = arith.constant 0 : i32
    %c0_i32_0 = arith.constant 0 : i32
    %c0_i32_1 = arith.constant 0 : i32
    %c0_i32_2 = arith.constant 0 : i32
    return %arg0, %c0_i32, %c0_i32_0, %c0_i32_1 : i32, i32, i32, i32
  }
  func.func @transform_1(%arg0: i32) -> (i32, i32) {
    %c0_i32 = arith.constant 0 : i32
    %c0_i32_0 = arith.constant 0 : i32
    %c0_i32_1 = arith.constant 0 : i32
    return %c0_i32, %c0_i32_0 : i32, i32
  }
  func.func @transform_2(%arg0: i32) -> (i32, i32) {
    %c0_i32 = arith.constant 0 : i32
    %c0_i32_0 = arith.constant 0 : i32
    %c0_i32_1 = arith.constant 0 : i32
    return %c0_i32, %c0_i32_0 : i32, i32
  }
  func.func @transform_3(%arg0: i32) -> (i32, i32, i32) {
    %c0_i32 = arith.constant 0 : i32
    %c0_i32_0 = arith.constant 0 : i32
    %c0_i32_1 = arith.constant 0 : i32
    %c0_i32_2 = arith.constant 0 : i32
    return %c0_i32, %c0_i32_0, %c0_i32_1 : i32, i32, i32
  }
  func.func @transform_4(%arg0: i32) -> (i32, i32) {
    %c0_i32 = arith.constant 0 : i32
    %c0_i32_0 = arith.constant 0 : i32
    %c0_i32_1 = arith.constant 0 : i32
    return %c0_i32, %c0_i32_0 : i32, i32
  }
  func.func @transform_5(%arg0: i32) -> (i32, i32) {
    %c0_i32 = arith.constant 0 : i32
    %c0_i32_0 = arith.constant 0 : i32
    %c0_i32_1 = arith.constant 0 : i32
    return %c0_i32, %c0_i32_0 : i32, i32
  }
  func.func @transform_6(%arg0: i32) -> (i32, i32) {
    %c0_i32 = arith.constant 0 : i32
    %c0_i32_0 = arith.constant 0 : i32
    %c0_i32_1 = arith.constant 0 : i32
    return %c0_i32, %c0_i32_0 : i32, i32
  }
  func.func @transform_7(%arg0: i32) -> (i32, i32, i32, i32) {
    %c0_i32 = arith.constant 0 : i32
    %c0_i32_0 = arith.constant 0 : i32
    %c0_i32_1 = arith.constant 0 : i32
    %c0_i32_2 = arith.constant 0 : i32
    return %arg0, %c0_i32, %c0_i32_0, %c0_i32_1 : i32, i32, i32, i32
  }
}

module attributes {stable_mosaic.version = 11 : i64} {
  func.func @_head_pool_kernel(%arg0: i32, %arg1: memref<1x64x128xf32, #tpu.memory_space<vmem>>, %arg2: memref<128x128xbf16, #tpu.memory_space<vmem>>, %arg3: memref<1x128xf32, #tpu.memory_space<vmem>>, %arg4: memref<1x64x128xf32, #tpu.memory_space<vmem>>, %arg5: memref<1x1x128xf32, #tpu.memory_space<vmem>>) attributes {dimension_semantics = [#tpu.dimension_semantics<parallel>], iteration_bounds = array<i64: 2>, scalar_prefetch = 0 : i64, scratch_operands = 0 : i64, tpu.core_type = #tpu.core_type<tc>, window_params = [{transform_indices = @transform_0, window_bounds = array<i64: 1, 64, 128>}, {pipeline_mode = #tpu.pipeline_mode<synchronous>, transform_indices = @transform_1, window_bounds = array<i64: 128, 128>}, {pipeline_mode = #tpu.pipeline_mode<synchronous>, transform_indices = @transform_2, window_bounds = array<i64: 1, 128>}, {transform_indices = @transform_3, window_bounds = array<i64: 1, 64, 128>}, {transform_indices = @transform_4, window_bounds = array<i64: 1, 1, 128>}]} {
    %c0 = arith.constant 0 : index
    %c0_0 = arith.constant 0 : index
    %c0_1 = arith.constant 0 : index
    %0 = vector.load %arg1[%c0, %c0_0, %c0_1] : memref<1x64x128xf32, #tpu.memory_space<vmem>>, vector<1x64x128xf32>
    %1 = vector.shape_cast %0 : vector<1x64x128xf32> to vector<64x128xf32>
    %2 = arith.truncf %1 : vector<64x128xf32> to vector<64x128xbf16>
    %c0_2 = arith.constant 0 : index
    %c0_3 = arith.constant 0 : index
    %3 = vector.load %arg2[%c0_2, %c0_3] : memref<128x128xbf16, #tpu.memory_space<vmem>>, vector<128x128xbf16>
    %cst = arith.constant dense<0.000000e+00> : vector<64x128xf32>
    %4 = tpu.matmul %2, %3, %cst {dimension_numbers = #tpu.dot_dimension_numbers<[1], [0], [0], [1], [0, 0, 1, 1], [], []>} : vector<64x128xbf16>, vector<128x128xbf16>, vector<64x128xf32> -> vector<64x128xf32>
    %c0_4 = arith.constant 0 : index
    %c0_5 = arith.constant 0 : index
    %5 = vector.load %arg3[%c0_4, %c0_5] : memref<1x128xf32, #tpu.memory_space<vmem>>, vector<1x128xf32>
    %6 = vector.broadcast %5 : vector<1x128xf32> to vector<64x128xf32>
    %7 = arith.addf %4, %6 : vector<64x128xf32>
    %cst_6 = arith.constant 0.000000e+00 : f32
    %8 = vector.broadcast %cst_6 : f32 to vector<64x128xf32>
    %9 = arith.maximumf %7, %8 : vector<64x128xf32>
    %c0_7 = arith.constant 0 : index
    %c0_8 = arith.constant 0 : index
    %c0_9 = arith.constant 0 : index
    %10 = vector.load %arg4[%c0_7, %c0_8, %c0_9] : memref<1x64x128xf32, #tpu.memory_space<vmem>>, vector<1x64x128xf32>
    %11 = vector.shape_cast %10 : vector<1x64x128xf32> to vector<64x128xf32>
    %12 = vector.shape_cast %9 : vector<64x128xf32> to vector<1x64x128xf32>
    tpu.vector_store %arg4[%c0_7, %c0_8, %c0_9], %12 {strides = array<i32>} : memref<1x64x128xf32, #tpu.memory_space<vmem>>, vector<1x64x128xf32>,
    %cst_10 = arith.constant dense<0.000000e+00> : vector<128xf32>
    %13 = vector.multi_reduction <add>, %9, %cst_10 [0] : vector<64x128xf32> to vector<128xf32>
    %14 = vector.shape_cast %13 : vector<128xf32> to vector<1x128xf32>
    %cst_11 = arith.constant 6.400000e+01 : f32
    %15 = vector.broadcast %cst_11 : f32 to vector<1x128xf32>
    %16 = arith.divf %14, %15 : vector<1x128xf32>
    %c0_12 = arith.constant 0 : index
    %c0_13 = arith.constant 0 : index
    %c0_14 = arith.constant 0 : index
    %17 = vector.load %arg5[%c0_12, %c0_13, %c0_14] : memref<1x1x128xf32, #tpu.memory_space<vmem>>, vector<1x1x128xf32>
    %18 = vector.shape_cast %17 : vector<1x1x128xf32> to vector<1x128xf32>
    %19 = vector.shape_cast %16 : vector<1x128xf32> to vector<1x1x128xf32>
    tpu.vector_store %arg5[%c0_12, %c0_13, %c0_14], %19 {strides = array<i32>} : memref<1x1x128xf32, #tpu.memory_space<vmem>>, vector<1x1x128xf32>,
    return
  }
  func.func @transform_0(%arg0: i32) -> (i32, i32, i32) {
    %c0_i32 = arith.constant 0 : i32
    %c0_i32_0 = arith.constant 0 : i32
    %c0_i32_1 = arith.constant 0 : i32
    return %arg0, %c0_i32, %c0_i32_0 : i32, i32, i32
  }
  func.func @transform_1(%arg0: i32) -> (i32, i32) {
    %c0_i32 = arith.constant 0 : i32
    %c0_i32_0 = arith.constant 0 : i32
    %c0_i32_1 = arith.constant 0 : i32
    return %c0_i32, %c0_i32_0 : i32, i32
  }
  func.func @transform_2(%arg0: i32) -> (i32, i32) {
    %c0_i32 = arith.constant 0 : i32
    %c0_i32_0 = arith.constant 0 : i32
    %c0_i32_1 = arith.constant 0 : i32
    return %c0_i32, %c0_i32_0 : i32, i32
  }
  func.func @transform_3(%arg0: i32) -> (i32, i32, i32) {
    %c0_i32 = arith.constant 0 : i32
    %c0_i32_0 = arith.constant 0 : i32
    %c0_i32_1 = arith.constant 0 : i32
    return %arg0, %c0_i32, %c0_i32_0 : i32, i32, i32
  }
  func.func @transform_4(%arg0: i32) -> (i32, i32, i32) {
    %c0_i32 = arith.constant 0 : i32
    %c0_i32_0 = arith.constant 0 : i32
    %c0_i32_1 = arith.constant 0 : i32
    return %arg0, %c0_i32, %c0_i32_0 : i32, i32, i32
  }
}

module attributes {stable_mosaic.version = 11 : i64} {
  func.func @_matmul_bias_relu_kernel(%arg0: i32, %arg1: memref<128x32xf32, #tpu.memory_space<vmem>>, %arg2: memref<32x128xbf16, #tpu.memory_space<vmem>>, %arg3: memref<1x128xf32, #tpu.memory_space<vmem>>, %arg4: memref<128x128xf32, #tpu.memory_space<vmem>>) attributes {dimension_semantics = [#tpu.dimension_semantics<parallel>], iteration_bounds = array<i64: 1>, scalar_prefetch = 0 : i64, scratch_operands = 0 : i64, tpu.core_type = #tpu.core_type<tc>, window_params = [{transform_indices = @transform_0, window_bounds = array<i64: 128, 32>}, {pipeline_mode = #tpu.pipeline_mode<synchronous>, transform_indices = @transform_1, window_bounds = array<i64: 32, 128>}, {pipeline_mode = #tpu.pipeline_mode<synchronous>, transform_indices = @transform_2, window_bounds = array<i64: 1, 128>}, {transform_indices = @transform_3, window_bounds = array<i64: 128, 128>}]} {
    %c0 = arith.constant 0 : index
    %c0_0 = arith.constant 0 : index
    %0 = vector.load %arg1[%c0, %c0_0] : memref<128x32xf32, #tpu.memory_space<vmem>>, vector<128x32xf32>
    %1 = arith.truncf %0 : vector<128x32xf32> to vector<128x32xbf16>
    %c0_1 = arith.constant 0 : index
    %c0_2 = arith.constant 0 : index
    %2 = vector.load %arg2[%c0_1, %c0_2] : memref<32x128xbf16, #tpu.memory_space<vmem>>, vector<32x128xbf16>
    %cst = arith.constant dense<0.000000e+00> : vector<128x128xf32>
    %3 = tpu.matmul %1, %2, %cst {dimension_numbers = #tpu.dot_dimension_numbers<[1], [0], [0], [1], [0, 0, 1, 1], [], []>} : vector<128x32xbf16>, vector<32x128xbf16>, vector<128x128xf32> -> vector<128x128xf32>
    %c0_3 = arith.constant 0 : index
    %c0_4 = arith.constant 0 : index
    %4 = vector.load %arg3[%c0_3, %c0_4] : memref<1x128xf32, #tpu.memory_space<vmem>>, vector<1x128xf32>
    %5 = vector.broadcast %4 : vector<1x128xf32> to vector<128x128xf32>
    %6 = arith.addf %3, %5 : vector<128x128xf32>
    %cst_5 = arith.constant 0.000000e+00 : f32
    %7 = vector.broadcast %cst_5 : f32 to vector<128x128xf32>
    %8 = arith.maximumf %6, %7 : vector<128x128xf32>
    %c0_6 = arith.constant 0 : index
    %c0_7 = arith.constant 0 : index
    %9 = vector.load %arg4[%c0_6, %c0_7] : memref<128x128xf32, #tpu.memory_space<vmem>>, vector<128x128xf32>
    tpu.vector_store %arg4[%c0_6, %c0_7], %8 {strides = array<i32>} : memref<128x128xf32, #tpu.memory_space<vmem>>, vector<128x128xf32>,
    return
  }
  func.func @transform_0(%arg0: i32) -> (i32, i32) {
    %c0_i32 = arith.constant 0 : i32
    %c0_i32_0 = arith.constant 0 : i32
    return %arg0, %c0_i32 : i32, i32
  }
  func.func @transform_1(%arg0: i32) -> (i32, i32) {
    %c0_i32 = arith.constant 0 : i32
    %c0_i32_0 = arith.constant 0 : i32
    %c0_i32_1 = arith.constant 0 : i32
    return %c0_i32, %c0_i32_0 : i32, i32
  }
  func.func @transform_2(%arg0: i32) -> (i32, i32) {
    %c0_i32 = arith.constant 0 : i32
    %c0_i32_0 = arith.constant 0 : i32
    %c0_i32_1 = arith.constant 0 : i32
    return %c0_i32, %c0_i32_0 : i32, i32
  }
  func.func @transform_3(%arg0: i32) -> (i32, i32) {
    %c0_i32 = arith.constant 0 : i32
    %c0_i32_0 = arith.constant 0 : i32
    return %arg0, %c0_i32 : i32, i32
  }
}

</mosaic_0001>

<llo_original>
// kernel: encoder_forward.7
$region0: #{encoder_forward.7}
  #allocation0 [shape = 'u32[]', space=smem, size = 0x4, offset = 0x4, fixed_abs, tag = 'smem constant byte address 0x4 - core index']
  #allocation1 [shape = 'u32[144,128]{1,0:T(1,128)}', space=vmem, size = 0x12000, scoped, tag = 'internal scratch']
  %s0 = inlined_call_operand.vmem [shape: f32[2,64,128], index: 0, kind: input, shape index: {}]
  %s1 = inlined_call_operand.vmem [shape: bf16[128,128], index: 1, kind: input, shape index: {}]
  %s2 = inlined_call_operand.vmem [shape: f32[1,128], index: 2, kind: input, shape index: {}]
  %s3 = inlined_call_operand.vmem [shape: f32[2,64,128], index: 3, kind: output, shape index: {0}]
  %s4 = inlined_call_operand.hbm [shape: f32[2,1,128], index: 4, kind: output, shape index: {1}]
  %5 = xla_tuple %s3, %s4
  %s6 = sld [smem:[#allocation0]]
  $region53: #{encoder_forward.7} parent=0
    _
  %s8 = ssub.s32 1, %s6
  %s9 = scalar_select 0, %s8, %s6
  $region1: #{encoder_forward.7} parent=0
    #allocation2 [shape = 'u8[1024]{0}', space=vmem, size = 0x400, scoped, tag = 'output window, operand 1']
    #allocation3 [shape = 's32[2]{0}', space=sflag, size = 0x8, scoped, tag = 'scoped memory for encoder_forward.7']
    %10 = vsyncpa [#allocation3], 0
    %s11 = scalar_lea.sflag [#allocation3], 1
    %12 = vsyncpa %s11, 0
    loop: start=0, step=1, limit=4
    $region2: #{encoder_forward.7} parent=1 // loop_pre_header
      _
    $region3: #{encoder_forward.7} parent=1 // loop_header
      %s14 = sphi 0, %s18
      %p15 = scmp.ge.s32.totalorder %s14, 4
      %s24 = sphi 0, %s26
      %s27 = sphi 0, %s24
      %s28 = sphi 0, %s27
      %s44 = sphi 0, %s28
      %s48 = sphi 0, %s48
      %s50 = sphi 0, %s48
      %s51 = sphi 0, %s50
      %s65 = sphi 0, %s51
      %s69 = sphi 0, %s69
      %s71 = sphi 0, %s69
      %s72 = sphi 0, %s71
      %s86 = sphi 0, %s72
      %s92 = sphi 0, %s94
      %s95 = sphi 0, %s92
      %s96 = sphi 0, %s95
      %s112 = sphi 0, %s96
      %s118 = sphi 0, %s120
      %s121 = sphi 0, %s118
      %s122 = sphi 0, %s121
      %s138 = sphi 0, %s122
    $region4: #{encoder_forward.7} parent=1 // loop_header_branch
      %17 = sbr.rel (%p15) target = $region8
    $region5: #{encoder_forward.7} parent=1 // loop_body
      %s19 = ssub.s32 %s14, 1
      %s20 = ssub.s32 %s14, 2
      %s21 = sadd.s32 %s14, 1
      %s22 = ssub.s32 %s14, %s21
      %p23 = scmp.eq.s32.totalorder %s22, 0
      %s25 = sadd.s32 %s24, 1
      %s26 = scalar_select %p23, %s24, %s25
      %p29 = pneg %p23
      %p30 = scmp.eq.s32.totalorder %s14, 1
      %p31 = por %p29, %p30
      %p32 = scmp.ne.s32.totalorder %s24, %s27
      %p33 = scmp.eq.s32.totalorder %s14, 0
      %p34 = por %p32, %p33
      %p35 = scmp.ne.s32.totalorder %s24, %s27
      %p36 = scmp.eq.s32.totalorder %s19, 1
      %p37 = por %p35, %p36
      %p38 = scmp.ne.s32.totalorder %s27, %s28
      %p39 = scmp.eq.s32.totalorder %s19, 0
      %p40 = por %p38, %p39
      %p41 = scmp.ne.s32.totalorder %s27, %s28
      %p42 = scmp.eq.s32.totalorder %s20, 1
      %p43 = por %p41, %p42
      %p45 = scmp.ne.s32.totalorder %s28, %s44
      %p46 = scmp.eq.s32.totalorder %s20, 0
      %p47 = por %p45, %p46
      %s49 = sadd.s32 %s48, 1
      %p52 = scmp.eq.s32.totalorder %s14, 1
      %p53 = scmp.ne.s32.totalorder %s48, %s50
      %p54 = scmp.eq.s32.totalorder %s14, 0
      %p55 = por %p53, %p54
      %p56 = scmp.ne.s32.totalorder %s48, %s50
      %p57 = scmp.eq.s32.totalorder %s19, 1
      %p58 = por %p56, %p57
      %p59 = scmp.ne.s32.totalorder %s50, %s51
      %p60 = scmp.eq.s32.totalorder %s19, 0
      %p61 = por %p59, %p60
      %p62 = scmp.ne.s32.totalorder %s50, %s51
      %p63 = scmp.eq.s32.totalorder %s20, 1
      %p64 = por %p62, %p63
      %p66 = scmp.ne.s32.totalorder %s51, %s65
      %p67 = scmp.eq.s32.totalorder %s20, 0
      %p68 = por %p66, %p67
      %s70 = sadd.s32 %s69, 1
      %p73 = scmp.eq.s32.totalorder %s14, 1
      %p74 = scmp.ne.s32.totalorder %s69, %s71
      %p75 = scmp.eq.s32.totalorder %s14, 0
      %p76 = por %p74, %p75
      %p77 = scmp.ne.s32.totalorder %s69, %s71
      %p78 = scmp.eq.s32.totalorder %s19, 1
      %p79 = por %p77, %p78
      %p80 = scmp.ne.s32.totalorder %s71, %s72
      %p81 = scmp.eq.s32.totalorder %s19, 0
      %p82 = por %p80, %p81
      %p83 = scmp.ne.s32.totalorder %s71, %s72
      %p84 = scmp.eq.s32.totalorder %s20, 1
      %p85 = por %p83, %p84
      %p87 = scmp.ne.s32.totalorder %s72, %s86
      %p88 = scmp.eq.s32.totalorder %s20, 0
      %p89 = por %p87, %p88
      %s90 = ssub.s32 %s14, %s21
      %p91 = scmp.eq.s32.totalorder %s90, 0
      %s93 = sadd.s32 %s92, 1
      %s94 = scalar_select %p91, %s92, %s93
      %p97 = pneg %p91
      %p98 = scmp.eq.s32.totalorder %s14, 1
      %p99 = por %p97, %p98
      %p100 = scmp.ne.s32.totalorder %s92, %s95
      %p101 = scmp.eq.s32.totalorder %s14, 0
      %p102 = por %p100, %p101
      %p103 = scmp.ne.s32.totalorder %s92, %s95
      %p104 = scmp.eq.s32.totalorder %s19, 1
      %p105 = por %p103, %p104
      %p106 = scmp.ne.s32.totalorder %s95, %s96
      %p107 = scmp.eq.s32.totalorder %s19, 0
      %p108 = por %p106, %p107
      %p109 = scmp.ne.s32.totalorder %s95, %s96
      %p110 = scmp.eq.s32.totalorder %s20, 1
      %p111 = por %p109, %p110
      %p113 = scmp.ne.s32.totalorder %s96, %s112
      %p114 = scmp.eq.s32.totalorder %s20, 0
      %p115 = por %p113, %p114
      %s116 = ssub.s32 %s14, %s21
      %p117 = scmp.eq.s32.totalorder %s116, 0
      %s119 = sadd.s32 %s118, 1
      %s120 = scalar_select %p117, %s118, %s119
      %p123 = pneg %p117
      %p124 = scmp.eq.s32.totalorder %s14, 1
      %p125 = por %p123, %p124
      %p126 = scmp.ne.s32.totalorder %s118, %s121
      %p127 = scmp.eq.s32.totalorder %s14, 0
      %p128 = por %p126, %p127
      %p129 = scmp.ne.s32.totalorder %s118, %s121
      %p130 = scmp.eq.s32.totalorder %s19, 1
      %p131 = por %p129, %p130
      %p132 = scmp.ne.s32.totalorder %s121, %s122
      %p133 = scmp.eq.s32.totalorder %s19, 0
      %p134 = por %p132, %p133
      %p135 = scmp.ne.s32.totalorder %s121, %s122
      %p136 = scmp.eq.s32.totalorder %s20, 1
      %p137 = por %p135, %p136
      %p139 = scmp.ne.s32.totalorder %s122, %s138
      %p140 = scmp.eq.s32.totalorder %s20, 0
      %p141 = por %p139, %p140
      %p142 = scmp.le.s32.totalorder 1, %s14
      %p143 = scmp.lt.s32.totalorder %s14, 3
      %p144 = pnand %p142, %p143
      %p145 = pneg %p144
      // Predicated region
      $region9: #{encoder_forward.7} parent=5 // pred_check
        _
      $region10: #{encoder_forward.7} parent=5 // pred_check_branch
        %147 = sbr.rel (%p144) target = $region12
      $region11: #{encoder_forward.7} parent=5 // pred_region
        %s148 = ssub.s32 %s14, 1
        // Predicated region
        $region13: #{encoder_forward.7} parent=11 // pred_check
          %p149 = pneg %p61
        $region14: #{encoder_forward.7} parent=11 // pred_check_branch
          %151 = sbr.rel (%p149) target = $region16
        $region15: #{encoder_forward.7} parent=11 // pred_region
          _
        $region16: #{encoder_forward.7} parent=11 // pred_fallthru
          _
        // Predicated region
        $region17: #{encoder_forward.7} parent=11 // pred_check
          %p152 = pneg %p82
        $region18: #{encoder_forward.7} parent=11 // pred_check_branch
          %154 = sbr.rel (%p152) target = $region20
        $region19: #{encoder_forward.7} parent=11 // pred_region
          _
        $region20: #{encoder_forward.7} parent=11 // pred_fallthru
          _
      $region12: #{encoder_forward.7} parent=5 // pred_fallthru
        _
      %p155 = scmp.lt.s32.totalorder %s14, 2
      // Predicated region
      $region21: #{encoder_forward.7} parent=5 // pred_check
        %p156 = pneg %p155
      $region22: #{encoder_forward.7} parent=5 // pred_check_branch
        %158 = sbr.rel (%p156) target = $region24
      $region23: #{encoder_forward.7} parent=5 // pred_region
        // Predicated region
        $region25: #{encoder_forward.7} parent=23 // pred_check
          %p159 = pneg %p34
        $region26: #{encoder_forward.7} parent=23 // pred_check_branch
          %161 = sbr.rel (%p159) target = $region28
        $region27: #{encoder_forward.7} parent=23 // pred_region
          %p162 = scmp.lt.s32.totalorder %s14, 1
          %s163 = scalar_select %p162, %s14, 1
          %s164 = smul.addr %s163, 8
          %s165 = smul.addr %s164, 8
          %s166 = scalar_lea.vmem %s0, %s165
        $region28: #{encoder_forward.7} parent=23 // pred_fallthru
          _
      $region24: #{encoder_forward.7} parent=5 // pred_fallthru
        _
      %p167 = scmp.le.s32.totalorder 1, %s14
      %p168 = scmp.lt.s32.totalorder %s14, 3
      %p169 = pnand %p167, %p168
      %p170 = pneg %p169
      // Predicated region
      $region29: #{encoder_forward.7} parent=5 // pred_check
        _
      $region30: #{encoder_forward.7} parent=5 // pred_check_branch
        %172 = sbr.rel (%p169) target = $region32
      $region31: #{encoder_forward.7} parent=5 // pred_region
        %s173 = ssub.s32 %s14, 1
        %p174 = scmp.lt.s32.totalorder %s19, 1
        %s175 = scalar_select %p174, %s19, 1
        %s176 = smul.addr %s175, 8
        %s177 = smul.addr %s176, 8
        %s178 = scalar_lea.vmem %s0, %s177
        %p179 = pneg %p40
        %p180 = pneg %p37
        %p181 = pneg %p61
        %p182 = pneg %p58
        %p183 = pneg %p82
        %p184 = pneg %p79
        %p185 = pneg %p108
        %p186 = pneg %p105
        %p187 = scmp.lt.s32.totalorder %s19, 1
        %s188 = scalar_select %p187, %s19, 1
        %s189 = smul.addr %s188, 8
        %s190 = smul.addr %s189, 8
        %s191 = scalar_lea.vmem %s3, %s190
        %p192 = pneg %p134
        %p193 = pneg %p131
        %s194 = sand.u32 %s121, 1
        %s195 = scalar_lea.sflag [#allocation3], %s194
        %s196 = sand.u32 %s121, 1
        %s197 = scalar_lea.vmem [#allocation2], %s196
        %p198 = scmp.lt.s32.totalorder %s19, 1
        %s199 = scalar_select %p198, %s19, 1
        %s200 = smul.addr %s199, 8
        %s201 = smul.addr %s200, 8
        %s202 = scalar_lea.vmem %s0, %s201
        %p203 = scmp.lt.s32.totalorder %s19, 1
        %s204 = scalar_select %p203, %s19, 1
        %s205 = smul.addr %s204, 8
        %s206 = smul.addr %s205, 8
        %s207 = scalar_lea.vmem %s3, %s206
        %v209 = vld [vmem:[%s202] sm:$0xff]
        %v210 = vld [vmem:[%s202 + $0x8] sm:$0xff]
        %v211 = vld [vmem:[%s202 + $0x10] sm:$0xff]
        %v212 = vld [vmem:[%s202 + $0x18] sm:$0xff]
        %v213 = vld [vmem:[%s202 + $0x20] sm:$0xff]
        %v214 = vld [vmem:[%s202 + $0x28] sm:$0xff]
        %v215 = vld [vmem:[%s202 + $0x30] sm:$0xff]
        %v216 = vld [vmem:[%s202 + $0x38] sm:$0xff]
        %v217 = vpack.c.bf16 %v210, %v209
        %v218 = vpack.c.bf16 %v212, %v211
        %v219 = vpack.c.bf16 %v214, %v213
        %v220 = vpack.c.bf16 %v216, %v215
        %v221 = vld [vmem:[%s1] sm:$0xf]
        %v222 = vld [vmem:[%s1 + $0x4] sm:$0xf]
        %v223 = vld [vmem:[%s1 + $0x8] sm:$0xf]
        %v224 = vld [vmem:[%s1 + $0xc] sm:$0xf]
        %v225 = vld [vmem:[%s1 + $0x10] sm:$0xf]
        %v226 = vld [vmem:[%s1 + $0x14] sm:$0xf]
        %v227 = vld [vmem:[%s1 + $0x18] sm:$0xf]
        %v228 = vld [vmem:[%s1 + $0x1c] sm:$0xf]
        %v229 = vld [vmem:[%s1 + $0x20] sm:$0xf]
        %v230 = vld [vmem:[%s1 + $0x24] sm:$0xf]
        %v231 = vld [vmem:[%s1 + $0x28] sm:$0xf]
        %v232 = vld [vmem:[%s1 + $0x2c] sm:$0xf]
        %v233 = vld [vmem:[%s1 + $0x30] sm:$0xf]
        %v234 = vld [vmem:[%s1 + $0x34] sm:$0xf]
        %v235 = vld [vmem:[%s1 + $0x38] sm:$0xf]
        %v236 = vld [vmem:[%s1 + $0x3c] sm:$0xf]
        %v237 = vld [vmem:[%s2] sm:$0x1]
        %v239 = vlaneseq
        %v240 = vshrl.u32 %v239, 7
        %v241 = vsub.s32 0, %v240
        %v242 = vrot.slane %v237, %v241
        %v260 = vunpack.c.l.b16 %v221
        %v261 = vunpack.c.l.b16 %v222
        %v262 = vunpack.c.l.b16 %v223
        %v263 = vunpack.c.l.b16 %v224
        %v264 = vunpack.c.l.b16 %v225
        %v265 = vunpack.c.l.b16 %v226
        %v266 = vunpack.c.l.b16 %v227
        %v267 = vunpack.c.l.b16 %v228
        %v268 = vunpack.c.l.b16 %v229
        %v269 = vunpack.c.l.b16 %v230
        %v270 = vunpack.c.l.b16 %v231
        %v271 = vunpack.c.l.b16 %v232
        %v272 = vunpack.c.l.b16 %v233
        %v273 = vunpack.c.l.b16 %v234
        %v274 = vunpack.c.l.b16 %v235
        %v275 = vunpack.c.l.b16 %v236
        %v276 = vpack.c.b16 %v261, %v260
        %v277 = vpack.c.b16 %v263, %v262
        %v278 = vpack.c.b16 %v265, %v264
        %v279 = vpack.c.b16 %v267, %v266
        %v280 = vpack.c.b16 %v269, %v268
        %v281 = vpack.c.b16 %v271, %v270
        %v282 = vpack.c.b16 %v273, %v272
        %v283 = vpack.c.b16 %v275, %v274
        %292 = vmatprep.subr.bf16.mxu0 0
        %293 = vmatpush1.bf16.msra.mxu0 %v276
        %294 = vmatprep.subr.bf16.mxu0 0
        %295 = vmatpush1.bf16.msra.mxu0 %v277
        %296 = vmatprep.subr.bf16.mxu0 0
        %297 = vmatpush1.bf16.msra.mxu0 %v278
        %298 = vmatprep.subr.bf16.mxu0 0
        %299 = vmatpush1.bf16.msra.mxu0 %v279
        %300 = vmatprep.subr.bf16.mxu0 0
        %301 = vmatpush1.bf16.msra.mxu0 %v280
        %302 = vmatprep.subr.bf16.mxu0 0
        %303 = vmatpush1.bf16.msra.mxu0 %v281
        %304 = vmatprep.subr.bf16.mxu0 0
        %305 = vmatpush1.bf16.msra.mxu0 %v282
        %306 = vmatprep.subr.bf16.mxu0 0
        %307 = vmatpush1.bf16.msra.mxu0 %v283
        %308 = vmatprep.subr.bf16.mxu0 0
        %309 = vmatpush1.bf16.msra.mxu0 0
        %310 = vmatprep.subr.bf16.mxu0 0
        %311 = vmatpush1.bf16.msra.mxu0 0
        %312 = vmatprep.subr.bf16.mxu0 0
        %313 = vmatpush1.bf16.msra.mxu0 0
        %314 = vmatprep.subr.bf16.mxu0 0
        %315 = vmatpush1.bf16.msra.mxu0 0
        %316 = vmatprep.subr.bf16.mxu0 0
        %317 = vmatpush1.bf16.msra.mxu0 0
        %318 = vmatprep.subr.bf16.mxu0 0
        %319 = vmatpush1.bf16.msra.mxu0 0
        %320 = vmatprep.subr.bf16.mxu0 0
        %321 = vmatpush1.bf16.msra.mxu0 0
        %322 = vmatprep.subr.bf16.mxu0 0
        %323 = vmatpush1.bf16.msra.mxu0 0
        %324 = vmatprep.mubr.bf16.mxu0 0
        %325 = vmatmul.mubr.bf16.gmra.mrb[0].mxu0 %v217
        %v326 = vpop.f32.mrb[0].mxu0
        %v327 = vadd.f32 %v242, %v326
        %v328 = vpop.f32.mrb[0].mxu0
        %v329 = vpop.f32.mrb[0].mxu0
        %v330 = vadd.f32 %v242, %v329
        %v331 = vpop.f32.mrb[0].mxu0
        %332 = vmatprep.mubr.bf16.mxu0 0
        %333 = vmatmul.mubr.bf16.gmra.mrb[0].mxu0 %v218
        %v334 = vpop.f32.mrb[0].mxu0
        %v335 = vadd.f32 %v242, %v334
        %v336 = vpop.f32.mrb[0].mxu0
        %v337 = vpop.f32.mrb[0].mxu0
        %v338 = vadd.f32 %v242, %v337
        %v339 = vpop.f32.mrb[0].mxu0
        %340 = vmatprep.mubr.bf16.mxu0 0
        %341 = vmatmul.mubr.bf16.gmra.mrb[0].mxu0 %v219
        %v342 = vpop.f32.mrb[0].mxu0
        %v343 = vadd.f32 %v242, %v342
        %v344 = vpop.f32.mrb[0].mxu0
        %v345 = vpop.f32.mrb[0].mxu0
        %v346 = vadd.f32 %v242, %v345
        %v347 = vpop.f32.mrb[0].mxu0
        %348 = vmatprep.mubr.bf16.mxu0 0
        %349 = vmatmul.mubr.bf16.gmra.mrb[0].mxu0 %v220
        %v350 = vpop.f32.mrb[0].mxu0
        %v351 = vadd.f32 %v242, %v350
        %v352 = vpop.f32.mrb[0].mxu0
        %v353 = vpop.f32.mrb[0].mxu0
        %v354 = vadd.f32 %v242, %v353
        %v355 = vpop.f32.mrb[0].mxu0
        %356 = vdwg.mxu0
        %v357 = vmax.f32 %v327, 0.0
        %v358 = vmax.f32 %v330, 0.0
        %v359 = vmax.f32 %v335, 0.0
        %v360 = vmax.f32 %v338, 0.0
        %v361 = vmax.f32 %v343, 0.0
        %v362 = vmax.f32 %v346, 0.0
        %v363 = vmax.f32 %v351, 0.0
        %v364 = vmax.f32 %v354, 0.0
        %365 = vst [vmem:[%s207] sm:$0xff] %v357
        %366 = vst [vmem:[%s207 + $0x8] sm:$0xff] %v358
        %367 = vst [vmem:[%s207 + $0x10] sm:$0xff] %v359
        %368 = vst [vmem:[%s207 + $0x18] sm:$0xff] %v360
        %369 = vst [vmem:[%s207 + $0x20] sm:$0xff] %v361
        %370 = vst [vmem:[%s207 + $0x28] sm:$0xff] %v362
        %371 = vst [vmem:[%s207 + $0x30] sm:$0xff] %v363
        %372 = vst [vmem:[%s207 + $0x38] sm:$0xff] %v364
        %v373 = vadd.f32 %v357, %v358
        %v374 = vadd.f32 %v373, %v359
        %v375 = vadd.f32 %v374, %v360
        %v376 = vadd.f32 %v375, %v361
        %v377 = vadd.f32 %v376, %v362
        %v378 = vadd.f32 %v377, %v363
        %v379 = vadd.f32 %v378, %v364
        %v380 = vrot.slane %v379, 4
        %v381 = vadd.f32 %v379, %v380
        %v382 = vrot.slane %v381, 2
        %v383 = vadd.f32 %v381, %v382
        %v384 = vrot.slane %v383, 1
        %v385 = vadd.f32 %v383, %v384
        %v386 = vrcp.pop 64.0
        %v387 = vmul.f32 %v385, %v386
        %388 = vst [vmem:[%s197] sm:$0x1] %v387
        %p389 = scmp.lt.s32.totalorder %s19, 1
        %s390 = scalar_select %p389, %s19, 1
        %s391 = smul.addr %s390, 8
        %s392 = smul.addr %s391, 8
        %s393 = scalar_lea.vmem %s3, %s392
        %s394 = sand.u32 %s121, 1
        %s395 = scalar_lea.sflag [#allocation3], %s394
        %s396 = sand.u32 %s121, 1
        %s397 = scalar_lea.vmem [#allocation2], %s396
        // Predicated region
        $region33: #{encoder_forward.7} parent=31 // pred_check
          %p398 = pneg %p105
        $region34: #{encoder_forward.7} parent=31 // pred_check_branch
          %400 = sbr.rel (%p398) target = $region36
        $region35: #{encoder_forward.7} parent=31 // pred_region
          _
        $region36: #{encoder_forward.7} parent=31 // pred_fallthru
          _
        // Predicated region
        $region37: #{encoder_forward.7} parent=31 // pred_check
          %p401 = pneg %p131
        $region38: #{encoder_forward.7} parent=31 // pred_check_branch
          %403 = sbr.rel (%p401) target = $region40
        $region39: #{encoder_forward.7} parent=31 // pred_region
          %s405 = ssub.s32 16, 16
          %406 = vsyncadd %s395, %s405
          %s407 = smul.addr %s19, 16
          %s408 = scalar_lea.hbm %s4, %s407
          %s410 = sshll.u32 %s397, 4
          %s411 = int_to_ptr.vmem [resolvable:$true] %s410
          %413 = dma.vmem_to_hbm [thread:$0]  %s411, 16, %s408, %s395
        $region40: #{encoder_forward.7} parent=31 // pred_fallthru
          _
      $region32: #{encoder_forward.7} parent=5 // pred_fallthru
        _
      %p414 = scmp.le.s32.totalorder 2, %s14
      // Predicated region
      $region41: #{encoder_forward.7} parent=5 // pred_check
        %p415 = pneg %p414
      $region42: #{encoder_forward.7} parent=5 // pred_check_branch
        %417 = sbr.rel (%p415) target = $region44
      $region43: #{encoder_forward.7} parent=5 // pred_region
        %s418 = ssub.s32 %s14, 2
        // Predicated region
        $region45: #{encoder_forward.7} parent=43 // pred_check
          %p419 = pneg %p111
        $region46: #{encoder_forward.7} parent=43 // pred_check_branch
          %421 = sbr.rel (%p419) target = $region48
        $region47: #{encoder_forward.7} parent=43 // pred_region
          %p422 = scmp.lt.s32.totalorder %s20, 1
          %s423 = scalar_select %p422, %s20, 1
          %s424 = smul.addr %s423, 8
          %s425 = smul.addr %s424, 8
          %s426 = scalar_lea.vmem %s3, %s425
        $region48: #{encoder_forward.7} parent=43 // pred_fallthru
          _
        // Predicated region
        $region49: #{encoder_forward.7} parent=43 // pred_check
          %p427 = pneg %p137
        $region50: #{encoder_forward.7} parent=43 // pred_check_branch
          %429 = sbr.rel (%p427) target = $region52
        $region51: #{encoder_forward.7} parent=43 // pred_region
          %s430 = sand.u32 %s122, 1
          %s431 = scalar_lea.sflag [#allocation3], %s430
          %s432 = sand.u32 %s122, 1
          %s433 = scalar_lea.vmem [#allocation2], %s432
          %434 = dma.done %s431, 16
        $region52: #{encoder_forward.7} parent=43 // pred_fallthru
          _
      $region44: #{encoder_forward.7} parent=5 // pred_fallthru
        _
    $region6: #{encoder_forward.7} parent=1 // loop_footer
      %s18 = sadd.s32 1, %s14
    $region7: #{encoder_forward.7} parent=1 // loop_footer_branch
      %13 = sbr.rel target = $region3
    $region8: #{encoder_forward.7} parent=1 // loop_exit
      _
    %435 = vsyncpa [#allocation3], 1
    %s436 = scalar_lea.sflag [#allocation3], 1
    %437 = vsyncpa %s436, 1

// kernel: encoder_forward.4
$region0: #{encoder_forward.4}
  #allocation0 [shape = 'u32[]', space=smem, size = 0x4, offset = 0x4, fixed_abs, tag = 'smem constant byte address 0x4 - core index']
  #allocation1 [shape = 'u32[144,128]{1,0:T(1,128)}', space=vmem, size = 0x12000, scoped, tag = 'internal scratch']
  %s0 = inlined_call_operand.vmem [shape: f32[128,32], index: 0, kind: input, shape index: {}]
  %s1 = inlined_call_operand.vmem [shape: bf16[32,128], index: 1, kind: input, shape index: {}]
  %s2 = inlined_call_operand.vmem [shape: f32[1,128], index: 2, kind: input, shape index: {}]
  %s3 = inlined_call_operand.vmem [shape: f32[128,128], index: 3, kind: output, shape index: {}]
  %s4 = sld [smem:[#allocation0]]
  $region22: #{encoder_forward.4} parent=0
    _
  %s6 = ssub.s32 1, %s4
  %s7 = scalar_select 0, %s6, %s4
  // Predicated region
  $region2: #{encoder_forward.4} parent=0 // pred_check
    _
  $region3: #{encoder_forward.4} parent=0 // pred_check_branch
    %9 = sbr.rel (0) target = $region5
  $region4: #{encoder_forward.4} parent=0 // pred_region
    _
  $region5: #{encoder_forward.4} parent=0 // pred_fallthru
    _
  // Predicated region
  $region6: #{encoder_forward.4} parent=0 // pred_check
    _
  $region7: #{encoder_forward.4} parent=0 // pred_check_branch
    %11 = sbr.rel (0) target = $region9
  $region8: #{encoder_forward.4} parent=0 // pred_region
    _
  $region9: #{encoder_forward.4} parent=0 // pred_fallthru
    _
  // Predicated region
  $region10: #{encoder_forward.4} parent=0 // pred_check
    _
  $region11: #{encoder_forward.4} parent=0 // pred_check_branch
    %13 = sbr.rel (0) target = $region13
  $region12: #{encoder_forward.4} parent=0 // pred_region
    _
  $region13: #{encoder_forward.4} parent=0 // pred_fallthru
    _
  %v15 = vld [vmem:[%s0] sm:$0xff]
  %v16 = vld [vmem:[%s0 + $0x8] sm:$0xff]
  %v17 = vld [vmem:[%s0 + $0x10] sm:$0xff]
  %v18 = vld [vmem:[%s0 + $0x18] sm:$0xff]
  %v19 = vld [vmem:[%s0 + $0x20] sm:$0xff]
  %v20 = vld [vmem:[%s0 + $0x28] sm:$0xff]
  %v21 = vld [vmem:[%s0 + $0x30] sm:$0xff]
  %v22 = vld [vmem:[%s0 + $0x38] sm:$0xff]
  %v23 = vld [vmem:[%s0 + $0x40] sm:$0xff]
  %v24 = vld [vmem:[%s0 + $0x48] sm:$0xff]
  %v25 = vld [vmem:[%s0 + $0x50] sm:$0xff]
  %v26 = vld [vmem:[%s0 + $0x58] sm:$0xff]
  %v27 = vld [vmem:[%s0 + $0x60] sm:$0xff]
  %v28 = vld [vmem:[%s0 + $0x68] sm:$0xff]
  %v29 = vld [vmem:[%s0 + $0x70] sm:$0xff]
  %v30 = vld [vmem:[%s0 + $0x78] sm:$0xff]
  %v31 = vpack.c.bf16 %v16, %v15
  %v32 = vpack.c.bf16 %v18, %v17
  %v33 = vpack.c.bf16 %v20, %v19
  %v34 = vpack.c.bf16 %v22, %v21
  %v35 = vpack.c.bf16 %v24, %v23
  %v36 = vpack.c.bf16 %v26, %v25
  %v37 = vpack.c.bf16 %v28, %v27
  %v38 = vpack.c.bf16 %v30, %v29
  %v39 = vld [vmem:[%s1] sm:$0xf]
  %v40 = vld [vmem:[%s1 + $0x4] sm:$0xf]
  %v41 = vld [vmem:[%s1 + $0x8] sm:$0xf]
  %v42 = vld [vmem:[%s1 + $0xc] sm:$0xf]
  %v43 = vld [vmem:[%s2] sm:$0x1]
  %v45 = vlaneseq
  %v46 = vshrl.u32 %v45, 7
  %v47 = vsub.s32 0, %v46
  %v48 = vrot.slane %v43, %v47
  %v54 = vunpack.c.l.b16 %v39
  %v55 = vunpack.c.l.b16 %v40
  %v56 = vunpack.c.l.b16 %v41
  %v57 = vunpack.c.l.b16 %v42
  %v58 = vpack.c.b16 %v55, %v54
  %v59 = vpack.c.b16 %v57, %v56
  %vm62 = vcmask 261120
  %v64 = vsel %vm62, %v31, 0
  %v67 = vsel %vm62, %v32, 0
  %v70 = vsel %vm62, %v33, 0
  %v73 = vsel %vm62, %v34, 0
  %v76 = vsel %vm62, %v35, 0
  %v79 = vsel %vm62, %v36, 0
  %v82 = vsel %vm62, %v37, 0
  %v85 = vsel %vm62, %v38, 0
  %87 = vmatprep.subr.bf16.mxu0 0
  %88 = vmatpush1.bf16.msra.mxu0 %v58
  %89 = vmatprep.subr.bf16.mxu0 0
  %90 = vmatpush1.bf16.msra.mxu0 %v59
  %91 = vmatprep.subr.bf16.mxu0 0
  %92 = vmatpush1.bf16.msra.mxu0 0
  %93 = vmatprep.subr.bf16.mxu0 0
  %94 = vmatpush1.bf16.msra.mxu0 0
  %95 = vmatprep.subr.bf16.mxu0 0
  %96 = vmatpush1.bf16.msra.mxu0 0
  %97 = vmatprep.subr.bf16.mxu0 0
  %98 = vmatpush1.bf16.msra.mxu0 0
  %99 = vmatprep.subr.bf16.mxu0 0
  %100 = vmatpush1.bf16.msra.mxu0 0
  %101 = vmatprep.subr.bf16.mxu0 0
  %102 = vmatpush1.bf16.msra.mxu0 0
  %103 = vmatprep.subr.bf16.mxu0 0
  %104 = vmatpush1.bf16.msra.mxu0 0
  %105 = vmatprep.subr.bf16.mxu0 0
  %106 = vmatpush1.bf16.msra.mxu0 0
  %107 = vmatprep.subr.bf16.mxu0 0
  %108 = vmatpush1.bf16.msra.mxu0 0
  %109 = vmatprep.subr.bf16.mxu0 0
  %110 = vmatpush1.bf16.msra.mxu0 0
  %111 = vmatprep.subr.bf16.mxu0 0
  %112 = vmatpush1.bf16.msra.mxu0 0
  %113 = vmatprep.subr.bf16.mxu0 0
  %114 = vmatpush1.bf16.msra.mxu0 0
  %115 = vmatprep.subr.bf16.mxu0 0
  %116 = vmatpush1.bf16.msra.mxu0 0
  %117 = vmatprep.subr.bf16.mxu0 0
  %118 = vmatpush1.bf16.msra.mxu0 0
  %119 = vmatprep.mubr.bf16.mxu0 0
  %120 = vmatmul.mubr.bf16.gmra.mrb[0].mxu0 %v64
  %v121 = vpop.f32.mrb[0].mxu0
  %v122 = vadd.f32 %v48, %v121
  %v123 = vpop.f32.mrb[0].mxu0
  %v124 = vpop.f32.mrb[0].mxu0
  %v125 = vadd.f32 %v48, %v124
  %v126 = vpop.f32.mrb[0].mxu0
  %127 = vmatprep.mubr.bf16.mxu0 0
  %128 = vmatmul.mubr.bf16.gmra.mrb[0].mxu0 %v67
  %v129 = vpop.f32.mrb[0].mxu0
  %v130 = vadd.f32 %v48, %v129
  %v131 = vpop.f32.mrb[0].mxu0
  %v132 = vpop.f32.mrb[0].mxu0
  %v133 = vadd.f32 %v48, %v132
  %v134 = vpop.f32.mrb[0].mxu0
  %135 = vmatprep.mubr.bf16.mxu0 0
  %136 = vmatmul.mubr.bf16.gmra.mrb[0].mxu0 %v70
  %v137 = vpop.f32.mrb[0].mxu0
  %v138 = vadd.f32 %v48, %v137
  %v139 = vpop.f32.mrb[0].mxu0
  %v140 = vpop.f32.mrb[0].mxu0
  %v141 = vadd.f32 %v48, %v140
  %v142 = vpop.f32.mrb[0].mxu0
  %143 = vmatprep.mubr.bf16.mxu0 0
  %144 = vmatmul.mubr.bf16.gmra.mrb[0].mxu0 %v73
  %v145 = vpop.f32.mrb[0].mxu0
  %v146 = vadd.f32 %v48, %v145
  %v147 = vpop.f32.mrb[0].mxu0
  %v148 = vpop.f32.mrb[0].mxu0
  %v149 = vadd.f32 %v48, %v148
  %v150 = vpop.f32.mrb[0].mxu0
  %151 = vmatprep.mubr.bf16.mxu0 0
  %152 = vmatmul.mubr.bf16.gmra.mrb[0].mxu0 %v76
  %v153 = vpop.f32.mrb[0].mxu0
  %v154 = vadd.f32 %v48, %v153
  %v155 = vpop.f32.mrb[0].mxu0
  %v156 = vpop.f32.mrb[0].mxu0
  %v157 = vadd.f32 %v48, %v156
  %v158 = vpop.f32.mrb[0].mxu0
  %159 = vmatprep.mubr.bf16.mxu0 0
  %160 = vmatmul.mubr.bf16.gmra.mrb[0].mxu0 %v79
  %v161 = vpop.f32.mrb[0].mxu0
  %v162 = vadd.f32 %v48, %v161
  %v163 = vpop.f32.mrb[0].mxu0
  %v164 = vpop.f32.mrb[0].mxu0
  %v165 = vadd.f32 %v48, %v164
  %v166 = vpop.f32.mrb[0].mxu0
  %167 = vmatprep.mubr.bf16.mxu0 0
  %168 = vmatmul.mubr.bf16.gmra.mrb[0].mxu0 %v82
  %v169 = vpop.f32.mrb[0].mxu0
  %v170 = vadd.f32 %v48, %v169
  %v171 = vpop.f32.mrb[0].mxu0
  %v172 = vpop.f32.mrb[0].mxu0
  %v173 = vadd.f32 %v48, %v172
  %v174 = vpop.f32.mrb[0].mxu0
  %175 = vmatprep.mubr.bf16.mxu0 0
  %176 = vmatmul.mubr.bf16.gmra.mrb[0].mxu0 %v85
  %v177 = vpop.f32.mrb[0].mxu0
  %v178 = vadd.f32 %v48, %v177
  %v179 = vpop.f32.mrb[0].mxu0
  %v180 = vpop.f32.mrb[0].mxu0
  %v181 = vadd.f32 %v48, %v180
  %v182 = vpop.f32.mrb[0].mxu0
  %183 = vdwg.mxu0
  %v184 = vmax.f32 %v122, 0.0
  %v185 = vmax.f32 %v125, 0.0
  %v186 = vmax.f32 %v130, 0.0
  %v187 = vmax.f32 %v133, 0.0
  %v188 = vmax.f32 %v138, 0.0
  %v189 = vmax.f32 %v141, 0.0
  %v190 = vmax.f32 %v146, 0.0
  %v191 = vmax.f32 %v149, 0.0
  %v192 = vmax.f32 %v154, 0.0
  %v193 = vmax.f32 %v157, 0.0
  %v194 = vmax.f32 %v162, 0.0
  %v195 = vmax.f32 %v165, 0.0
  %v196 = vmax.f32 %v170, 0.0
  %v197 = vmax.f32 %v173, 0.0
  %v198 = vmax.f32 %v178, 0.0
  %v199 = vmax.f32 %v181, 0.0
  %200 = vst [vmem:[%s3] sm:$0xff] %v184
  %201 = vst [vmem:[%s3 + $0x8] sm:$0xff] %v185
  %202 = vst [vmem:[%s3 + $0x10] sm:$0xff] %v186
  %203 = vst [vmem:[%s3 + $0x18] sm:$0xff] %v187
  %204 = vst [vmem:[%s3 + $0x20] sm:$0xff] %v188
  %205 = vst [vmem:[%s3 + $0x28] sm:$0xff] %v189
  %206 = vst [vmem:[%s3 + $0x30] sm:$0xff] %v190
  %207 = vst [vmem:[%s3 + $0x38] sm:$0xff] %v191
  %208 = vst [vmem:[%s3 + $0x40] sm:$0xff] %v192
  %209 = vst [vmem:[%s3 + $0x48] sm:$0xff] %v193
  %210 = vst [vmem:[%s3 + $0x50] sm:$0xff] %v194
  %211 = vst [vmem:[%s3 + $0x58] sm:$0xff] %v195
  %212 = vst [vmem:[%s3 + $0x60] sm:$0xff] %v196
  %213 = vst [vmem:[%s3 + $0x68] sm:$0xff] %v197
  %214 = vst [vmem:[%s3 + $0x70] sm:$0xff] %v198
  %215 = vst [vmem:[%s3 + $0x78] sm:$0xff] %v199
  // Predicated region
  $region14: #{encoder_forward.4} parent=0 // pred_check
    _
  $region15: #{encoder_forward.4} parent=0 // pred_check_branch
    %217 = sbr.rel (0) target = $region17
  $region16: #{encoder_forward.4} parent=0 // pred_region
    _
  $region17: #{encoder_forward.4} parent=0 // pred_fallthru
    _
  // Predicated region
  $region18: #{encoder_forward.4} parent=0 // pred_check
    _
  $region19: #{encoder_forward.4} parent=0 // pred_check_branch
    %219 = sbr.rel (0) target = $region21
  $region20: #{encoder_forward.4} parent=0 // pred_region
    _
  $region21: #{encoder_forward.4} parent=0 // pred_fallthru
    _

// kernel: encoder_forward.5
$region0: #{encoder_forward.5}
  #allocation0 [shape = 'u32[]', space=smem, size = 0x4, offset = 0x4, fixed_abs, tag = 'smem constant byte address 0x4 - core index']
  #allocation1 [shape = 'u32[144,128]{1,0:T(1,128)}', space=vmem, size = 0x12000, scoped, tag = 'internal scratch']
  #allocation2 [shape = 'f32[10,10,128]{2,1,0:T(8,128)}', space=vmem, size = 0x14000, scoped, tag = 'scratch operand']
  %s0 = inlined_call_operand.vmem [shape: f32[2,8,8,128], index: 0, kind: input, shape index: {}]
  %s1 = inlined_call_operand.vmem [shape: bf16[128,128], index: 1, kind: input, shape index: {}]
  %s2 = inlined_call_operand.vmem [shape: f32[1,128], index: 2, kind: input, shape index: {}]
  %s3 = inlined_call_operand.vmem [shape: bf16[9,128,128], index: 3, kind: input, shape index: {}]
  %s4 = inlined_call_operand.vmem [shape: f32[1,128], index: 4, kind: input, shape index: {}]
  %s5 = inlined_call_operand.vmem [shape: bf16[128,128], index: 5, kind: input, shape index: {}]
  %s6 = inlined_call_operand.vmem [shape: f32[1,128], index: 6, kind: input, shape index: {}]
  %s7 = inlined_call_operand.vmem [shape: f32[2,8,8,128], index: 7, kind: output, shape index: {}]
  %s8 = sld [smem:[#allocation0]]
  $region61: #{encoder_forward.5} parent=0
    _
  %s10 = ssub.s32 1, %s8
  %s11 = scalar_select 0, %s10, %s8
  loop: start=0, step=1, limit=4
  $region2: #{encoder_forward.5} parent=0 // loop_pre_header
    _
  $region3: #{encoder_forward.5} parent=0 // loop_header
    %s13 = sphi 0, %s17
    %p14 = scmp.ge.s32.totalorder %s13, 4
    %s23 = sphi 0, %s25
    %s26 = sphi 0, %s23
    %s27 = sphi 0, %s26
    %s43 = sphi 0, %s27
    %s47 = sphi 0, %s47
    %s49 = sphi 0, %s47
    %s50 = sphi 0, %s49
    %s64 = sphi 0, %s50
    %s68 = sphi 0, %s68
    %s70 = sphi 0, %s68
    %s71 = sphi 0, %s70
    %s85 = sphi 0, %s71
    %s89 = sphi 0, %s89
    %s91 = sphi 0, %s89
    %s92 = sphi 0, %s91
    %s106 = sphi 0, %s92
    %s110 = sphi 0, %s110
    %s112 = sphi 0, %s110
    %s113 = sphi 0, %s112
    %s127 = sphi 0, %s113
    %s131 = sphi 0, %s131
    %s133 = sphi 0, %s131
    %s134 = sphi 0, %s133
    %s148 = sphi 0, %s134
    %s152 = sphi 0, %s152
    %s154 = sphi 0, %s152
    %s155 = sphi 0, %s154
    %s169 = sphi 0, %s155
    %s175 = sphi 0, %s177
    %s178 = sphi 0, %s175
    %s179 = sphi 0, %s178
    %s195 = sphi 0, %s179
  $region4: #{encoder_forward.5} parent=0 // loop_header_branch
    %16 = sbr.rel (%p14) target = $region8
  $region5: #{encoder_forward.5} parent=0 // loop_body
    %s18 = ssub.s32 %s13, 1
    %s19 = ssub.s32 %s13, 2
    %s20 = sadd.s32 %s13, 1
    %s21 = ssub.s32 %s13, %s20
    %p22 = scmp.eq.s32.totalorder %s21, 0
    %s24 = sadd.s32 %s23, 1
    %s25 = scalar_select %p22, %s23, %s24
    %p28 = pneg %p22
    %p29 = scmp.eq.s32.totalorder %s13, 1
    %p30 = por %p28, %p29
    %p31 = scmp.ne.s32.totalorder %s23, %s26
    %p32 = scmp.eq.s32.totalorder %s13, 0
    %p33 = por %p31, %p32
    %p34 = scmp.ne.s32.totalorder %s23, %s26
    %p35 = scmp.eq.s32.totalorder %s18, 1
    %p36 = por %p34, %p35
    %p37 = scmp.ne.s32.totalorder %s26, %s27
    %p38 = scmp.eq.s32.totalorder %s18, 0
    %p39 = por %p37, %p38
    %p40 = scmp.ne.s32.totalorder %s26, %s27
    %p41 = scmp.eq.s32.totalorder %s19, 1
    %p42 = por %p40, %p41
    %p44 = scmp.ne.s32.totalorder %s27, %s43
    %p45 = scmp.eq.s32.totalorder %s19, 0
    %p46 = por %p44, %p45
    %s48 = sadd.s32 %s47, 1
    %p51 = scmp.eq.s32.totalorder %s13, 1
    %p52 = scmp.ne.s32.totalorder %s47, %s49
    %p53 = scmp.eq.s32.totalorder %s13, 0
    %p54 = por %p52, %p53
    %p55 = scmp.ne.s32.totalorder %s47, %s49
    %p56 = scmp.eq.s32.totalorder %s18, 1
    %p57 = por %p55, %p56
    %p58 = scmp.ne.s32.totalorder %s49, %s50
    %p59 = scmp.eq.s32.totalorder %s18, 0
    %p60 = por %p58, %p59
    %p61 = scmp.ne.s32.totalorder %s49, %s50
    %p62 = scmp.eq.s32.totalorder %s19, 1
    %p63 = por %p61, %p62
    %p65 = scmp.ne.s32.totalorder %s50, %s64
    %p66 = scmp.eq.s32.totalorder %s19, 0
    %p67 = por %p65, %p66
    %s69 = sadd.s32 %s68, 1
    %p72 = scmp.eq.s32.totalorder %s13, 1
    %p73 = scmp.ne.s32.totalorder %s68, %s70
    %p74 = scmp.eq.s32.totalorder %s13, 0
    %p75 = por %p73, %p74
    %p76 = scmp.ne.s32.totalorder %s68, %s70
    %p77 = scmp.eq.s32.totalorder %s18, 1
    %p78 = por %p76, %p77
    %p79 = scmp.ne.s32.totalorder %s70, %s71
    %p80 = scmp.eq.s32.totalorder %s18, 0
    %p81 = por %p79, %p80
    %p82 = scmp.ne.s32.totalorder %s70, %s71
    %p83 = scmp.eq.s32.totalorder %s19, 1
    %p84 = por %p82, %p83
    %p86 = scmp.ne.s32.totalorder %s71, %s85
    %p87 = scmp.eq.s32.totalorder %s19, 0
    %p88 = por %p86, %p87
    %s90 = sadd.s32 %s89, 1
    %p93 = scmp.eq.s32.totalorder %s13, 1
    %p94 = scmp.ne.s32.totalorder %s89, %s91
    %p95 = scmp.eq.s32.totalorder %s13, 0
    %p96 = por %p94, %p95
    %p97 = scmp.ne.s32.totalorder %s89, %s91
    %p98 = scmp.eq.s32.totalorder %s18, 1
    %p99 = por %p97, %p98
    %p100 = scmp.ne.s32.totalorder %s91, %s92
    %p101 = scmp.eq.s32.totalorder %s18, 0
    %p102 = por %p100, %p101
    %p103 = scmp.ne.s32.totalorder %s91, %s92
    %p104 = scmp.eq.s32.totalorder %s19, 1
    %p105 = por %p103, %p104
    %p107 = scmp.ne.s32.totalorder %s92, %s106
    %p108 = scmp.eq.s32.totalorder %s19, 0
    %p109 = por %p107, %p108
    %s111 = sadd.s32 %s110, 1
    %p114 = scmp.eq.s32.totalorder %s13, 1
    %p115 = scmp.ne.s32.totalorder %s110, %s112
    %p116 = scmp.eq.s32.totalorder %s13, 0
    %p117 = por %p115, %p116
    %p118 = scmp.ne.s32.totalorder %s110, %s112
    %p119 = scmp.eq.s32.totalorder %s18, 1
    %p120 = por %p118, %p119
    %p121 = scmp.ne.s32.totalorder %s112, %s113
    %p122 = scmp.eq.s32.totalorder %s18, 0
    %p123 = por %p121, %p122
    %p124 = scmp.ne.s32.totalorder %s112, %s113
    %p125 = scmp.eq.s32.totalorder %s19, 1
    %p126 = por %p124, %p125
    %p128 = scmp.ne.s32.totalorder %s113, %s127
    %p129 = scmp.eq.s32.totalorder %s19, 0
    %p130 = por %p128, %p129
    %s132 = sadd.s32 %s131, 1
    %p135 = scmp.eq.s32.totalorder %s13, 1
    %p136 = scmp.ne.s32.totalorder %s131, %s133
    %p137 = scmp.eq.s32.totalorder %s13, 0
    %p138 = por %p136, %p137
    %p139 = scmp.ne.s32.totalorder %s131, %s133
    %p140 = scmp.eq.s32.totalorder %s18, 1
    %p141 = por %p139, %p140
    %p142 = scmp.ne.s32.totalorder %s133, %s134
    %p143 = scmp.eq.s32.totalorder %s18, 0
    %p144 = por %p142, %p143
    %p145 = scmp.ne.s32.totalorder %s133, %s134
    %p146 = scmp.eq.s32.totalorder %s19, 1
    %p147 = por %p145, %p146
    %p149 = scmp.ne.s32.totalorder %s134, %s148
    %p150 = scmp.eq.s32.totalorder %s19, 0
    %p151 = por %p149, %p150
    %s153 = sadd.s32 %s152, 1
    %p156 = scmp.eq.s32.totalorder %s13, 1
    %p157 = scmp.ne.s32.totalorder %s152, %s154
    %p158 = scmp.eq.s32.totalorder %s13, 0
    %p159 = por %p157, %p158
    %p160 = scmp.ne.s32.totalorder %s152, %s154
    %p161 = scmp.eq.s32.totalorder %s18, 1
    %p162 = por %p160, %p161
    %p163 = scmp.ne.s32.totalorder %s154, %s155
    %p164 = scmp.eq.s32.totalorder %s18, 0
    %p165 = por %p163, %p164
    %p166 = scmp.ne.s32.totalorder %s154, %s155
    %p167 = scmp.eq.s32.totalorder %s19, 1
    %p168 = por %p166, %p167
    %p170 = scmp.ne.s32.totalorder %s155, %s169
    %p171 = scmp.eq.s32.totalorder %s19, 0
    %p172 = por %p170, %p171
    %s173 = ssub.s32 %s13, %s20
    %p174 = scmp.eq.s32.totalorder %s173, 0
    %s176 = sadd.s32 %s175, 1
    %s177 = scalar_select %p174, %s175, %s176
    %p180 = pneg %p174
    %p181 = scmp.eq.s32.totalorder %s13, 1
    %p182 = por %p180, %p181
    %p183 = scmp.ne.s32.totalorder %s175, %s178
    %p184 = scmp.eq.s32.totalorder %s13, 0
    %p185 = por %p183, %p184
    %p186 = scmp.ne.s32.totalorder %s175, %s178
    %p187 = scmp.eq.s32.totalorder %s18, 1
    %p188 = por %p186, %p187
    %p189 = scmp.ne.s32.totalorder %s178, %s179
    %p190 = scmp.eq.s32.totalorder %s18, 0
    %p191 = por %p189, %p190
    %p192 = scmp.ne.s32.totalorder %s178, %s179
    %p193 = scmp.eq.s32.totalorder %s19, 1
    %p194 = por %p192, %p193
    %p196 = scmp.ne.s32.totalorder %s179, %s195
    %p197 = scmp.eq.s32.totalorder %s19, 0
    %p198 = por %p196, %p197
    %p199 = scmp.le.s32.totalorder 1, %s13
    %p200 = scmp.lt.s32.totalorder %s13, 3
    %p201 = pnand %p199, %p200
    %p202 = pneg %p201
    // Predicated region
    $region9: #{encoder_forward.5} parent=5 // pred_check
      _
    $region10: #{encoder_forward.5} parent=5 // pred_check_branch
      %204 = sbr.rel (%p201) target = $region12
    $region11: #{encoder_forward.5} parent=5 // pred_region
      %s205 = ssub.s32 %s13, 1
      // Predicated region
      $region13: #{encoder_forward.5} parent=11 // pred_check
        %p206 = pneg %p60
      $region14: #{encoder_forward.5} parent=11 // pred_check_branch
        %208 = sbr.rel (%p206) target = $region16
      $region15: #{encoder_forward.5} parent=11 // pred_region
        _
      $region16: #{encoder_forward.5} parent=11 // pred_fallthru
        _
      // Predicated region
      $region17: #{encoder_forward.5} parent=11 // pred_check
        %p209 = pneg %p81
      $region18: #{encoder_forward.5} parent=11 // pred_check_branch
        %211 = sbr.rel (%p209) target = $region20
      $region19: #{encoder_forward.5} parent=11 // pred_region
        _
      $region20: #{encoder_forward.5} parent=11 // pred_fallthru
        _
      // Predicated region
      $region21: #{encoder_forward.5} parent=11 // pred_check
        %p212 = pneg %p102
      $region22: #{encoder_forward.5} parent=11 // pred_check_branch
        %214 = sbr.rel (%p212) target = $region24
      $region23: #{encoder_forward.5} parent=11 // pred_region
        _
      $region24: #{encoder_forward.5} parent=11 // pred_fallthru
        _
      // Predicated region
      $region25: #{encoder_forward.5} parent=11 // pred_check
        %p215 = pneg %p123
      $region26: #{encoder_forward.5} parent=11 // pred_check_branch
        %217 = sbr.rel (%p215) target = $region28
      $region27: #{encoder_forward.5} parent=11 // pred_region
        _
      $region28: #{encoder_forward.5} parent=11 // pred_fallthru
        _
      // Predicated region
      $region29: #{encoder_forward.5} parent=11 // pred_check
        %p218 = pneg %p144
      $region30: #{encoder_forward.5} parent=11 // pred_check_branch
        %220 = sbr.rel (%p218) target = $region32
      $region31: #{encoder_forward.5} parent=11 // pred_region
        _
      $region32: #{encoder_forward.5} parent=11 // pred_fallthru
        _
      // Predicated region
      $region33: #{encoder_forward.5} parent=11 // pred_check
        %p221 = pneg %p165
      $region34: #{encoder_forward.5} parent=11 // pred_check_branch
        %223 = sbr.rel (%p221) target = $region36
      $region35: #{encoder_forward.5} parent=11 // pred_region
        _
      $region36: #{encoder_forward.5} parent=11 // pred_fallthru
        _
    $region12: #{encoder_forward.5} parent=5 // pred_fallthru
      _
    %p224 = scmp.lt.s32.totalorder %s13, 2
    // Predicated region
    $region37: #{encoder_forward.5} parent=5 // pred_check
      %p225 = pneg %p224
    $region38: #{encoder_forward.5} parent=5 // pred_check_branch
      %227 = sbr.rel (%p225) target = $region40
    $region39: #{encoder_forward.5} parent=5 // pred_region
      // Predicated region
      $region41: #{encoder_forward.5} parent=39 // pred_check
        %p228 = pneg %p33
      $region42: #{encoder_forward.5} parent=39 // pred_check_branch
        %230 = sbr.rel (%p228) target = $region44
      $region43: #{encoder_forward.5} parent=39 // pred_region
        %p231 = scmp.lt.s32.totalorder %s13, 1
        %s232 = scalar_select %p231, %s13, 1
        %s233 = smul.addr %s232, 8
        %s234 = smul.addr %s233, 8
        %s235 = scalar_lea.vmem %s0, %s234
      $region44: #{encoder_forward.5} parent=39 // pred_fallthru
        _
    $region40: #{encoder_forward.5} parent=5 // pred_fallthru
      _
    %p236 = scmp.le.s32.totalorder 1, %s13
    %p237 = scmp.lt.s32.totalorder %s13, 3
    %p238 = pnand %p236, %p237
    %p239 = pneg %p238
    // Predicated region
    $region45: #{encoder_forward.5} parent=5 // pred_check
      _
    $region46: #{encoder_forward.5} parent=5 // pred_check_branch
      %241 = sbr.rel (%p238) target = $region48
    $region47: #{encoder_forward.5} parent=5 // pred_region
      %s242 = ssub.s32 %s13, 1
      %p243 = scmp.lt.s32.totalorder %s18, 1
      %s244 = scalar_select %p243, %s18, 1
      %s245 = smul.addr %s244, 8
      %s246 = smul.addr %s245, 8
      %s247 = scalar_lea.vmem %s0, %s246
      %p248 = pneg %p39
      %p249 = pneg %p36
      %p250 = pneg %p60
      %p251 = pneg %p57
      %p252 = pneg %p81
      %p253 = pneg %p78
      %p254 = pneg %p102
      %p255 = pneg %p99
      %p256 = pneg %p123
      %p257 = pneg %p120
      %p258 = pneg %p144
      %p259 = pneg %p141
      %p260 = pneg %p165
      %p261 = pneg %p162
      %p262 = pneg %p191
      %p263 = pneg %p188
      %p264 = scmp.lt.s32.totalorder %s18, 1
      %s265 = scalar_select %p264, %s18, 1
      %s266 = smul.addr %s265, 8
      %s267 = smul.addr %s266, 8
      %s268 = scalar_lea.vmem %s7, %s267
      %p269 = scmp.lt.s32.totalorder %s18, 1
      %s270 = scalar_select %p269, %s18, 1
      %s271 = smul.addr %s270, 8
      %s272 = smul.addr %s271, 8
      %s273 = scalar_lea.vmem %s0, %s272
      %p274 = scmp.lt.s32.totalorder %s18, 1
      %s275 = scalar_select %p274, %s18, 1
      %s276 = smul.addr %s275, 8
      %s277 = smul.addr %s276, 8
      %s278 = scalar_lea.vmem %s7, %s277
      %v280 = vld [vmem:[%s273] sm:$0xff]
      %v281 = vld [vmem:[%s273 + $0x8] sm:$0xff]
      %v282 = vld [vmem:[%s273 + $0x10] sm:$0xff]
      %v283 = vld [vmem:[%s273 + $0x18] sm:$0xff]
      %v284 = vld [vmem:[%s273 + $0x20] sm:$0xff]
      %v285 = vld [vmem:[%s273 + $0x28] sm:$0xff]
      %v286 = vld [vmem:[%s273 + $0x30] sm:$0xff]
      %v287 = vld [vmem:[%s273 + $0x38] sm:$0xff]
      %v288 = vpack.c.bf16 %v281, %v280
      %v289 = vpack.c.bf16 %v283, %v282
      %v290 = vpack.c.bf16 %v285, %v284
      %v291 = vpack.c.bf16 %v287, %v286
      %v292 = vld [vmem:[%s1] sm:$0xf]
      %v293 = vld [vmem:[%s1 + $0x4] sm:$0xf]
      %v294 = vld [vmem:[%s1 + $0x8] sm:$0xf]
      %v295 = vld [vmem:[%s1 + $0xc] sm:$0xf]
      %v296 = vld [vmem:[%s1 + $0x10] sm:$0xf]
      %v297 = vld [vmem:[%s1 + $0x14] sm:$0xf]
      %v298 = vld [vmem:[%s1 + $0x18] sm:$0xf]
      %v299 = vld [vmem:[%s1 + $0x1c] sm:$0xf]
      %v300 = vld [vmem:[%s1 + $0x20] sm:$0xf]
      %v301 = vld [vmem:[%s1 + $0x24] sm:$0xf]
      %v302 = vld [vmem:[%s1 + $0x28] sm:$0xf]
      %v303 = vld [vmem:[%s1 + $0x2c] sm:$0xf]
      %v304 = vld [vmem:[%s1 + $0x30] sm:$0xf]
      %v305 = vld [vmem:[%s1 + $0x34] sm:$0xf]
      %v306 = vld [vmem:[%s1 + $0x38] sm:$0xf]
      %v307 = vld [vmem:[%s1 + $0x3c] sm:$0xf]
      %v308 = vld [vmem:[%s2] sm:$0x1]
      %v310 = vlaneseq
      %v311 = vshrl.u32 %v310, 7
      %v312 = vsub.s32 0, %v311
      %v313 = vrot.slane %v308, %v312
      %v331 = vunpack.c.l.b16 %v292
      %v332 = vunpack.c.l.b16 %v293
      %v333 = vunpack.c.l.b16 %v294
      %v334 = vunpack.c.l.b16 %v295
      %v335 = vunpack.c.l.b16 %v296
      %v336 = vunpack.c.l.b16 %v297
      %v337 = vunpack.c.l.b16 %v298
      %v338 = vunpack.c.l.b16 %v299
      %v339 = vunpack.c.l.b16 %v300
      %v340 = vunpack.c.l.b16 %v301
      %v341 = vunpack.c.l.b16 %v302
      %v342 = vunpack.c.l.b16 %v303
      %v343 = vunpack.c.l.b16 %v304
      %v344 = vunpack.c.l.b16 %v305
      %v345 = vunpack.c.l.b16 %v306
      %v346 = vunpack.c.l.b16 %v307
      %v347 = vpack.c.b16 %v332, %v331
      %v348 = vpack.c.b16 %v334, %v333
      %v349 = vpack.c.b16 %v336, %v335
      %v350 = vpack.c.b16 %v338, %v337
      %v351 = vpack.c.b16 %v340, %v339
      %v352 = vpack.c.b16 %v342, %v341
      %v353 = vpack.c.b16 %v344, %v343
      %v354 = vpack.c.b16 %v346, %v345
      %363 = vmatprep.subr.bf16.mxu0 0
      %364 = vmatpush1.bf16.msra.mxu0 %v347
      %365 = vmatprep.subr.bf16.mxu0 0
      %366 = vmatpush1.bf16.msra.mxu0 %v348
      %367 = vmatprep.subr.bf16.mxu0 0
      %368 = vmatpush1.bf16.msra.mxu0 %v349
      %369 = vmatprep.subr.bf16.mxu0 0
      %370 = vmatpush1.bf16.msra.mxu0 %v350
      %371 = vmatprep.subr.bf16.mxu0 0
      %372 = vmatpush1.bf16.msra.mxu0 %v351
      %373 = vmatprep.subr.bf16.mxu0 0
      %374 = vmatpush1.bf16.msra.mxu0 %v352
      %375 = vmatprep.subr.bf16.mxu0 0
      %376 = vmatpush1.bf16.msra.mxu0 %v353
      %377 = vmatprep.subr.bf16.mxu0 0
      %378 = vmatpush1.bf16.msra.mxu0 %v354
      %379 = vmatprep.subr.bf16.mxu0 0
      %380 = vmatpush1.bf16.msra.mxu0 0
      %381 = vmatprep.subr.bf16.mxu0 0
      %382 = vmatpush1.bf16.msra.mxu0 0
      %383 = vmatprep.subr.bf16.mxu0 0
      %384 = vmatpush1.bf16.msra.mxu0 0
      %385 = vmatprep.subr.bf16.mxu0 0
      %386 = vmatpush1.bf16.msra.mxu0 0
      %387 = vmatprep.subr.bf16.mxu0 0
      %388 = vmatpush1.bf16.msra.mxu0 0
      %389 = vmatprep.subr.bf16.mxu0 0
      %390 = vmatpush1.bf16.msra.mxu0 0
      %391 = vmatprep.subr.bf16.mxu0 0
      %392 = vmatpush1.bf16.msra.mxu0 0
      %393 = vmatprep.subr.bf16.mxu0 0
      %394 = vmatpush1.bf16.msra.mxu0 0
      %395 = vmatprep.mubr.bf16.mxu0 0
      %396 = vmatmul.mubr.bf16.gmra.mrb[0].mxu0 %v288
      %v397 = vpop.f32.mrb[0].mxu0
      %v398 = vadd.f32 %v313, %v397
      %v399 = vpop.f32.mrb[0].mxu0
      %v400 = vpop.f32.mrb[0].mxu0
      %v401 = vadd.f32 %v313, %v400
      %v402 = vpop.f32.mrb[0].mxu0
      %403 = vmatprep.mubr.bf16.mxu0 0
      %404 = vmatmul.mubr.bf16.gmra.mrb[0].mxu0 %v289
      %v405 = vpop.f32.mrb[0].mxu0
      %v406 = vadd.f32 %v313, %v405
      %v407 = vpop.f32.mrb[0].mxu0
      %v408 = vpop.f32.mrb[0].mxu0
      %v409 = vadd.f32 %v313, %v408
      %v410 = vpop.f32.mrb[0].mxu0
      %411 = vmatprep.mubr.bf16.mxu0 0
      %412 = vmatmul.mubr.bf16.gmra.mrb[0].mxu0 %v290
      %v413 = vpop.f32.mrb[0].mxu0
      %v414 = vadd.f32 %v313, %v413
      %v415 = vpop.f32.mrb[0].mxu0
      %v416 = vpop.f32.mrb[0].mxu0
      %v417 = vadd.f32 %v313, %v416
      %v418 = vpop.f32.mrb[0].mxu0
      %419 = vmatprep.mubr.bf16.mxu0 0
      %420 = vmatmul.mubr.bf16.gmra.mrb[0].mxu0 %v291
      %v421 = vpop.f32.mrb[0].mxu0
      %v422 = vadd.f32 %v313, %v421
      %v423 = vpop.f32.mrb[0].mxu0
      %v424 = vpop.f32.mrb[0].mxu0
      %v425 = vadd.f32 %v313, %v424
      %v426 = vpop.f32.mrb[0].mxu0
      %427 = vdwg.mxu0
      %v428 = vmax.f32 %v398, 0.0
      %v429 = vmax.f32 %v401, 0.0
      %v430 = vmax.f32 %v406, 0.0
      %v431 = vmax.f32 %v409, 0.0
      %v432 = vmax.f32 %v414, 0.0
      %v433 = vmax.f32 %v417, 0.0
      %v434 = vmax.f32 %v422, 0.0
      %v435 = vmax.f32 %v425, 0.0
      %436 = vst [vmem:[#allocation2] sm:$0xff] 0.0
      %437 = vst [vmem:[#allocation2 + $0x8] sm:$0x3] 0.0
      %438 = vst [vmem:[#allocation2 + $0x10] sm:$0xff] 0.0
      %439 = vst [vmem:[#allocation2 + $0x18] sm:$0x3] 0.0
      %440 = vst [vmem:[#allocation2 + $0x20] sm:$0xff] 0.0
      %441 = vst [vmem:[#allocation2 + $0x28] sm:$0x3] 0.0
      %442 = vst [vmem:[#allocation2 + $0x30] sm:$0xff] 0.0
      %443 = vst [vmem:[#allocation2 + $0x38] sm:$0x3] 0.0
      %444 = vst [vmem:[#allocation2 + $0x40] sm:$0xff] 0.0
      %445 = vst [vmem:[#allocation2 + $0x48] sm:$0x3] 0.0
      %446 = vst [vmem:[#allocation2 + $0x50] sm:$0xff] 0.0
      %447 = vst [vmem:[#allocation2 + $0x58] sm:$0x3] 0.0
      %448 = vst [vmem:[#allocation2 + $0x60] sm:$0xff] 0.0
      %449 = vst [vmem:[#allocation2 + $0x68] sm:$0x3] 0.0
      %450 = vst [vmem:[#allocation2 + $0x70] sm:$0xff] 0.0
      %451 = vst [vmem:[#allocation2 + $0x78] sm:$0x3] 0.0
      %452 = vst [vmem:[#allocation2 + $0x80] sm:$0xff] 0.0
      %453 = vst [vmem:[#allocation2 + $0x88] sm:$0x3] 0.0
      %454 = vst [vmem:[#allocation2 + $0x90] sm:$0xff] 0.0
      %455 = vst [vmem:[#allocation2 + $0x98] sm:$0x3] 0.0
      %s456 = scalar_lea.vmem [#allocation2], 16
      %457 = vst [vmem:[%s456 + $0x1] sm:$0xff] %v428
      %458 = vst [vmem:[%s456 + $0x11] sm:$0xff] %v429
      %459 = vst [vmem:[%s456 + $0x21] sm:$0xff] %v430
      %460 = vst [vmem:[%s456 + $0x31] sm:$0xff] %v431
      %461 = vst [vmem:[%s456 + $0x41] sm:$0xff] %v432
      %462 = vst [vmem:[%s456 + $0x51] sm:$0xff] %v433
      %463 = vst [vmem:[%s456 + $0x61] sm:$0xff] %v434
      %464 = vst [vmem:[%s456 + $0x71] sm:$0xff] %v435
      %v465 = vld [vmem:[#allocation2] sm:$0xff]
      %v466 = vld [vmem:[#allocation2 + $0x10] sm:$0xff]
      %v467 = vld [vmem:[#allocation2 + $0x20] sm:$0xff]
      %v468 = vld [vmem:[#allocation2 + $0x30] sm:$0xff]
      %v469 = vld [vmem:[#allocation2 + $0x40] sm:$0xff]
      %v470 = vld [vmem:[#allocation2 + $0x50] sm:$0xff]
      %v471 = vld [vmem:[#allocation2 + $0x60] sm:$0xff]
      %v472 = vld [vmem:[#allocation2 + $0x70] sm:$0xff]
      %v473 = vpack.c.bf16 %v466, %v465
      %v474 = vpack.c.bf16 %v468, %v467
      %v475 = vpack.c.bf16 %v470, %v469
      %v476 = vpack.c.bf16 %v472, %v471
      %v477 = vld [vmem:[%s3] sm:$0xf]
      %v478 = vld [vmem:[%s3 + $0x4] sm:$0xf]
      %v479 = vld [vmem:[%s3 + $0x8] sm:$0xf]
      %v480 = vld [vmem:[%s3 + $0xc] sm:$0xf]
      %v481 = vld [vmem:[%s3 + $0x10] sm:$0xf]
      %v482 = vld [vmem:[%s3 + $0x14] sm:$0xf]
      %v483 = vld [vmem:[%s3 + $0x18] sm:$0xf]
      %v484 = vld [vmem:[%s3 + $0x1c] sm:$0xf]
      %v485 = vld [vmem:[%s3 + $0x20] sm:$0xf]
      %v486 = vld [vmem:[%s3 + $0x24] sm:$0xf]
      %v487 = vld [vmem:[%s3 + $0x28] sm:$0xf]
      %v488 = vld [vmem:[%s3 + $0x2c] sm:$0xf]
      %v489 = vld [vmem:[%s3 + $0x30] sm:$0xf]
      %v490 = vld [vmem:[%s3 + $0x34] sm:$0xf]
      %v491 = vld [vmem:[%s3 + $0x38] sm:$0xf]
      %v492 = vld [vmem:[%s3 + $0x3c] sm:$0xf]
      %v493 = vld [vmem:[#allocation2 + $0x1] sm:$0xff]
      %v494 = vld [vmem:[#allocation2 + $0x11] sm:$0xff]
      %v495 = vld [vmem:[#allocation2 + $0x21] sm:$0xff]
      %v496 = vld [vmem:[#allocation2 + $0x31] sm:$0xff]
      %v497 = vld [vmem:[#allocation2 + $0x41] sm:$0xff]
      %v498 = vld [vmem:[#allocation2 + $0x51] sm:$0xff]
      %v499 = vld [vmem:[#allocation2 + $0x61] sm:$0xff]
      %v500 = vld [vmem:[#allocation2 + $0x71] sm:$0xff]
      %v501 = vpack.c.bf16 %v494, %v493
      %v502 = vpack.c.bf16 %v496, %v495
      %v503 = vpack.c.bf16 %v498, %v497
      %v504 = vpack.c.bf16 %v500, %v499
      %s505 = scalar_lea.vmem %s3, 64
      %v506 = vld [vmem:[%s505] sm:$0xf]
      %v507 = vld [vmem:[%s505 + $0x4] sm:$0xf]
      %v508 = vld [vmem:[%s505 + $0x8] sm:$0xf]
      %v509 = vld [vmem:[%s505 + $0xc] sm:$0xf]
      %v510 = vld [vmem:[%s505 + $0x10] sm:$0xf]
      %v511 = vld [vmem:[%s505 + $0x14] sm:$0xf]
      %v512 = vld [vmem:[%s505 + $0x18] sm:$0xf]
      %v513 = vld [vmem:[%s505 + $0x1c] sm:$0xf]
      %v514 = vld [vmem:[%s505 + $0x20] sm:$0xf]
      %v515 = vld [vmem:[%s505 + $0x24] sm:$0xf]
      %v516 = vld [vmem:[%s505 + $0x28] sm:$0xf]
      %v517 = vld [vmem:[%s505 + $0x2c] sm:$0xf]
      %v518 = vld [vmem:[%s505 + $0x30] sm:$0xf]
      %v519 = vld [vmem:[%s505 + $0x34] sm:$0xf]
      %v520 = vld [vmem:[%s505 + $0x38] sm:$0xf]
      %v521 = vld [vmem:[%s505 + $0x3c] sm:$0xf]
      %v538 = vunpack.c.l.b16 %v506
      %v539 = vunpack.c.l.b16 %v507
      %v540 = vunpack.c.l.b16 %v508
      %v541 = vunpack.c.l.b16 %v509
      %v542 = vunpack.c.l.b16 %v510
      %v543 = vunpack.c.l.b16 %v511
      %v544 = vunpack.c.l.b16 %v512
      %v545 = vunpack.c.l.b16 %v513
      %v546 = vunpack.c.l.b16 %v514
      %v547 = vunpack.c.l.b16 %v515
      %v548 = vunpack.c.l.b16 %v516
      %v549 = vunpack.c.l.b16 %v517
      %v550 = vunpack.c.l.b16 %v518
      %v551 = vunpack.c.l.b16 %v519
      %v552 = vunpack.c.l.b16 %v520
      %v553 = vunpack.c.l.b16 %v521
      %v554 = vpack.c.b16 %v539, %v538
      %v555 = vpack.c.b16 %v541, %v540
      %v556 = vpack.c.b16 %v543, %v542
      %v557 = vpack.c.b16 %v545, %v544
      %v558 = vpack.c.b16 %v547, %v546
      %v559 = vpack.c.b16 %v549, %v548
      %v560 = vpack.c.b16 %v551, %v550
      %v561 = vpack.c.b16 %v553, %v552
      %570 = vmatprep.subr.bf16.mxu0 0
      %571 = vmatpush1.bf16.msra.mxu0 %v554
      %572 = vmatprep.subr.bf16.mxu0 0
      %573 = vmatpush1.bf16.msra.mxu0 %v555
      %574 = vmatprep.subr.bf16.mxu0 0
      %575 = vmatpush1.bf16.msra.mxu0 %v556
      %576 = vmatprep.subr.bf16.mxu0 0
      %577 = vmatpush1.bf16.msra.mxu0 %v557
      %578 = vmatprep.subr.bf16.mxu0 0
      %579 = vmatpush1.bf16.msra.mxu0 %v558
      %580 = vmatprep.subr.bf16.mxu0 0
      %581 = vmatpush1.bf16.msra.mxu0 %v559
      %582 = vmatprep.subr.bf16.mxu0 0
      %583 = vmatpush1.bf16.msra.mxu0 %v560
      %584 = vmatprep.subr.bf16.mxu0 0
      %585 = vmatpush1.bf16.msra.mxu0 %v561
      %586 = vmatprep.subr.bf16.mxu0 0
      %587 = vmatpush1.bf16.msra.mxu0 0
      %588 = vmatprep.subr.bf16.mxu0 0
      %589 = vmatpush1.bf16.msra.mxu0 0
      %590 = vmatprep.subr.bf16.mxu0 0
      %591 = vmatpush1.bf16.msra.mxu0 0
      %592 = vmatprep.subr.bf16.mxu0 0
      %593 = vmatpush1.bf16.msra.mxu0 0
      %594 = vmatprep.subr.bf16.mxu0 0
      %595 = vmatpush1.bf16.msra.mxu0 0
      %596 = vmatprep.subr.bf16.mxu0 0
      %597 = vmatpush1.bf16.msra.mxu0 0
      %598 = vmatprep.subr.bf16.mxu0 0
      %599 = vmatpush1.bf16.msra.mxu0 0
      %600 = vmatprep.subr.bf16.mxu0 0
      %601 = vmatpush1.bf16.msra.mxu0 0
      %602 = vmatprep.mubr.bf16.mxu0 0
      %603 = vmatmul.mubr.bf16.gmra.mrb[0].mxu0 %v501
      %v604 = vpop.f32.mrb[0].mxu0
      %v605 = vadd.f32 0.0, %v604
      %v606 = vpop.f32.mrb[0].mxu0
      %v607 = vpop.f32.mrb[0].mxu0
      %v608 = vadd.f32 0.0, %v607
      %v609 = vpop.f32.mrb[0].mxu0
      %610 = vmatprep.mubr.bf16.mxu0 0
      %611 = vmatmul.mubr.bf16.gmra.mrb[0].mxu0 %v502
      %v612 = vpop.f32.mrb[0].mxu0
      %v613 = vadd.f32 0.0, %v612
      %v614 = vpop.f32.mrb[0].mxu0
      %v615 = vpop.f32.mrb[0].mxu0
      %v616 = vadd.f32 0.0, %v615
      %v617 = vpop.f32.mrb[0].mxu0
      %618 = vmatprep.mubr.bf16.mxu0 0
      %619 = vmatmul.mubr.bf16.gmra.mrb[0].mxu0 %v503
      %v620 = vpop.f32.mrb[0].mxu0
      %v621 = vadd.f32 0.0, %v620
      %v622 = vpop.f32.mrb[0].mxu0
      %v623 = vpop.f32.mrb[0].mxu0
      %v624 = vadd.f32 0.0, %v623
      %v625 = vpop.f32.mrb[0].mxu0
      %626 = vmatprep.mubr.bf16.mxu0 0
      %627 = vmatmul.mubr.bf16.gmra.mrb[0].mxu0 %v504
      %v628 = vpop.f32.mrb[0].mxu0
      %v629 = vadd.f32 0.0, %v628
      %v630 = vpop.f32.mrb[0].mxu0
      %v631 = vpop.f32.mrb[0].mxu0
      %v632 = vadd.f32 0.0, %v631
      %v633 = vpop.f32.mrb[0].mxu0
      %634 = vdwg.mxu0
      %v651 = vunpack.c.l.b16 %v477
      %v652 = vunpack.c.l.b16 %v478
      %v653 = vunpack.c.l.b16 %v479
      %v654 = vunpack.c.l.b16 %v480
      %v655 = vunpack.c.l.b16 %v481
      %v656 = vunpack.c.l.b16 %v482
      %v657 = vunpack.c.l.b16 %v483
      %v658 = vunpack.c.l.b16 %v484
      %v659 = vunpack.c.l.b16 %v485
      %v660 = vunpack.c.l.b16 %v486
      %v661 = vunpack.c.l.b16 %v487
      %v662 = vunpack.c.l.b16 %v488
      %v663 = vunpack.c.l.b16 %v489
      %v664 = vunpack.c.l.b16 %v490
      %v665 = vunpack.c.l.b16 %v491
      %v666 = vunpack.c.l.b16 %v492
      %v667 = vpack.c.b16 %v652, %v651
      %v668 = vpack.c.b16 %v654, %v653
      %v669 = vpack.c.b16 %v656, %v655
      %v670 = vpack.c.b16 %v658, %v657
      %v671 = vpack.c.b16 %v660, %v659
      %v672 = vpack.c.b16 %v662, %v661
      %v673 = vpack.c.b16 %v664, %v663
      %v674 = vpack.c.b16 %v666, %v665
      %683 = vmatprep.subr.bf16.mxu0 0
      %684 = vmatpush1.bf16.msra.mxu0 %v667
      %685 = vmatprep.subr.bf16.mxu0 0
      %686 = vmatpush1.bf16.msra.mxu0 %v668
      %687 = vmatprep.subr.bf16.mxu0 0
      %688 = vmatpush1.bf16.msra.mxu0 %v669
      %689 = vmatprep.subr.bf16.mxu0 0
      %690 = vmatpush1.bf16.msra.mxu0 %v670
      %691 = vmatprep.subr.bf16.mxu0 0
      %692 = vmatpush1.bf16.msra.mxu0 %v671
      %693 = vmatprep.subr.bf16.mxu0 0
      %694 = vmatpush1.bf16.msra.mxu0 %v672
      %695 = vmatprep.subr.bf16.mxu0 0
      %696 = vmatpush1.bf16.msra.mxu0 %v673
      %697 = vmatprep.subr.bf16.mxu0 0
      %698 = vmatpush1.bf16.msra.mxu0 %v674
      %699 = vmatprep.subr.bf16.mxu0 0
      %700 = vmatpush1.bf16.msra.mxu0 0
      %701 = vmatprep.subr.bf16.mxu0 0
      %702 = vmatpush1.bf16.msra.mxu0 0
      %703 = vmatprep.subr.bf16.mxu0 0
      %704 = vmatpush1.bf16.msra.mxu0 0
      %705 = vmatprep.subr.bf16.mxu0 0
      %706 = vmatpush1.bf16.msra.mxu0 0
      %707 = vmatprep.subr.bf16.mxu0 0
      %708 = vmatpush1.bf16.msra.mxu0 0
      %709 = vmatprep.subr.bf16.mxu0 0
      %710 = vmatpush1.bf16.msra.mxu0 0
      %711 = vmatprep.subr.bf16.mxu0 0
      %712 = vmatpush1.bf16.msra.mxu0 0
      %713 = vmatprep.subr.bf16.mxu0 0
      %714 = vmatpush1.bf16.msra.mxu0 0
      %715 = vmatprep.mubr.bf16.mxu0 0
      %716 = vmatmul.mubr.bf16.gmra.mrb[0].mxu0 %v473
      %v717 = vpop.f32.mrb[0].mxu0
      %v718 = vadd.f32 %v605, %v717
      %v719 = vpop.f32.mrb[0].mxu0
      %v720 = vpop.f32.mrb[0].mxu0
      %v721 = vadd.f32 %v608, %v720
      %v722 = vpop.f32.mrb[0].mxu0
      %723 = vmatprep.mubr.bf16.mxu0 0
      %724 = vmatmul.mubr.bf16.gmra.mrb[0].mxu0 %v474
      %v725 = vpop.f32.mrb[0].mxu0
      %v726 = vadd.f32 %v613, %v725
      %v727 = vpop.f32.mrb[0].mxu0
      %v728 = vpop.f32.mrb[0].mxu0
      %v729 = vadd.f32 %v616, %v728
      %v730 = vpop.f32.mrb[0].mxu0
      %731 = vmatprep.mubr.bf16.mxu0 0
      %732 = vmatmul.mubr.bf16.gmra.mrb[0].mxu0 %v475
      %v733 = vpop.f32.mrb[0].mxu0
      %v734 = vadd.f32 %v621, %v733
      %v735 = vpop.f32.mrb[0].mxu0
      %v736 = vpop.f32.mrb[0].mxu0
      %v737 = vadd.f32 %v624, %v736
      %v738 = vpop.f32.mrb[0].mxu0
      %739 = vmatprep.mubr.bf16.mxu0 0
      %740 = vmatmul.mubr.bf16.gmra.mrb[0].mxu0 %v476
      %v741 = vpop.f32.mrb[0].mxu0
      %v742 = vadd.f32 %v629, %v741
      %v743 = vpop.f32.mrb[0].mxu0
      %v744 = vpop.f32.mrb[0].mxu0
      %v745 = vadd.f32 %v632, %v744
      %v746 = vpop.f32.mrb[0].mxu0
      %747 = vdwg.mxu0
      %v748 = vld [vmem:[#allocation2 + $0x2] sm:$0xff]
      %v749 = vld [vmem:[#allocation2 + $0x12] sm:$0xff]
      %v750 = vld [vmem:[#allocation2 + $0x22] sm:$0xff]
      %v751 = vld [vmem:[#allocation2 + $0x32] sm:$0xff]
      %v752 = vld [vmem:[#allocation2 + $0x42] sm:$0xff]
      %v753 = vld [vmem:[#allocation2 + $0x52] sm:$0xff]
      %v754 = vld [vmem:[#allocation2 + $0x62] sm:$0xff]
      %v755 = vld [vmem:[#allocation2 + $0x72] sm:$0xff]
      %v756 = vpack.c.bf16 %v749, %v748
      %v757 = vpack.c.bf16 %v751, %v750
      %v758 = vpack.c.bf16 %v753, %v752
      %v759 = vpack.c.bf16 %v755, %v754
      %s760 = scalar_lea.vmem %s3, 128
      %v761 = vld [vmem:[%s760] sm:$0xf]
      %v762 = vld [vmem:[%s760 + $0x4] sm:$0xf]
      %v763 = vld [vmem:[%s760 + $0x8] sm:$0xf]
      %v764 = vld [vmem:[%s760 + $0xc] sm:$0xf]
      %v765 = vld [vmem:[%s760 + $0x10] sm:$0xf]
      %v766 = vld [vmem:[%s760 + $0x14] sm:$0xf]
      %v767 = vld [vmem:[%s760 + $0x18] sm:$0xf]
      %v768 = vld [vmem:[%s760 + $0x1c] sm:$0xf]
      %v769 = vld [vmem:[%s760 + $0x20] sm:$0xf]
      %v770 = vld [vmem:[%s760 + $0x24] sm:$0xf]
      %v771 = vld [vmem:[%s760 + $0x28] sm:$0xf]
      %v772 = vld [vmem:[%s760 + $0x2c] sm:$0xf]
      %v773 = vld [vmem:[%s760 + $0x30] sm:$0xf]
      %v774 = vld [vmem:[%s760 + $0x34] sm:$0xf]
      %v775 = vld [vmem:[%s760 + $0x38] sm:$0xf]
      %v776 = vld [vmem:[%s760 + $0x3c] sm:$0xf]
      %v793 = vunpack.c.l.b16 %v761
      %v794 = vunpack.c.l.b16 %v762
      %v795 = vunpack.c.l.b16 %v763
      %v796 = vunpack.c.l.b16 %v764
      %v797 = vunpack.c.l.b16 %v765
      %v798 = vunpack.c.l.b16 %v766
      %v799 = vunpack.c.l.b16 %v767
      %v800 = vunpack.c.l.b16 %v768
      %v801 = vunpack.c.l.b16 %v769
      %v802 = vunpack.c.l.b16 %v770
      %v803 = vunpack.c.l.b16 %v771
      %v804 = vunpack.c.l.b16 %v772
      %v805 = vunpack.c.l.b16 %v773
      %v806 = vunpack.c.l.b16 %v774
      %v807 = vunpack.c.l.b16 %v775
      %v808 = vunpack.c.l.b16 %v776
      %v809 = vpack.c.b16 %v794, %v793
      %v810 = vpack.c.b16 %v796, %v795
      %v811 = vpack.c.b16 %v798, %v797
      %v812 = vpack.c.b16 %v800, %v799
      %v813 = vpack.c.b16 %v802, %v801
      %v814 = vpack.c.b16 %v804, %v803
      %v815 = vpack.c.b16 %v806, %v805
      %v816 = vpack.c.b16 %v808, %v807
      %825 = vmatprep.subr.bf16.mxu0 0
      %826 = vmatpush1.bf16.msra.mxu0 %v809
      %827 = vmatprep.subr.bf16.mxu0 0
      %828 = vmatpush1.bf16.msra.mxu0 %v810
      %829 = vmatprep.subr.bf16.mxu0 0
      %830 = vmatpush1.bf16.msra.mxu0 %v811
      %831 = vmatprep.subr.bf16.mxu0 0
      %832 = vmatpush1.bf16.msra.mxu0 %v812
      %833 = vmatprep.subr.bf16.mxu0 0
      %834 = vmatpush1.bf16.msra.mxu0 %v813
      %835 = vmatprep.subr.bf16.mxu0 0
      %836 = vmatpush1.bf16.msra.mxu0 %v814
      %837 = vmatprep.subr.bf16.mxu0 0
      %838 = vmatpush1.bf16.msra.mxu0 %v815
      %839 = vmatprep.subr.bf16.mxu0 0
      %840 = vmatpush1.bf16.msra.mxu0 %v816
      %841 = vmatprep.subr.bf16.mxu0 0
      %842 = vmatpush1.bf16.msra.mxu0 0
      %843 = vmatprep.subr.bf16.mxu0 0
      %844 = vmatpush1.bf16.msra.mxu0 0
      %845 = vmatprep.subr.bf16.mxu0 0
      %846 = vmatpush1.bf16.msra.mxu0 0
      %847 = vmatprep.subr.bf16.mxu0 0
      %848 = vmatpush1.bf16.msra.mxu0 0
      %849 = vmatprep.subr.bf16.mxu0 0
      %850 = vmatpush1.bf16.msra.mxu0 0
      %851 = vmatprep.subr.bf16.mxu0 0
      %852 = vmatpush1.bf16.msra.mxu0 0
      %853 = vmatprep.subr.bf16.mxu0 0
      %854 = vmatpush1.bf16.msra.mxu0 0
      %855 = vmatprep.subr.bf16.mxu0 0
      %856 = vmatpush1.bf16.msra.mxu0 0
      %857 = vmatprep.mubr.bf16.mxu0 0
      %858 = vmatmul.mubr.bf16.gmra.mrb[0].mxu0 %v756
      %v859 = vpop.f32.mrb[0].mxu0
      %v860 = vadd.f32 0.0, %v859
      %v861 = vpop.f32.mrb[0].mxu0
      %v862 = vpop.f32.mrb[0].mxu0
      %v863 = vadd.f32 0.0, %v862
      %v864 = vpop.f32.mrb[0].mxu0
      %865 = vmatprep.mubr.bf16.mxu0 0
      %866 = vmatmul.mubr.bf16.gmra.mrb[0].mxu0 %v757
      %v867 = vpop.f32.mrb[0].mxu0
      %v868 = vadd.f32 0.0, %v867
      %v869 = vpop.f32.mrb[0].mxu0
      %v870 = vpop.f32.mrb[0].mxu0
      %v871 = vadd.f32 0.0, %v870
      %v872 = vpop.f32.mrb[0].mxu0
      %873 = vmatprep.mubr.bf16.mxu0 0
      %874 = vmatmul.mubr.bf16.gmra.mrb[0].mxu0 %v758
      %v875 = vpop.f32.mrb[0].mxu0
      %v876 = vadd.f32 0.0, %v875
      %v877 = vpop.f32.mrb[0].mxu0
      %v878 = vpop.f32.mrb[0].mxu0
      %v879 = vadd.f32 0.0, %v878
      %v880 = vpop.f32.mrb[0].mxu0
      %881 = vmatprep.mubr.bf16.mxu0 0
      %882 = vmatmul.mubr.bf16.gmra.mrb[0].mxu0 %v759
      %v883 = vpop.f32.mrb[0].mxu0
      %v884 = vadd.f32 0.0, %v883
      %v885 = vpop.f32.mrb[0].mxu0
      %v886 = vpop.f32.mrb[0].mxu0
      %v887 = vadd.f32 0.0, %v886
      %v888 = vpop.f32.mrb[0].mxu0
      %889 = vdwg.mxu0
      %v890 = vadd.f32 %v718, %v860
      %v891 = vadd.f32 %v721, %v863
      %v892 = vadd.f32 %v726, %v868
      %v893 = vadd.f32 %v729, %v871
      %v894 = vadd.f32 %v734, %v876
      %v895 = vadd.f32 %v737, %v879
      %v896 = vadd.f32 %v742, %v884
      %v897 = vadd.f32 %v745, %v887
      %v898 = vld [vmem:[%s456] sm:$0xff]
      %v899 = vld [vmem:[%s456 + $0x10] sm:$0xff]
      %v900 = vld [vmem:[%s456 + $0x20] sm:$0xff]
      %v901 = vld [vmem:[%s456 + $0x30] sm:$0xff]
      %v902 = vld [vmem:[%s456 + $0x40] sm:$0xff]
      %v903 = vld [vmem:[%s456 + $0x50] sm:$0xff]
      %v904 = vld [vmem:[%s456 + $0x60] sm:$0xff]
      %v905 = vld [vmem:[%s456 + $0x70] sm:$0xff]
      %v906 = vpack.c.bf16 %v899, %v898
      %v907 = vpack.c.bf16 %v901, %v900
      %v908 = vpack.c.bf16 %v903, %v902
      %v909 = vpack.c.bf16 %v905, %v904
      %s910 = scalar_lea.vmem %s3, 192
      %v911 = vld [vmem:[%s910] sm:$0xf]
      %v912 = vld [vmem:[%s910 + $0x4] sm:$0xf]
      %v913 = vld [vmem:[%s910 + $0x8] sm:$0xf]
      %v914 = vld [vmem:[%s910 + $0xc] sm:$0xf]
      %v915 = vld [vmem:[%s910 + $0x10] sm:$0xf]
      %v916 = vld [vmem:[%s910 + $0x14] sm:$0xf]
      %v917 = vld [vmem:[%s910 + $0x18] sm:$0xf]
      %v918 = vld [vmem:[%s910 + $0x1c] sm:$0xf]
      %v919 = vld [vmem:[%s910 + $0x20] sm:$0xf]
      %v920 = vld [vmem:[%s910 + $0x24] sm:$0xf]
      %v921 = vld [vmem:[%s910 + $0x28] sm:$0xf]
      %v922 = vld [vmem:[%s910 + $0x2c] sm:$0xf]
      %v923 = vld [vmem:[%s910 + $0x30] sm:$0xf]
      %v924 = vld [vmem:[%s910 + $0x34] sm:$0xf]
      %v925 = vld [vmem:[%s910 + $0x38] sm:$0xf]
      %v926 = vld [vmem:[%s910 + $0x3c] sm:$0xf]
      %v943 = vunpack.c.l.b16 %v911
      %v944 = vunpack.c.l.b16 %v912
      %v945 = vunpack.c.l.b16 %v913
      %v946 = vunpack.c.l.b16 %v914
      %v947 = vunpack.c.l.b16 %v915
      %v948 = vunpack.c.l.b16 %v916
      %v949 = vunpack.c.l.b16 %v917
      %v950 = vunpack.c.l.b16 %v918
      %v951 = vunpack.c.l.b16 %v919
      %v952 = vunpack.c.l.b16 %v920
      %v953 = vunpack.c.l.b16 %v921
      %v954 = vunpack.c.l.b16 %v922
      %v955 = vunpack.c.l.b16 %v923
      %v956 = vunpack.c.l.b16 %v924
      %v957 = vunpack.c.l.b16 %v925
      %v958 = vunpack.c.l.b16 %v926
      %v959 = vpack.c.b16 %v944, %v943
      %v960 = vpack.c.b16 %v946, %v945
      %v961 = vpack.c.b16 %v948, %v947
      %v962 = vpack.c.b16 %v950, %v949
      %v963 = vpack.c.b16 %v952, %v951
      %v964 = vpack.c.b16 %v954, %v953
      %v965 = vpack.c.b16 %v956, %v955
      %v966 = vpack.c.b16 %v958, %v957
      %975 = vmatprep.subr.bf16.mxu0 0
      %976 = vmatpush1.bf16.msra.mxu0 %v959
      %977 = vmatprep.subr.bf16.mxu0 0
      %978 = vmatpush1.bf16.msra.mxu0 %v960
      %979 = vmatprep.subr.bf16.mxu0 0
      %980 = vmatpush1.bf16.msra.mxu0 %v961
      %981 = vmatprep.subr.bf16.mxu0 0
      %982 = vmatpush1.bf16.msra.mxu0 %v962
      %983 = vmatprep.subr.bf16.mxu0 0
      %984 = vmatpush1.bf16.msra.mxu0 %v963
      %985 = vmatprep.subr.bf16.mxu0 0
      %986 = vmatpush1.bf16.msra.mxu0 %v964
      %987 = vmatprep.subr.bf16.mxu0 0
      %988 = vmatpush1.bf16.msra.mxu0 %v965
      %989 = vmatprep.subr.bf16.mxu0 0
      %990 = vmatpush1.bf16.msra.mxu0 %v966
      %991 = vmatprep.subr.bf16.mxu0 0
      %992 = vmatpush1.bf16.msra.mxu0 0
      %993 = vmatprep.subr.bf16.mxu0 0
      %994 = vmatpush1.bf16.msra.mxu0 0
      %995 = vmatprep.subr.bf16.mxu0 0
      %996 = vmatpush1.bf16.msra.mxu0 0
      %997 = vmatprep.subr.bf16.mxu0 0
      %998 = vmatpush1.bf16.msra.mxu0 0
      %999 = vmatprep.subr.bf16.mxu0 0
      %1000 = vmatpush1.bf16.msra.mxu0 0
      %1001 = vmatprep.subr.bf16.mxu0 0
      %1002 = vmatpush1.bf16.msra.mxu0 0
      %1003 = vmatprep.subr.bf16.mxu0 0
      %1004 = vmatpush1.bf16.msra.mxu0 0
      %1005 = vmatprep.subr.bf16.mxu0 0
      %1006 = vmatpush1.bf16.msra.mxu0 0
      %1007 = vmatprep.mubr.bf16.mxu0 0
      %1008 = vmatmul.mubr.bf16.gmra.mrb[0].mxu0 %v906
      %v1009 = vpop.f32.mrb[0].mxu0
      %v1010 = vadd.f32 0.0, %v1009
      %v1011 = vpop.f32.mrb[0].mxu0
      %v1012 = vpop.f32.mrb[0].mxu0
      %v1013 = vadd.f32 0.0, %v1012
      %v1014 = vpop.f32.mrb[0].mxu0
      %1015 = vmatprep.mubr.bf16.mxu0 0
      %1016 = vmatmul.mubr.bf16.gmra.mrb[0].mxu0 %v907
      %v1017 = vpop.f32.mrb[0].mxu0
      %v1018 = vadd.f32 0.0, %v1017
      %v1019 = vpop.f32.mrb[0].mxu0
      %v1020 = vpop.f32.mrb[0].mxu0
      %v1021 = vadd.f32 0.0, %v1020
      %v1022 = vpop.f32.mrb[0].mxu0
      %1023 = vmatprep.mubr.bf16.mxu0 0
      %1024 = vmatmul.mubr.bf16.gmra.mrb[0].mxu0 %v908
      %v1025 = vpop.f32.mrb[0].mxu0
      %v1026 = vadd.f32 0.0, %v1025
      %v1027 = vpop.f32.mrb[0].mxu0
      %v1028 = vpop.f32.mrb[0].mxu0
      %v1029 = vadd.f32 0.0, %v1028
      %v1030 = vpop.f32.mrb[0].mxu0
      %1031 = vmatprep.mubr.bf16.mxu0 0
      %1032 = vmatmul.mubr.bf16.gmra.mrb[0].mxu0 %v909
      %v1033 = vpop.f32.mrb[0].mxu0
      %v1034 = vadd.f32 0.0, %v1033
      %v1035 = vpop.f32.mrb[0].mxu0
      %v1036 = vpop.f32.mrb[0].mxu0
      %v1037 = vadd.f32 0.0, %v1036
      %v1038 = vpop.f32.mrb[0].mxu0
      %1039 = vdwg.mxu0
      %v1040 = vadd.f32 %v890, %v1010
      %v1041 = vadd.f32 %v891, %v1013
      %v1042 = vadd.f32 %v892, %v1018
      %v1043 = vadd.f32 %v893, %v1021
      %v1044 = vadd.f32 %v894, %v1026
      %v1045 = vadd.f32 %v895, %v1029
      %v1046 = vadd.f32 %v896, %v1034
      %v1047 = vadd.f32 %v897, %v1037
      %v1048 = vld [vmem:[%s456 + $0x1] sm:$0xff]
      %v1049 = vld [vmem:[%s456 + $0x11] sm:$0xff]
      %v1050 = vld [vmem:[%s456 + $0x21] sm:$0xff]
      %v1051 = vld [vmem:[%s456 + $0x31] sm:$0xff]
      %v1052 = vld [vmem:[%s456 + $0x41] sm:$0xff]
      %v1053 = vld [vmem:[%s456 + $0x51] sm:$0xff]
      %v1054 = vld [vmem:[%s456 + $0x61] sm:$0xff]
      %v1055 = vld [vmem:[%s456 + $0x71] sm:$0xff]
      %v1056 = vpack.c.bf16 %v1049, %v1048
      %v1057 = vpack.c.bf16 %v1051, %v1050
      %v1058 = vpack.c.bf16 %v1053, %v1052
      %v1059 = vpack.c.bf16 %v1055, %v1054
      %s1060 = scalar_lea.vmem %s3, 256
      %v1061 = vld [vmem:[%s1060] sm:$0xf]
      %v1062 = vld [vmem:[%s1060 + $0x4] sm:$0xf]
      %v1063 = vld [vmem:[%s1060 + $0x8] sm:$0xf]
      %v1064 = vld [vmem:[%s1060 + $0xc] sm:$0xf]
      %v1065 = vld [vmem:[%s1060 + $0x10] sm:$0xf]
      %v1066 = vld [vmem:[%s1060 + $0x14] sm:$0xf]
      %v1067 = vld [vmem:[%s1060 + $0x18] sm:$0xf]
      %v1068 = vld [vmem:[%s1060 + $0x1c] sm:$0xf]
      %v1069 = vld [vmem:[%s1060 + $0x20] sm:$0xf]
      %v1070 = vld [vmem:[%s1060 + $0x24] sm:$0xf]
      %v1071 = vld [vmem:[%s1060 + $0x28] sm:$0xf]
      %v1072 = vld [vmem:[%s1060 + $0x2c] sm:$0xf]
      %v1073 = vld [vmem:[%s1060 + $0x30] sm:$0xf]
      %v1074 = vld [vmem:[%s1060 + $0x34] sm:$0xf]
      %v1075 = vld [vmem:[%s1060 + $0x38] sm:$0xf]
      %v1076 = vld [vmem:[%s1060 + $0x3c] sm:$0xf]
      %v1093 = vunpack.c.l.b16 %v1061
      %v1094 = vunpack.c.l.b16 %v1062
      %v1095 = vunpack.c.l.b16 %v1063
      %v1096 = vunpack.c.l.b16 %v1064
      %v1097 = vunpack.c.l.b16 %v1065
      %v1098 = vunpack.c.l.b16 %v1066
      %v1099 = vunpack.c.l.b16 %v1067
      %v1100 = vunpack.c.l.b16 %v1068
      %v1101 = vunpack.c.l.b16 %v1069
      %v1102 = vunpack.c.l.b16 %v1070
      %v1103 = vunpack.c.l.b16 %v1071
      %v1104 = vunpack.c.l.b16 %v1072
      %v1105 = vunpack.c.l.b16 %v1073
      %v1106 = vunpack.c.l.b16 %v1074
      %v1107 = vunpack.c.l.b16 %v1075
      %v1108 = vunpack.c.l.b16 %v1076
      %v1109 = vpack.c.b16 %v1094, %v1093
      %v1110 = vpack.c.b16 %v1096, %v1095
      %v1111 = vpack.c.b16 %v1098, %v1097
      %v1112 = vpack.c.b16 %v1100, %v1099
      %v1113 = vpack.c.b16 %v1102, %v1101
      %v1114 = vpack.c.b16 %v1104, %v1103
      %v1115 = vpack.c.b16 %v1106, %v1105
      %v1116 = vpack.c.b16 %v1108, %v1107
      %1125 = vmatprep.subr.bf16.mxu0 0
      %1126 = vmatpush1.bf16.msra.mxu0 %v1109
      %1127 = vmatprep.subr.bf16.mxu0 0
      %1128 = vmatpush1.bf16.msra.mxu0 %v1110
      %1129 = vmatprep.subr.bf16.mxu0 0
      %1130 = vmatpush1.bf16.msra.mxu0 %v1111
      %1131 = vmatprep.subr.bf16.mxu0 0
      %1132 = vmatpush1.bf16.msra.mxu0 %v1112
      %1133 = vmatprep.subr.bf16.mxu0 0
      %1134 = vmatpush1.bf16.msra.mxu0 %v1113
      %1135 = vmatprep.subr.bf16.mxu0 0
      %1136 = vmatpush1.bf16.msra.mxu0 %v1114
      %1137 = vmatprep.subr.bf16.mxu0 0
      %1138 = vmatpush1.bf16.msra.mxu0 %v1115
      %1139 = vmatprep.subr.bf16.mxu0 0
      %1140 = vmatpush1.bf16.msra.mxu0 %v1116
      %1141 = vmatprep.subr.bf16.mxu0 0
      %1142 = vmatpush1.bf16.msra.mxu0 0
      %1143 = vmatprep.subr.bf16.mxu0 0
      %1144 = vmatpush1.bf16.msra.mxu0 0
      %1145 = vmatprep.subr.bf16.mxu0 0
      %1146 = vmatpush1.bf16.msra.mxu0 0
      %1147 = vmatprep.subr.bf16.mxu0 0
      %1148 = vmatpush1.bf16.msra.mxu0 0
      %1149 = vmatprep.subr.bf16.mxu0 0
      %1150 = vmatpush1.bf16.msra.mxu0 0
      %1151 = vmatprep.subr.bf16.mxu0 0
      %1152 = vmatpush1.bf16.msra.mxu0 0
      %1153 = vmatprep.subr.bf16.mxu0 0
      %1154 = vmatpush1.bf16.msra.mxu0 0
      %1155 = vmatprep.subr.bf16.mxu0 0
      %1156 = vmatpush1.bf16.msra.mxu0 0
      %1157 = vmatprep.mubr.bf16.mxu0 0
      %1158 = vmatmul.mubr.bf16.gmra.mrb[0].mxu0 %v1056
      %v1159 = vpop.f32.mrb[0].mxu0
      %v1160 = vadd.f32 0.0, %v1159
      %v1161 = vpop.f32.mrb[0].mxu0
      %v1162 = vpop.f32.mrb[0].mxu0
      %v1163 = vadd.f32 0.0, %v1162
      %v1164 = vpop.f32.mrb[0].mxu0
      %1165 = vmatprep.mubr.bf16.mxu0 0
      %1166 = vmatmul.mubr.bf16.gmra.mrb[0].mxu0 %v1057
      %v1167 = vpop.f32.mrb[0].mxu0
      %v1168 = vadd.f32 0.0, %v1167
      %v1169 = vpop.f32.mrb[0].mxu0
      %v1170 = vpop.f32.mrb[0].mxu0
      %v1171 = vadd.f32 0.0, %v1170
      %v1172 = vpop.f32.mrb[0].mxu0
      %1173 = vmatprep.mubr.bf16.mxu0 0
      %1174 = vmatmul.mubr.bf16.gmra.mrb[0].mxu0 %v1058
      %v1175 = vpop.f32.mrb[0].mxu0
      %v1176 = vadd.f32 0.0, %v1175
      %v1177 = vpop.f32.mrb[0].mxu0
      %v1178 = vpop.f32.mrb[0].mxu0
      %v1179 = vadd.f32 0.0, %v1178
      %v1180 = vpop.f32.mrb[0].mxu0
      %1181 = vmatprep.mubr.bf16.mxu0 0
      %1182 = vmatmul.mubr.bf16.gmra.mrb[0].mxu0 %v1059
      %v1183 = vpop.f32.mrb[0].mxu0
      %v1184 = vadd.f32 0.0, %v1183
      %v1185 = vpop.f32.mrb[0].mxu0
      %v1186 = vpop.f32.mrb[0].mxu0
      %v1187 = vadd.f32 0.0, %v1186
      %v1188 = vpop.f32.mrb[0].mxu0
      %1189 = vdwg.mxu0
      %v1190 = vadd.f32 %v1040, %v1160
      %v1191 = vadd.f32 %v1041, %v1163
      %v1192 = vadd.f32 %v1042, %v1168
      %v1193 = vadd.f32 %v1043, %v1171
      %v1194 = vadd.f32 %v1044, %v1176
      %v1195 = vadd.f32 %v1045, %v1179
      %v1196 = vadd.f32 %v1046, %v1184
      %v1197 = vadd.f32 %v1047, %v1187
      %v1198 = vld [vmem:[%s456 + $0x2] sm:$0xff]
      %v1199 = vld [vmem:[%s456 + $0x12] sm:$0xff]
      %v1200 = vld [vmem:[%s456 + $0x22] sm:$0xff]
      %v1201 = vld [vmem:[%s456 + $0x32] sm:$0xff]
      %v1202 = vld [vmem:[%s456 + $0x42] sm:$0xff]
      %v1203 = vld [vmem:[%s456 + $0x52] sm:$0xff]
      %v1204 = vld [vmem:[%s456 + $0x62] sm:$0xff]
      %v1205 = vld [vmem:[%s456 + $0x72] sm:$0xff]
      %v1206 = vpack.c.bf16 %v1199, %v1198
      %v1207 = vpack.c.bf16 %v1201, %v1200
      %v1208 = vpack.c.bf16 %v1203, %v1202
      %v1209 = vpack.c.bf16 %v1205, %v1204
      %s1210 = scalar_lea.vmem %s3, 320
      %v1211 = vld [vmem:[%s1210] sm:$0xf]
      %v1212 = vld [vmem:[%s1210 + $0x4] sm:$0xf]
      %v1213 = vld [vmem:[%s1210 + $0x8] sm:$0xf]
      %v1214 = vld [vmem:[%s1210 + $0xc] sm:$0xf]
      %v1215 = vld [vmem:[%s1210 + $0x10] sm:$0xf]
      %v1216 = vld [vmem:[%s1210 + $0x14] sm:$0xf]
      %v1217 = vld [vmem:[%s1210 + $0x18] sm:$0xf]
      %v1218 = vld [vmem:[%s1210 + $0x1c] sm:$0xf]
      %v1219 = vld [vmem:[%s1210 + $0x20] sm:$0xf]
      %v1220 = vld [vmem:[%s1210 + $0x24] sm:$0xf]
      %v1221 = vld [vmem:[%s1210 + $0x28] sm:$0xf]
      %v1222 = vld [vmem:[%s1210 + $0x2c] sm:$0xf]
      %v1223 = vld [vmem:[%s1210 + $0x30] sm:$0xf]
      %v1224 = vld [vmem:[%s1210 + $0x34] sm:$0xf]
      %v1225 = vld [vmem:[%s1210 + $0x38] sm:$0xf]
      %v1226 = vld [vmem:[%s1210 + $0x3c] sm:$0xf]
      %v1243 = vunpack.c.l.b16 %v1211
      %v1244 = vunpack.c.l.b16 %v1212
      %v1245 = vunpack.c.l.b16 %v1213
      %v1246 = vunpack.c.l.b16 %v1214
      %v1247 = vunpack.c.l.b16 %v1215
      %v1248 = vunpack.c.l.b16 %v1216
      %v1249 = vunpack.c.l.b16 %v1217
      %v1250 = vunpack.c.l.b16 %v1218
      %v1251 = vunpack.c.l.b16 %v1219
      %v1252 = vunpack.c.l.b16 %v1220
      %v1253 = vunpack.c.l.b16 %v1221
      %v1254 = vunpack.c.l.b16 %v1222
      %v1255 = vunpack.c.l.b16 %v1223
      %v1256 = vunpack.c.l.b16 %v1224
      %v1257 = vunpack.c.l.b16 %v1225
      %v1258 = vunpack.c.l.b16 %v1226
      %v1259 = vpack.c.b16 %v1244, %v1243
      %v1260 = vpack.c.b16 %v1246, %v1245
      %v1261 = vpack.c.b16 %v1248, %v1247
      %v1262 = vpack.c.b16 %v1250, %v1249
      %v1263 = vpack.c.b16 %v1252, %v1251
      %v1264 = vpack.c.b16 %v1254, %v1253
      %v1265 = vpack.c.b16 %v1256, %v1255
      %v1266 = vpack.c.b16 %v1258, %v1257
      %1275 = vmatprep.subr.bf16.mxu0 0
      %1276 = vmatpush1.bf16.msra.mxu0 %v1259
      %1277 = vmatprep.subr.bf16.mxu0 0
      %1278 = vmatpush1.bf16.msra.mxu0 %v1260
      %1279 = vmatprep.subr.bf16.mxu0 0
      %1280 = vmatpush1.bf16.msra.mxu0 %v1261
      %1281 = vmatprep.subr.bf16.mxu0 0
      %1282 = vmatpush1.bf16.msra.mxu0 %v1262
      %1283 = vmatprep.subr.bf16.mxu0 0
      %1284 = vmatpush1.bf16.msra.mxu0 %v1263
      %1285 = vmatprep.subr.bf16.mxu0 0
      %1286 = vmatpush1.bf16.msra.mxu0 %v1264
      %1287 = vmatprep.subr.bf16.mxu0 0
      %1288 = vmatpush1.bf16.msra.mxu0 %v1265
      %1289 = vmatprep.subr.bf16.mxu0 0
      %1290 = vmatpush1.bf16.msra.mxu0 %v1266
      %1291 = vmatprep.subr.bf16.mxu0 0
      %1292 = vmatpush1.bf16.msra.mxu0 0
      %1293 = vmatprep.subr.bf16.mxu0 0
      %1294 = vmatpush1.bf16.msra.mxu0 0
      %1295 = vmatprep.subr.bf16.mxu0 0
      %1296 = vmatpush1.bf16.msra.mxu0 0
      %1297 = vmatprep.subr.bf16.mxu0 0
      %1298 = vmatpush1.bf16.msra.mxu0 0
      %1299 = vmatprep.subr.bf16.mxu0 0
      %1300 = vmatpush1.bf16.msra.mxu0 0
      %1301 = vmatprep.subr.bf16.mxu0 0
      %1302 = vmatpush1.bf16.msra.mxu0 0
      %1303 = vmatprep.subr.bf16.mxu0 0
      %1304 = vmatpush1.bf16.msra.mxu0 0
      %1305 = vmatprep.subr.bf16.mxu0 0
      %1306 = vmatpush1.bf16.msra.mxu0 0
      %1307 = vmatprep.mubr.bf16.mxu0 0
      %1308 = vmatmul.mubr.bf16.gmra.mrb[0].mxu0 %v1206
      %v1309 = vpop.f32.mrb[0].mxu0
      %v1310 = vadd.f32 0.0, %v1309
      %v1311 = vpop.f32.mrb[0].mxu0
      %v1312 = vpop.f32.mrb[0].mxu0
      %v1313 = vadd.f32 0.0, %v1312
      %v1314 = vpop.f32.mrb[0].mxu0
      %1315 = vmatprep.mubr.bf16.mxu0 0
      %1316 = vmatmul.mubr.bf16.gmra.mrb[0].mxu0 %v1207
      %v1317 = vpop.f32.mrb[0].mxu0
      %v1318 = vadd.f32 0.0, %v1317
      %v1319 = vpop.f32.mrb[0].mxu0
      %v1320 = vpop.f32.mrb[0].mxu0
      %v1321 = vadd.f32 0.0, %v1320
      %v1322 = vpop.f32.mrb[0].mxu0
      %1323 = vmatprep.mubr.bf16.mxu0 0
      %1324 = vmatmul.mubr.bf16.gmra.mrb[0].mxu0 %v1208
      %v1325 = vpop.f32.mrb[0].mxu0
      %v1326 = vadd.f32 0.0, %v1325
      %v1327 = vpop.f32.mrb[0].mxu0
      %v1328 = vpop.f32.mrb[0].mxu0
      %v1329 = vadd.f32 0.0, %v1328
      %v1330 = vpop.f32.mrb[0].mxu0
      %1331 = vmatprep.mubr.bf16.mxu0 0
      %1332 = vmatmul.mubr.bf16.gmra.mrb[0].mxu0 %v1209
      %v1333 = vpop.f32.mrb[0].mxu0
      %v1334 = vadd.f32 0.0, %v1333
      %v1335 = vpop.f32.mrb[0].mxu0
      %v1336 = vpop.f32.mrb[0].mxu0
      %v1337 = vadd.f32 0.0, %v1336
      %v1338 = vpop.f32.mrb[0].mxu0
      %1339 = vdwg.mxu0
      %v1340 = vadd.f32 %v1190, %v1310
      %v1341 = vadd.f32 %v1191, %v1313
      %v1342 = vadd.f32 %v1192, %v1318
      %v1343 = vadd.f32 %v1193, %v1321
      %v1344 = vadd.f32 %v1194, %v1326
      %v1345 = vadd.f32 %v1195, %v1329
      %v1346 = vadd.f32 %v1196, %v1334
      %v1347 = vadd.f32 %v1197, %v1337
      %s1348 = scalar_lea.vmem [#allocation2], 32
      %v1349 = vld [vmem:[%s1348] sm:$0xff]
      %v1350 = vld [vmem:[%s1348 + $0x10] sm:$0xff]
      %v1351 = vld [vmem:[%s1348 + $0x20] sm:$0xff]
      %v1352 = vld [vmem:[%s1348 + $0x30] sm:$0xff]
      %v1353 = vld [vmem:[%s1348 + $0x40] sm:$0xff]
      %v1354 = vld [vmem:[%s1348 + $0x50] sm:$0xff]
      %v1355 = vld [vmem:[%s1348 + $0x60] sm:$0xff]
      %v1356 = vld [vmem:[%s1348 + $0x70] sm:$0xff]
      %v1357 = vpack.c.bf16 %v1350, %v1349
      %v1358 = vpack.c.bf16 %v1352, %v1351
      %v1359 = vpack.c.bf16 %v1354, %v1353
      %v1360 = vpack.c.bf16 %v1356, %v1355
      %s1361 = scalar_lea.vmem %s3, 384
      %v1362 = vld [vmem:[%s1361] sm:$0xf]
      %v1363 = vld [vmem:[%s1361 + $0x4] sm:$0xf]
      %v1364 = vld [vmem:[%s1361 + $0x8] sm:$0xf]
      %v1365 = vld [vmem:[%s1361 + $0xc] sm:$0xf]
      %v1366 = vld [vmem:[%s1361 + $0x10] sm:$0xf]
      %v1367 = vld [vmem:[%s1361 + $0x14] sm:$0xf]
      %v1368 = vld [vmem:[%s1361 + $0x18] sm:$0xf]
      %v1369 = vld [vmem:[%s1361 + $0x1c] sm:$0xf]
      %v1370 = vld [vmem:[%s1361 + $0x20] sm:$0xf]
      %v1371 = vld [vmem:[%s1361 + $0x24] sm:$0xf]
      %v1372 = vld [vmem:[%s1361 + $0x28] sm:$0xf]
      %v1373 = vld [vmem:[%s1361 + $0x2c] sm:$0xf]
      %v1374 = vld [vmem:[%s1361 + $0x30] sm:$0xf]
      %v1375 = vld [vmem:[%s1361 + $0x34] sm:$0xf]
      %v1376 = vld [vmem:[%s1361 + $0x38] sm:$0xf]
      %v1377 = vld [vmem:[%s1361 + $0x3c] sm:$0xf]
      %v1394 = vunpack.c.l.b16 %v1362
      %v1395 = vunpack.c.l.b16 %v1363
      %v1396 = vunpack.c.l.b16 %v1364
      %v1397 = vunpack.c.l.b16 %v1365
      %v1398 = vunpack.c.l.b16 %v1366
      %v1399 = vunpack.c.l.b16 %v1367
      %v1400 = vunpack.c.l.b16 %v1368
      %v1401 = vunpack.c.l.b16 %v1369
      %v1402 = vunpack.c.l.b16 %v1370
      %v1403 = vunpack.c.l.b16 %v1371
      %v1404 = vunpack.c.l.b16 %v1372
      %v1405 = vunpack.c.l.b16 %v1373
      %v1406 = vunpack.c.l.b16 %v1374
      %v1407 = vunpack.c.l.b16 %v1375
      %v1408 = vunpack.c.l.b16 %v1376
      %v1409 = vunpack.c.l.b16 %v1377
      %v1410 = vpack.c.b16 %v1395, %v1394
      %v1411 = vpack.c.b16 %v1397, %v1396
      %v1412 = vpack.c.b16 %v1399, %v1398
      %v1413 = vpack.c.b16 %v1401, %v1400
      %v1414 = vpack.c.b16 %v1403, %v1402
      %v1415 = vpack.c.b16 %v1405, %v1404
      %v1416 = vpack.c.b16 %v1407, %v1406
      %v1417 = vpack.c.b16 %v1409, %v1408
      %1426 = vmatprep.subr.bf16.mxu0 0
      %1427 = vmatpush1.bf16.msra.mxu0 %v1410
      %1428 = vmatprep.subr.bf16.mxu0 0
      %1429 = vmatpush1.bf16.msra.mxu0 %v1411
      %1430 = vmatprep.subr.bf16.mxu0 0
      %1431 = vmatpush1.bf16.msra.mxu0 %v1412
      %1432 = vmatprep.subr.bf16.mxu0 0
      %1433 = vmatpush1.bf16.msra.mxu0 %v1413
      %1434 = vmatprep.subr.bf16.mxu0 0
      %1435 = vmatpush1.bf16.msra.mxu0 %v1414
      %1436 = vmatprep.subr.bf16.mxu0 0
      %1437 = vmatpush1.bf16.msra.mxu0 %v1415
      %1438 = vmatprep.subr.bf16.mxu0 0
      %1439 = vmatpush1.bf16.msra.mxu0 %v1416
      %1440 = vmatprep.subr.bf16.mxu0 0
      %1441 = vmatpush1.bf16.msra.mxu0 %v1417
      %1442 = vmatprep.subr.bf16.mxu0 0
      %1443 = vmatpush1.bf16.msra.mxu0 0
      %1444 = vmatprep.subr.bf16.mxu0 0
      %1445 = vmatpush1.bf16.msra.mxu0 0
      %1446 = vmatprep.subr.bf16.mxu0 0
      %1447 = vmatpush1.bf16.msra.mxu0 0
      %1448 = vmatprep.subr.bf16.mxu0 0
      %1449 = vmatpush1.bf16.msra.mxu0 0
      %1450 = vmatprep.subr.bf16.mxu0 0
      %1451 = vmatpush1.bf16.msra.mxu0 0
      %1452 = vmatprep.subr.bf16.mxu0 0
      %1453 = vmatpush1.bf16.msra.mxu0 0
      %1454 = vmatprep.subr.bf16.mxu0 0
      %1455 = vmatpush1.bf16.msra.mxu0 0
      %1456 = vmatprep.subr.bf16.mxu0 0
      %1457 = vmatpush1.bf16.msra.mxu0 0
      %1458 = vmatprep.mubr.bf16.mxu0 0
      %1459 = vmatmul.mubr.bf16.gmra.mrb[0].mxu0 %v1357
      %v1460 = vpop.f32.mrb[0].mxu0
      %v1461 = vadd.f32 0.0, %v1460
      %v1462 = vpop.f32.mrb[0].mxu0
      %v1463 = vpop.f32.mrb[0].mxu0
      %v1464 = vadd.f32 0.0, %v1463
      %v1465 = vpop.f32.mrb[0].mxu0
      %1466 = vmatprep.mubr.bf16.mxu0 0
      %1467 = vmatmul.mubr.bf16.gmra.mrb[0].mxu0 %v1358
      %v1468 = vpop.f32.mrb[0].mxu0
      %v1469 = vadd.f32 0.0, %v1468
      %v1470 = vpop.f32.mrb[0].mxu0
      %v1471 = vpop.f32.mrb[0].mxu0
      %v1472 = vadd.f32 0.0, %v1471
      %v1473 = vpop.f32.mrb[0].mxu0
      %1474 = vmatprep.mubr.bf16.mxu0 0
      %1475 = vmatmul.mubr.bf16.gmra.mrb[0].mxu0 %v1359
      %v1476 = vpop.f32.mrb[0].mxu0
      %v1477 = vadd.f32 0.0, %v1476
      %v1478 = vpop.f32.mrb[0].mxu0
      %v1479 = vpop.f32.mrb[0].mxu0
      %v1480 = vadd.f32 0.0, %v1479
      %v1481 = vpop.f32.mrb[0].mxu0
      %1482 = vmatprep.mubr.bf16.mxu0 0
      %1483 = vmatmul.mubr.bf16.gmra.mrb[0].mxu0 %v1360
      %v1484 = vpop.f32.mrb[0].mxu0
      %v1485 = vadd.f32 0.0, %v1484
      %v1486 = vpop.f32.mrb[0].mxu0
      %v1487 = vpop.f32.mrb[0].mxu0
      %v1488 = vadd.f32 0.0, %v1487
      %v1489 = vpop.f32.mrb[0].mxu0
      %1490 = vdwg.mxu0
      %v1491 = vadd.f32 %v1340, %v1461
      %v1492 = vadd.f32 %v1341, %v1464
      %v1493 = vadd.f32 %v1342, %v1469
      %v1494 = vadd.f32 %v1343, %v1472
      %v1495 = vadd.f32 %v1344, %v1477
      %v1496 = vadd.f32 %v1345, %v1480
      %v1497 = vadd.f32 %v1346, %v1485
      %v1498 = vadd.f32 %v1347, %v1488
      %v1499 = vld [vmem:[%s1348 + $0x1] sm:$0xff]
      %v1500 = vld [vmem:[%s1348 + $0x11] sm:$0xff]
      %v1501 = vld [vmem:[%s1348 + $0x21] sm:$0xff]
      %v1502 = vld [vmem:[%s1348 + $0x31] sm:$0xff]
      %v1503 = vld [vmem:[%s1348 + $0x41] sm:$0xff]
      %v1504 = vld [vmem:[%s1348 + $0x51] sm:$0xff]
      %v1505 = vld [vmem:[%s1348 + $0x61] sm:$0xff]
      %v1506 = vld [vmem:[%s1348 + $0x71] sm:$0xff]
      %v1507 = vpack.c.bf16 %v1500, %v1499
      %v1508 = vpack.c.bf16 %v1502, %v1501
      %v1509 = vpack.c.bf16 %v1504, %v1503
      %v1510 = vpack.c.bf16 %v1506, %v1505
      %s1511 = scalar_lea.vmem %s3, 448
      %v1512 = vld [vmem:[%s1511] sm:$0xf]
      %v1513 = vld [vmem:[%s1511 + $0x4] sm:$0xf]
      %v1514 = vld [vmem:[%s1511 + $0x8] sm:$0xf]
      %v1515 = vld [vmem:[%s1511 + $0xc] sm:$0xf]
      %v1516 = vld [vmem:[%s1511 + $0x10] sm:$0xf]
      %v1517 = vld [vmem:[%s1511 + $0x14] sm:$0xf]
      %v1518 = vld [vmem:[%s1511 + $0x18] sm:$0xf]
      %v1519 = vld [vmem:[%s1511 + $0x1c] sm:$0xf]
      %v1520 = vld [vmem:[%s1511 + $0x20] sm:$0xf]
      %v1521 = vld [vmem:[%s1511 + $0x24] sm:$0xf]
      %v1522 = vld [vmem:[%s1511 + $0x28] sm:$0xf]
      %v1523 = vld [vmem:[%s1511 + $0x2c] sm:$0xf]
      %v1524 = vld [vmem:[%s1511 + $0x30] sm:$0xf]
      %v1525 = vld [vmem:[%s1511 + $0x34] sm:$0xf]
      %v1526 = vld [vmem:[%s1511 + $0x38] sm:$0xf]
      %v1527 = vld [vmem:[%s1511 + $0x3c] sm:$0xf]
      %v1544 = vunpack.c.l.b16 %v1512
      %v1545 = vunpack.c.l.b16 %v1513
      %v1546 = vunpack.c.l.b16 %v1514
      %v1547 = vunpack.c.l.b16 %v1515
      %v1548 = vunpack.c.l.b16 %v1516
      %v1549 = vunpack.c.l.b16 %v1517
      %v1550 = vunpack.c.l.b16 %v1518
      %v1551 = vunpack.c.l.b16 %v1519
      %v1552 = vunpack.c.l.b16 %v1520
      %v1553 = vunpack.c.l.b16 %v1521
      %v1554 = vunpack.c.l.b16 %v1522
      %v1555 = vunpack.c.l.b16 %v1523
      %v1556 = vunpack.c.l.b16 %v1524
      %v1557 = vunpack.c.l.b16 %v1525
      %v1558 = vunpack.c.l.b16 %v1526
      %v1559 = vunpack.c.l.b16 %v1527
      %v1560 = vpack.c.b16 %v1545, %v1544
      %v1561 = vpack.c.b16 %v1547, %v1546
      %v1562 = vpack.c.b16 %v1549, %v1548
      %v1563 = vpack.c.b16 %v1551, %v1550
      %v1564 = vpack.c.b16 %v1553, %v1552
      %v1565 = vpack.c.b16 %v1555, %v1554
      %v1566 = vpack.c.b16 %v1557, %v1556
      %v1567 = vpack.c.b16 %v1559, %v1558
      %1576 = vmatprep.subr.bf16.mxu0 0
      %1577 = vmatpush1.bf16.msra.mxu0 %v1560
      %1578 = vmatprep.subr.bf16.mxu0 0
      %1579 = vmatpush1.bf16.msra.mxu0 %v1561
      %1580 = vmatprep.subr.bf16.mxu0 0
      %1581 = vmatpush1.bf16.msra.mxu0 %v1562
      %1582 = vmatprep.subr.bf16.mxu0 0
      %1583 = vmatpush1.bf16.msra.mxu0 %v1563
      %1584 = vmatprep.subr.bf16.mxu0 0
      %1585 = vmatpush1.bf16.msra.mxu0 %v1564
      %1586 = vmatprep.subr.bf16.mxu0 0
      %1587 = vmatpush1.bf16.msra.mxu0 %v1565
      %1588 = vmatprep.subr.bf16.mxu0 0
      %1589 = vmatpush1.bf16.msra.mxu0 %v1566
      %1590 = vmatprep.subr.bf16.mxu0 0
      %1591 = vmatpush1.bf16.msra.mxu0 %v1567
      %1592 = vmatprep.subr.bf16.mxu0 0
      %1593 = vmatpush1.bf16.msra.mxu0 0
      %1594 = vmatprep.subr.bf16.mxu0 0
      %1595 = vmatpush1.bf16.msra.mxu0 0
      %1596 = vmatprep.subr.bf16.mxu0 0
      %1597 = vmatpush1.bf16.msra.mxu0 0
      %1598 = vmatprep.subr.bf16.mxu0 0
      %1599 = vmatpush1.bf16.msra.mxu0 0
      %1600 = vmatprep.subr.bf16.mxu0 0
      %1601 = vmatpush1.bf16.msra.mxu0 0
      %1602 = vmatprep.subr.bf16.mxu0 0
      %1603 = vmatpush1.bf16.msra.mxu0 0
      %1604 = vmatprep.subr.bf16.mxu0 0
      %1605 = vmatpush1.bf16.msra.mxu0 0
      %1606 = vmatprep.subr.bf16.mxu0 0
      %1607 = vmatpush1.bf16.msra.mxu0 0
      %1608 = vmatprep.mubr.bf16.mxu0 0
      %1609 = vmatmul.mubr.bf16.gmra.mrb[0].mxu0 %v1507
      %v1610 = vpop.f32.mrb[0].mxu0
      %v1611 = vadd.f32 0.0, %v1610
      %v1612 = vpop.f32.mrb[0].mxu0
      %v1613 = vpop.f32.mrb[0].mxu0
      %v1614 = vadd.f32 0.0, %v1613
      %v1615 = vpop.f32.mrb[0].mxu0
      %1616 = vmatprep.mubr.bf16.mxu0 0
      %1617 = vmatmul.mubr.bf16.gmra.mrb[0].mxu0 %v1508
      %v1618 = vpop.f32.mrb[0].mxu0
      %v1619 = vadd.f32 0.0, %v1618
      %v1620 = vpop.f32.mrb[0].mxu0
      %v1621 = vpop.f32.mrb[0].mxu0
      %v1622 = vadd.f32 0.0, %v1621
      %v1623 = vpop.f32.mrb[0].mxu0
      %1624 = vmatprep.mubr.bf16.mxu0 0
      %1625 = vmatmul.mubr.bf16.gmra.mrb[0].mxu0 %v1509
      %v1626 = vpop.f32.mrb[0].mxu0
      %v1627 = vadd.f32 0.0, %v1626
      %v1628 = vpop.f32.mrb[0].mxu0
      %v1629 = vpop.f32.mrb[0].mxu0
      %v1630 = vadd.f32 0.0, %v1629
      %v1631 = vpop.f32.mrb[0].mxu0
      %1632 = vmatprep.mubr.bf16.mxu0 0
      %1633 = vmatmul.mubr.bf16.gmra.mrb[0].mxu0 %v1510
      %v1634 = vpop.f32.mrb[0].mxu0
      %v1635 = vadd.f32 0.0, %v1634
      %v1636 = vpop.f32.mrb[0].mxu0
      %v1637 = vpop.f32.mrb[0].mxu0
      %v1638 = vadd.f32 0.0, %v1637
      %v1639 = vpop.f32.mrb[0].mxu0
      %1640 = vdwg.mxu0
      %v1641 = vadd.f32 %v1491, %v1611
      %v1642 = vadd.f32 %v1492, %v1614
      %v1643 = vadd.f32 %v1493, %v1619
      %v1644 = vadd.f32 %v1494, %v1622
      %v1645 = vadd.f32 %v1495, %v1627
      %v1646 = vadd.f32 %v1496, %v1630
      %v1647 = vadd.f32 %v1497, %v1635
      %v1648 = vadd.f32 %v1498, %v1638
      %v1649 = vld [vmem:[%s1348 + $0x2] sm:$0xff]
      %v1650 = vld [vmem:[%s1348 + $0x12] sm:$0xff]
      %v1651 = vld [vmem:[%s1348 + $0x22] sm:$0xff]
      %v1652 = vld [vmem:[%s1348 + $0x32] sm:$0xff]
      %v1653 = vld [vmem:[%s1348 + $0x42] sm:$0xff]
      %v1654 = vld [vmem:[%s1348 + $0x52] sm:$0xff]
      %v1655 = vld [vmem:[%s1348 + $0x62] sm:$0xff]
      %v1656 = vld [vmem:[%s1348 + $0x72] sm:$0xff]
      %v1657 = vpack.c.bf16 %v1650, %v1649
      %v1658 = vpack.c.bf16 %v1652, %v1651
      %v1659 = vpack.c.bf16 %v1654, %v1653
      %v1660 = vpack.c.bf16 %v1656, %v1655
      %s1661 = scalar_lea.vmem %s3, 512
      %v1662 = vld [vmem:[%s1661] sm:$0xf]
      %v1663 = vld [vmem:[%s1661 + $0x4] sm:$0xf]
      %v1664 = vld [vmem:[%s1661 + $0x8] sm:$0xf]
      %v1665 = vld [vmem:[%s1661 + $0xc] sm:$0xf]
      %v1666 = vld [vmem:[%s1661 + $0x10] sm:$0xf]
      %v1667 = vld [vmem:[%s1661 + $0x14] sm:$0xf]
      %v1668 = vld [vmem:[%s1661 + $0x18] sm:$0xf]
      %v1669 = vld [vmem:[%s1661 + $0x1c] sm:$0xf]
      %v1670 = vld [vmem:[%s1661 + $0x20] sm:$0xf]
      %v1671 = vld [vmem:[%s1661 + $0x24] sm:$0xf]
      %v1672 = vld [vmem:[%s1661 + $0x28] sm:$0xf]
      %v1673 = vld [vmem:[%s1661 + $0x2c] sm:$0xf]
      %v1674 = vld [vmem:[%s1661 + $0x30] sm:$0xf]
      %v1675 = vld [vmem:[%s1661 + $0x34] sm:$0xf]
      %v1676 = vld [vmem:[%s1661 + $0x38] sm:$0xf]
      %v1677 = vld [vmem:[%s1661 + $0x3c] sm:$0xf]
      %v1694 = vunpack.c.l.b16 %v1662
      %v1695 = vunpack.c.l.b16 %v1663
      %v1696 = vunpack.c.l.b16 %v1664
      %v1697 = vunpack.c.l.b16 %v1665
      %v1698 = vunpack.c.l.b16 %v1666
      %v1699 = vunpack.c.l.b16 %v1667
      %v1700 = vunpack.c.l.b16 %v1668
      %v1701 = vunpack.c.l.b16 %v1669
      %v1702 = vunpack.c.l.b16 %v1670
      %v1703 = vunpack.c.l.b16 %v1671
      %v1704 = vunpack.c.l.b16 %v1672
      %v1705 = vunpack.c.l.b16 %v1673
      %v1706 = vunpack.c.l.b16 %v1674
      %v1707 = vunpack.c.l.b16 %v1675
      %v1708 = vunpack.c.l.b16 %v1676
      %v1709 = vunpack.c.l.b16 %v1677
      %v1710 = vpack.c.b16 %v1695, %v1694
      %v1711 = vpack.c.b16 %v1697, %v1696
      %v1712 = vpack.c.b16 %v1699, %v1698
      %v1713 = vpack.c.b16 %v1701, %v1700
      %v1714 = vpack.c.b16 %v1703, %v1702
      %v1715 = vpack.c.b16 %v1705, %v1704
      %v1716 = vpack.c.b16 %v1707, %v1706
      %v1717 = vpack.c.b16 %v1709, %v1708
      %1726 = vmatprep.subr.bf16.mxu0 0
      %1727 = vmatpush1.bf16.msra.mxu0 %v1710
      %1728 = vmatprep.subr.bf16.mxu0 0
      %1729 = vmatpush1.bf16.msra.mxu0 %v1711
      %1730 = vmatprep.subr.bf16.mxu0 0
      %1731 = vmatpush1.bf16.msra.mxu0 %v1712
      %1732 = vmatprep.subr.bf16.mxu0 0
      %1733 = vmatpush1.bf16.msra.mxu0 %v1713
      %1734 = vmatprep.subr.bf16.mxu0 0
      %1735 = vmatpush1.bf16.msra.mxu0 %v1714
      %1736 = vmatprep.subr.bf16.mxu0 0
      %1737 = vmatpush1.bf16.msra.mxu0 %v1715
      %1738 = vmatprep.subr.bf16.mxu0 0
      %1739 = vmatpush1.bf16.msra.mxu0 %v1716
      %1740 = vmatprep.subr.bf16.mxu0 0
      %1741 = vmatpush1.bf16.msra.mxu0 %v1717
      %1742 = vmatprep.subr.bf16.mxu0 0
      %1743 = vmatpush1.bf16.msra.mxu0 0
      %1744 = vmatprep.subr.bf16.mxu0 0
      %1745 = vmatpush1.bf16.msra.mxu0 0
      %1746 = vmatprep.subr.bf16.mxu0 0
      %1747 = vmatpush1.bf16.msra.mxu0 0
      %1748 = vmatprep.subr.bf16.mxu0 0
      %1749 = vmatpush1.bf16.msra.mxu0 0
      %1750 = vmatprep.subr.bf16.mxu0 0
      %1751 = vmatpush1.bf16.msra.mxu0 0
      %1752 = vmatprep.subr.bf16.mxu0 0
      %1753 = vmatpush1.bf16.msra.mxu0 0
      %1754 = vmatprep.subr.bf16.mxu0 0
      %1755 = vmatpush1.bf16.msra.mxu0 0
      %1756 = vmatprep.subr.bf16.mxu0 0
      %1757 = vmatpush1.bf16.msra.mxu0 0
      %1758 = vmatprep.mubr.bf16.mxu0 0
      %1759 = vmatmul.mubr.bf16.gmra.mrb[0].mxu0 %v1657
      %v1760 = vpop.f32.mrb[0].mxu0
      %v1761 = vadd.f32 0.0, %v1760
      %v1762 = vpop.f32.mrb[0].mxu0
      %v1763 = vpop.f32.mrb[0].mxu0
      %v1764 = vadd.f32 0.0, %v1763
      %v1765 = vpop.f32.mrb[0].mxu0
      %1766 = vmatprep.mubr.bf16.mxu0 0
      %1767 = vmatmul.mubr.bf16.gmra.mrb[0].mxu0 %v1658
      %v1768 = vpop.f32.mrb[0].mxu0
      %v1769 = vadd.f32 0.0, %v1768
      %v1770 = vpop.f32.mrb[0].mxu0
      %v1771 = vpop.f32.mrb[0].mxu0
      %v1772 = vadd.f32 0.0, %v1771
      %v1773 = vpop.f32.mrb[0].mxu0
      %1774 = vmatprep.mubr.bf16.mxu0 0
      %1775 = vmatmul.mubr.bf16.gmra.mrb[0].mxu0 %v1659
      %v1776 = vpop.f32.mrb[0].mxu0
      %v1777 = vadd.f32 0.0, %v1776
      %v1778 = vpop.f32.mrb[0].mxu0
      %v1779 = vpop.f32.mrb[0].mxu0
      %v1780 = vadd.f32 0.0, %v1779
      %v1781 = vpop.f32.mrb[0].mxu0
      %1782 = vmatprep.mubr.bf16.mxu0 0
      %1783 = vmatmul.mubr.bf16.gmra.mrb[0].mxu0 %v1660
      %v1784 = vpop.f32.mrb[0].mxu0
      %v1785 = vadd.f32 0.0, %v1784
      %v1786 = vpop.f32.mrb[0].mxu0
      %v1787 = vpop.f32.mrb[0].mxu0
      %v1788 = vadd.f32 0.0, %v1787
      %v1789 = vpop.f32.mrb[0].mxu0
      %1790 = vdwg.mxu0
      %v1791 = vadd.f32 %v1641, %v1761
      %v1792 = vadd.f32 %v1642, %v1764
      %v1793 = vadd.f32 %v1643, %v1769
      %v1794 = vadd.f32 %v1644, %v1772
      %v1795 = vadd.f32 %v1645, %v1777
      %v1796 = vadd.f32 %v1646, %v1780
      %v1797 = vadd.f32 %v1647, %v1785
      %v1798 = vadd.f32 %v1648, %v1788
      %v1799 = vld [vmem:[%s4] sm:$0x1]
      %v1801 = vlaneseq
      %v1802 = vshrl.u32 %v1801, 7
      %v1803 = vsub.s32 0, %v1802
      %v1804 = vrot.slane %v1799, %v1803
      %v1806 = vadd.f32 %v1791, %v1804
      %v1807 = vadd.f32 %v1792, %v1804
      %v1808 = vadd.f32 %v1793, %v1804
      %v1809 = vadd.f32 %v1794, %v1804
      %v1810 = vadd.f32 %v1795, %v1804
      %v1811 = vadd.f32 %v1796, %v1804
      %v1812 = vadd.f32 %v1797, %v1804
      %v1813 = vadd.f32 %v1798, %v1804
      %v1814 = vmax.f32 %v1806, 0.0
      %v1815 = vmax.f32 %v1807, 0.0
      %v1816 = vmax.f32 %v1808, 0.0
      %v1817 = vmax.f32 %v1809, 0.0
      %v1818 = vmax.f32 %v1810, 0.0
      %v1819 = vmax.f32 %v1811, 0.0
      %v1820 = vmax.f32 %v1812, 0.0
      %v1821 = vmax.f32 %v1813, 0.0
      %v1822 = vpack.c.bf16 %v1815, %v1814
      %v1823 = vpack.c.bf16 %v1817, %v1816
      %v1824 = vpack.c.bf16 %v1819, %v1818
      %v1825 = vpack.c.bf16 %v1821, %v1820
      %v1826 = vld [vmem:[%s5] sm:$0xf]
      %v1827 = vld [vmem:[%s5 + $0x4] sm:$0xf]
      %v1828 = vld [vmem:[%s5 + $0x8] sm:$0xf]
      %v1829 = vld [vmem:[%s5 + $0xc] sm:$0xf]
      %v1830 = vld [vmem:[%s5 + $0x10] sm:$0xf]
      %v1831 = vld [vmem:[%s5 + $0x14] sm:$0xf]
      %v1832 = vld [vmem:[%s5 + $0x18] sm:$0xf]
      %v1833 = vld [vmem:[%s5 + $0x1c] sm:$0xf]
      %v1834 = vld [vmem:[%s5 + $0x20] sm:$0xf]
      %v1835 = vld [vmem:[%s5 + $0x24] sm:$0xf]
      %v1836 = vld [vmem:[%s5 + $0x28] sm:$0xf]
      %v1837 = vld [vmem:[%s5 + $0x2c] sm:$0xf]
      %v1838 = vld [vmem:[%s5 + $0x30] sm:$0xf]
      %v1839 = vld [vmem:[%s5 + $0x34] sm:$0xf]
      %v1840 = vld [vmem:[%s5 + $0x38] sm:$0xf]
      %v1841 = vld [vmem:[%s5 + $0x3c] sm:$0xf]
      %v1842 = vld [vmem:[%s6] sm:$0x1]
      %v1844 = vlaneseq
      %v1845 = vshrl.u32 %v1844, 7
      %v1846 = vsub.s32 0, %v1845
      %v1847 = vrot.slane %v1842, %v1846
      %v1865 = vunpack.c.l.b16 %v1826
      %v1866 = vunpack.c.l.b16 %v1827
      %v1867 = vunpack.c.l.b16 %v1828
      %v1868 = vunpack.c.l.b16 %v1829
      %v1869 = vunpack.c.l.b16 %v1830
      %v1870 = vunpack.c.l.b16 %v1831
      %v1871 = vunpack.c.l.b16 %v1832
      %v1872 = vunpack.c.l.b16 %v1833
      %v1873 = vunpack.c.l.b16 %v1834
      %v1874 = vunpack.c.l.b16 %v1835
      %v1875 = vunpack.c.l.b16 %v1836
      %v1876 = vunpack.c.l.b16 %v1837
      %v1877 = vunpack.c.l.b16 %v1838
      %v1878 = vunpack.c.l.b16 %v1839
      %v1879 = vunpack.c.l.b16 %v1840
      %v1880 = vunpack.c.l.b16 %v1841
      %v1881 = vpack.c.b16 %v1866, %v1865
      %v1882 = vpack.c.b16 %v1868, %v1867
      %v1883 = vpack.c.b16 %v1870, %v1869
      %v1884 = vpack.c.b16 %v1872, %v1871
      %v1885 = vpack.c.b16 %v1874, %v1873
      %v1886 = vpack.c.b16 %v1876, %v1875
      %v1887 = vpack.c.b16 %v1878, %v1877
      %v1888 = vpack.c.b16 %v1880, %v1879
      %1897 = vmatprep.subr.bf16.mxu0 0
      %1898 = vmatpush1.bf16.msra.mxu0 %v1881
      %1899 = vmatprep.subr.bf16.mxu0 0
      %1900 = vmatpush1.bf16.msra.mxu0 %v1882
      %1901 = vmatprep.subr.bf16.mxu0 0
      %1902 = vmatpush1.bf16.msra.mxu0 %v1883
      %1903 = vmatprep.subr.bf16.mxu0 0
      %1904 = vmatpush1.bf16.msra.mxu0 %v1884
      %1905 = vmatprep.subr.bf16.mxu0 0
      %1906 = vmatpush1.bf16.msra.mxu0 %v1885
      %1907 = vmatprep.subr.bf16.mxu0 0
      %1908 = vmatpush1.bf16.msra.mxu0 %v1886
      %1909 = vmatprep.subr.bf16.mxu0 0
      %1910 = vmatpush1.bf16.msra.mxu0 %v1887
      %1911 = vmatprep.subr.bf16.mxu0 0
      %1912 = vmatpush1.bf16.msra.mxu0 %v1888
      %1913 = vmatprep.subr.bf16.mxu0 0
      %1914 = vmatpush1.bf16.msra.mxu0 0
      %1915 = vmatprep.subr.bf16.mxu0 0
      %1916 = vmatpush1.bf16.msra.mxu0 0
      %1917 = vmatprep.subr.bf16.mxu0 0
      %1918 = vmatpush1.bf16.msra.mxu0 0
      %1919 = vmatprep.subr.bf16.mxu0 0
      %1920 = vmatpush1.bf16.msra.mxu0 0
      %1921 = vmatprep.subr.bf16.mxu0 0
      %1922 = vmatpush1.bf16.msra.mxu0 0
      %1923 = vmatprep.subr.bf16.mxu0 0
      %1924 = vmatpush1.bf16.msra.mxu0 0
      %1925 = vmatprep.subr.bf16.mxu0 0
      %1926 = vmatpush1.bf16.msra.mxu0 0
      %1927 = vmatprep.subr.bf16.mxu0 0
      %1928 = vmatpush1.bf16.msra.mxu0 0
      %1929 = vmatprep.mubr.bf16.mxu0 0
      %1930 = vmatmul.mubr.bf16.gmra.mrb[0].mxu0 %v1822
      %v1931 = vpop.f32.mrb[0].mxu0
      %v1932 = vadd.f32 %v1847, %v1931
      %v1933 = vpop.f32.mrb[0].mxu0
      %v1934 = vpop.f32.mrb[0].mxu0
      %v1935 = vadd.f32 %v1847, %v1934
      %v1936 = vpop.f32.mrb[0].mxu0
      %1937 = vmatprep.mubr.bf16.mxu0 0
      %1938 = vmatmul.mubr.bf16.gmra.mrb[0].mxu0 %v1823
      %v1939 = vpop.f32.mrb[0].mxu0
      %v1940 = vadd.f32 %v1847, %v1939
      %v1941 = vpop.f32.mrb[0].mxu0
      %v1942 = vpop.f32.mrb[0].mxu0
      %v1943 = vadd.f32 %v1847, %v1942
      %v1944 = vpop.f32.mrb[0].mxu0
      %1945 = vmatprep.mubr.bf16.mxu0 0
      %1946 = vmatmul.mubr.bf16.gmra.mrb[0].mxu0 %v1824
      %v1947 = vpop.f32.mrb[0].mxu0
      %v1948 = vadd.f32 %v1847, %v1947
      %v1949 = vpop.f32.mrb[0].mxu0
      %v1950 = vpop.f32.mrb[0].mxu0
      %v1951 = vadd.f32 %v1847, %v1950
      %v1952 = vpop.f32.mrb[0].mxu0
      %1953 = vmatprep.mubr.bf16.mxu0 0
      %1954 = vmatmul.mubr.bf16.gmra.mrb[0].mxu0 %v1825
      %v1955 = vpop.f32.mrb[0].mxu0
      %v1956 = vadd.f32 %v1847, %v1955
      %v1957 = vpop.f32.mrb[0].mxu0
      %v1958 = vpop.f32.mrb[0].mxu0
      %v1959 = vadd.f32 %v1847, %v1958
      %v1960 = vpop.f32.mrb[0].mxu0
      %1961 = vdwg.mxu0
      %v1962 = vadd.f32 %v1932, %v280
      %v1963 = vadd.f32 %v1935, %v281
      %v1964 = vadd.f32 %v1940, %v282
      %v1965 = vadd.f32 %v1943, %v283
      %v1966 = vadd.f32 %v1948, %v284
      %v1967 = vadd.f32 %v1951, %v285
      %v1968 = vadd.f32 %v1956, %v286
      %v1969 = vadd.f32 %v1959, %v287
      %v1970 = vmax.f32 %v1962, 0.0
      %v1971 = vmax.f32 %v1963, 0.0
      %v1972 = vmax.f32 %v1964, 0.0
      %v1973 = vmax.f32 %v1965, 0.0
      %v1974 = vmax.f32 %v1966, 0.0
      %v1975 = vmax.f32 %v1967, 0.0
      %v1976 = vmax.f32 %v1968, 0.0
      %v1977 = vmax.f32 %v1969, 0.0
      %1978 = vst [vmem:[%s278] sm:$0xff] %v1970
      %1979 = vst [vmem:[%s278 + $0x8] sm:$0xff] %v1971
      %1980 = vst [vmem:[%s278 + $0x10] sm:$0xff] %v1972
      %1981 = vst [vmem:[%s278 + $0x18] sm:$0xff] %v1973
      %1982 = vst [vmem:[%s278 + $0x20] sm:$0xff] %v1974
      %1983 = vst [vmem:[%s278 + $0x28] sm:$0xff] %v1975
      %1984 = vst [vmem:[%s278 + $0x30] sm:$0xff] %v1976
      %1985 = vst [vmem:[%s278 + $0x38] sm:$0xff] %v1977
      %p1986 = scmp.lt.s32.totalorder %s18, 1
      %s1987 = scalar_select %p1986, %s18, 1
      %s1988 = smul.addr %s1987, 8
      %s1989 = smul.addr %s1988, 8
      %s1990 = scalar_lea.vmem %s7, %s1989
      // Predicated region
      $region49: #{encoder_forward.5} parent=47 // pred_check
        %p1991 = pneg %p188
      $region50: #{encoder_forward.5} parent=47 // pred_check_branch
        %1993 = sbr.rel (%p1991) target = $region52
      $region51: #{encoder_forward.5} parent=47 // pred_region
        _
      $region52: #{encoder_forward.5} parent=47 // pred_fallthru
        _
    $region48: #{encoder_forward.5} parent=5 // pred_fallthru
      _
    %p1994 = scmp.le.s32.totalorder 2, %s13
    // Predicated region
    $region53: #{encoder_forward.5} parent=5 // pred_check
      %p1995 = pneg %p1994
    $region54: #{encoder_forward.5} parent=5 // pred_check_branch
      %1997 = sbr.rel (%p1995) target = $region56
    $region55: #{encoder_forward.5} parent=5 // pred_region
      %s1998 = ssub.s32 %s13, 2
      // Predicated region
      $region57: #{encoder_forward.5} parent=55 // pred_check
        %p1999 = pneg %p194
      $region58: #{encoder_forward.5} parent=55 // pred_check_branch
        %2001 = sbr.rel (%p1999) target = $region60
      $region59: #{encoder_forward.5} parent=55 // pred_region
        %p2002 = scmp.lt.s32.totalorder %s19, 1
        %s2003 = scalar_select %p2002, %s19, 1
        %s2004 = smul.addr %s2003, 8
        %s2005 = smul.addr %s2004, 8
        %s2006 = scalar_lea.vmem %s7, %s2005
      $region60: #{encoder_forward.5} parent=55 // pred_fallthru
        _
    $region56: #{encoder_forward.5} parent=5 // pred_fallthru
      _
  $region6: #{encoder_forward.5} parent=0 // loop_footer
    %s17 = sadd.s32 1, %s13
  $region7: #{encoder_forward.5} parent=0 // loop_footer_branch
    %12 = sbr.rel target = $region3
  $region8: #{encoder_forward.5} parent=0 // loop_exit
    _

</llo_original>
